<compile_context>
chip_gen: v6e
topology: v6e:2x2x1
jax: 0.10.0
libtpu: 0.0.40
codegen_flags: <defaults>
</compile_context>

<pallas_src>
import jax
import jax.numpy as jnp
from jax import lax
from jax.experimental import pallas as pl
from jax.experimental.pallas import tpu as pltpu

HIDDEN = 16
_LANES = 128   # lane width of the batch layout (full vreg -> unmasked vst)
_SUB = 16      # rows per inner chunk: 2 f32 vregs / 1 packed bf16 vreg per value


def _round_up(v, m):
    return ((v + m - 1) // m) * m


def _default_compute_dtype():
    """bf16 on VPUs with native bf16 (v6e / v7x); f32 elsewhere (v5e & older
    have no bf16 VALU, so bf16 would only add convert work on the binding slot)."""
    try:
        kind = jax.devices()[0].device_kind.lower()
    except Exception:
        return jnp.float32
    if ("v6" in kind) or ("v7" in kind) or ("7x" in kind):
        return jnp.bfloat16
    return jnp.float32


def _balanced_sum(terms):
    """Sum an iterable of arrays with a balanced (depth ~log2 n) add tree.

    Binary-counter reduction: consumes `terms` lazily, so only O(log n)
    partial sums (plus the term being merged) are live at any point --
    short VALU dependency chains without blowing up vreg pressure.
    """
    stack = []  # (rank, value)
    for t in terms:
        rank, val = 0, t
        while stack and stack[-1][0] == rank:
            _, prev = stack.pop()
            val = prev + val
            rank += 1
        stack.append((rank, val))
    total = None
    for _, val in reversed(stack):
        total = val if total is None else total + val
    return total


def _make_kernel(weights_in_vmem):
    """Build the fused MLP kernel.

    weights_in_vmem=False: weights are f32 scalars in SMEM, read once per grid
      step (Mosaic keeps them as scalar operands of the VPU ops).
    weights_in_vmem=True : weights are lane-replicated vectors in VMEM (bf16
      path); each row is read at its use site so the broadcast uses the idle
      vld slot and nothing long-lived is pinned across the chunk loop.
    """

    def kernel(x_ref, w1_ref, b1_ref, w2_ref, b2_ref, w3_ref, b3_ref, o_ref):
        block_rows = x_ref.shape[0]
        n_chunks = block_rows // _SUB

        if weights_in_vmem:
            g_w1 = lambda j: w1_ref[j]
            g_b1 = lambda j: b1_ref[j]
            g_w2 = lambda j, k: w2_ref[j, k]
            g_b2 = lambda k: b2_ref[k]
            g_w3 = lambda k: w3_ref[k]
            g_b3 = lambda: b3_ref[0]
        else:
            # Tiny weights: load every scalar once per grid step (cheap SMEM reads).
            w1 = [w1_ref[j] for j in range(HIDDEN)]
            b1 = [b1_ref[j] for j in range(HIDDEN)]
            w2 = [[w2_ref[j, k] for k in range(HIDDEN)] for j in range(HIDDEN)]
            b2 = [b2_ref[k] for k in range(HIDDEN)]
            w3 = [w3_ref[k] for k in range(HIDDEN)]
            b3 = b3_ref[0]
            g_w1 = lambda j: w1[j]
            g_b1 = lambda j: b1[j]
            g_w2 = lambda j, k: w2[j][k]
            g_b2 = lambda k: b2[k]
            g_w3 = lambda k: w3[k]
            g_b3 = lambda: b3

        def chunk(c, carry):
            r = pl.multiple_of(c * _SUB, _SUB)
            x = x_ref[pl.ds(r, _SUB), :]                 # (_SUB, 128) batch samples

            # Layer 1 (1 -> 16): K=1 -> one broadcast FMA + ReLU per hidden unit.
            h1 = [jnp.maximum(x * g_w1(j) + g_b1(j), 0.0) for j in range(HIDDEN)]

            # Layer 2 (16 -> 16) + Layer 3 (16 -> 1), fused.  The 16-term sums
            # use a balanced depth-4 tree (was a 15-deep serial chain).
            y = None
            for k in range(HIDDEN):
                s = _balanced_sum(h1[j] * g_w2(j, k) for j in range(HIDDEN))
                h2k = jnp.maximum(s + g_b2(k), 0.0)
                yk = h2k * g_w3(k)
                y = yk if y is None else y + yk
            y = y + g_b3()

            o_ref[pl.ds(r, _SUB), :] = y.astype(o_ref.dtype)
            return carry

        lax.fori_loop(0, n_chunks, chunk, 0)

    return kernel


def simple_net_forward(x, params, *, block_rows=2048, compute_dtype=None):
    """x: (N, 1) float32 -> (N, 1) float32; same math as the PyTorch SimpleNet.

    compute_dtype=None auto-selects packed bf16 on v6e/v7x and f32 on v5e /
    unknown chips (per the performance review).
    """
    n = x.shape[0]
    lanes = _LANES

    if compute_dtype is None:
        compute_dtype = _default_compute_dtype()
    compute_dtype = jnp.dtype(compute_dtype)
    if compute_dtype not in (jnp.dtype(jnp.float32), jnp.dtype(jnp.bfloat16)):
        raise ValueError(f"unsupported compute dtype {compute_dtype}")
    use_bf16 = compute_dtype == jnp.dtype(jnp.bfloat16)

    # ---- batch tiling -------------------------------------------------------
    rows_needed = max(1, pl.cdiv(n, lanes))
    # Cap block_rows so the grid has >= 2 steps whenever the batch spans >= 2
    # sub-chunks: with dimension_semantics=("parallel",) both v7x TensorCores
    # get work.  Default 2048 amortizes per-grid-step overhead.
    max_block = _round_up(max(_SUB, pl.cdiv(rows_needed, 2)), _SUB)
    block_rows = max(_SUB, min(_round_up(block_rows, _SUB), max_block))
    rows_total = _round_up(rows_needed, block_rows)
    n_pad = rows_total * lanes

    # TODO(synk): handle the ragged tail in-kernel (scalar-prefetch n + masked
    # store) so the pad / slice HBM passes disappear for overhead-bound tiny N.
    xf = jnp.reshape(x, (-1,)).astype(compute_dtype)
    if n_pad != n:
        xf = jnp.pad(xf, (0, n_pad - n))
    x2 = xf.reshape(rows_total, lanes)                   # lane-dense batch layout

    tile = pl.BlockSpec((block_rows, lanes), lambda i: (i, 0))

    # ---- weight operands ----------------------------------------------------
    if use_bf16:
        # Lane-replicated bf16 weights in VMEM: bf16 vector operands without any
        # bf16 scalar support; the broadcast is done by the (idle) load slot.
        def rep(a, shape):
            return jnp.broadcast_to(a.astype(compute_dtype)[..., None], shape)

        w_args = (rep(params["w1"], (HIDDEN, lanes)),
                  rep(params["b1"], (HIDDEN, lanes)),
                  rep(params["w2"], (HIDDEN, HIDDEN, lanes)),
                  rep(params["b2"], (HIDDEN, lanes)),
                  rep(params["w3"], (HIDDEN, lanes)),
                  rep(params["b3"], (1, lanes)))

        def wspec(shp):
            return pl.BlockSpec(shp, lambda i: (0,) * len(shp))

        w_specs = [wspec(a.shape) for a in w_args]
    else:
        # f32 path: ~1 KiB of scalars in SMEM (sreg operands -> free broadcast).
        w_args = (params["w1"], params["b1"], params["w2"], params["b2"],
                  params["w3"], params["b3"])
        smem = pl.BlockSpec(memory_space=pltpu.MemorySpace.SMEM)
        w_specs = [smem] * 6

    # ---- VMEM budget (only matters when sweeping very large tiles; v5e's
    # scoped default is 16 MiB) ------------------------------------------------
    tile_bytes = block_rows * lanes * (compute_dtype.itemsize + 4)   # in + f32 out
    vmem_needed = 2 * tile_bytes + (1 << 20)                         # double buffered
    vmem_limit = int(vmem_needed * 3 // 2) if vmem_needed > (12 << 20) else None

    flops = 2 * (HIDDEN + HIDDEN * HIDDEN + HIDDEN) * n
    bytes_accessed = ((compute_dtype.itemsize + 4) * n_pad
                      + 4 * (3 * HIDDEN + HIDDEN * HIDDEN + HIDDEN + 1))

    out2 = pl.pallas_call(
        _make_kernel(use_bf16),
        out_shape=jax.ShapeDtypeStruct((rows_total, lanes), jnp.float32),
        grid=(rows_total // block_rows,),
        in_specs=[tile] + w_specs,
        out_specs=tile,
        compiler_params=pltpu.CompilerParams(
            dimension_semantics=("parallel",),
            vmem_limit_bytes=vmem_limit),
        cost_estimate=pl.CostEstimate(
            flops=flops, transcendentals=0, bytes_accessed=bytes_accessed),
    )(x2, *w_args)

    y = out2.reshape(-1)
    if n_pad != n:
        y = y[:n]
    return y.reshape(n, 1)


def init_params(key):
    """Deterministic init mimicking nn.Linear default U(-1/sqrt(fan_in), +).

    Layout: w1 (16,), b1 (16,), w2 (16,16) in (in, out) order, b2 (16,),
    w3 (16,), b3 (1,).  Forward math is identical to the PyTorch module.
    """
    ks = jax.random.split(key, 6)

    def linear(kw, kb, fan_in, shape_w, shape_b):
        bnd = 1.0 / float(fan_in) ** 0.5
        w = jax.random.uniform(kw, shape_w, jnp.float32, -bnd, bnd)
        b = jax.random.uniform(kb, shape_b, jnp.float32, -bnd, bnd)
        return w, b

    w1, b1 = linear(ks[0], ks[1], 1, (HIDDEN,), (HIDDEN,))
    w2, b2 = linear(ks[2], ks[3], HIDDEN, (HIDDEN, HIDDEN), (HIDDEN,))
    w3, b3 = linear(ks[4], ks[5], HIDDEN, (HIDDEN,), (1,))
    return {"w1": w1, "b1": b1, "w2": w2, "b2": b2, "w3": w3, "b3": b3}


def _reference(x, p):
    h1 = jnp.maximum(x @ p["w1"].reshape(1, HIDDEN) + p["b1"][None, :], 0.0)
    h2 = jnp.maximum(h1 @ p["w2"] + p["b2"][None, :], 0.0)
    return h2 @ p["w3"].reshape(HIDDEN, 1) + p["b3"][None, :]


if __name__ == "__main__":
    key = jax.random.PRNGKey(0)
    k_params, k_x1, k_x2 = jax.random.split(key, 3)

    params = init_params(k_params)

    # 1) Small batch, f32 compute: tight check vs the pure-JAX reference.
    x_small = jax.random.normal(k_x1, (8, 1), jnp.float32)
    out_small = jax.block_until_ready(
        simple_net_forward(x_small, params, compute_dtype=jnp.float32))
    ref_small = _reference(x_small, params)
    assert out_small.shape == (8, 1)
    assert jnp.allclose(out_small, ref_small, atol=1e-4, rtol=1e-5), "f32 small-batch mismatch"

    # 2) Ragged batch spanning >= 2 grid steps (multi-tile pipeline, v7x megacore
    #    sharding, pad/slice tail path), still f32.
    x_big = jax.random.normal(k_x2, (4097, 1), jnp.float32)
    out_big = jax.block_until_ready(
        simple_net_forward(x_big, params, compute_dtype=jnp.float32))
    ref_big = _reference(x_big, params)
    assert out_big.shape == (4097, 1)
    assert jnp.allclose(out_big, ref_big, atol=1e-4, rtol=1e-5), "f32 multi-tile mismatch"

    # 3) Auto-selected compute dtype (packed bf16 on v6e/v7x, f32 elsewhere).
    auto_dtype = jnp.dtype(_default_compute_dtype())
    out_auto = jax.block_until_ready(simple_net_forward(x_big, params))
    if auto_dtype == jnp.dtype(jnp.bfloat16):
        err = float(jnp.max(jnp.abs(out_auto - ref_big)))
        scale = float(jnp.max(jnp.abs(ref_big)))
        assert err <= 0.1 * scale + 0.1, f"bf16 path error too large: {err} (scale {scale})"
    else:
        assert jnp.allclose(out_auto, ref_big, atol=1e-4, rtol=1e-5), "auto-path mismatch"

    print("KERNEL_OK")
</pallas_src>

<mosaic_0001>
module attributes {stable_mosaic.version = 11 : i64} {
  func.func @kernel(%arg0: i32, %arg1: memref<16x128xf32, #tpu.memory_space<vmem>>, %arg2: memref<16xf32, #tpu.memory_space<smem>>, %arg3: memref<16xf32, #tpu.memory_space<smem>>, %arg4: memref<16x16xf32, #tpu.memory_space<smem>>, %arg5: memref<16xf32, #tpu.memory_space<smem>>, %arg6: memref<16xf32, #tpu.memory_space<smem>>, %arg7: memref<1xf32, #tpu.memory_space<smem>>, %arg8: memref<16x128xf32, #tpu.memory_space<vmem>>) attributes {dimension_semantics = [#tpu.dimension_semantics<parallel>], iteration_bounds = array<i64: 1>, scalar_prefetch = 0 : i64, scratch_operands = 0 : i64, tpu.core_type = #tpu.core_type<tc>, window_params = [{transform_indices = @transform_0, window_bounds = array<i64: 16, 128>}, {transform_indices = @transform_1, window_bounds = array<i64: 16>}, {transform_indices = @transform_2, window_bounds = array<i64: 16>}, {transform_indices = @transform_3, window_bounds = array<i64: 16, 16>}, {transform_indices = @transform_4, window_bounds = array<i64: 16>}, {transform_indices = @transform_5, window_bounds = array<i64: 16>}, {transform_indices = @transform_6, window_bounds = array<i64: 1>}, {transform_indices = @transform_7, window_bounds = array<i64: 16, 128>}]} {
    %c0 = arith.constant 0 : index
    %0 = memref.load %arg2[%c0] : memref<16xf32, #tpu.memory_space<smem>>
    %c1 = arith.constant 1 : index
    %1 = memref.load %arg2[%c1] : memref<16xf32, #tpu.memory_space<smem>>
    %c2 = arith.constant 2 : index
    %2 = memref.load %arg2[%c2] : memref<16xf32, #tpu.memory_space<smem>>
    %c3 = arith.constant 3 : index
    %3 = memref.load %arg2[%c3] : memref<16xf32, #tpu.memory_space<smem>>
    %c4 = arith.constant 4 : index
    %4 = memref.load %arg2[%c4] : memref<16xf32, #tpu.memory_space<smem>>
    %c5 = arith.constant 5 : index
    %5 = memref.load %arg2[%c5] : memref<16xf32, #tpu.memory_space<smem>>
    %c6 = arith.constant 6 : index
    %6 = memref.load %arg2[%c6] : memref<16xf32, #tpu.memory_space<smem>>
    %c7 = arith.constant 7 : index
    %7 = memref.load %arg2[%c7] : memref<16xf32, #tpu.memory_space<smem>>
    %c8 = arith.constant 8 : index
    %8 = memref.load %arg2[%c8] : memref<16xf32, #tpu.memory_space<smem>>
    %c9 = arith.constant 9 : index
    %9 = memref.load %arg2[%c9] : memref<16xf32, #tpu.memory_space<smem>>
    %c10 = arith.constant 10 : index
    %10 = memref.load %arg2[%c10] : memref<16xf32, #tpu.memory_space<smem>>
    %c11 = arith.constant 11 : index
    %11 = memref.load %arg2[%c11] : memref<16xf32, #tpu.memory_space<smem>>
    %c12 = arith.constant 12 : index
    %12 = memref.load %arg2[%c12] : memref<16xf32, #tpu.memory_space<smem>>
    %c13 = arith.constant 13 : index
    %13 = memref.load %arg2[%c13] : memref<16xf32, #tpu.memory_space<smem>>
    %c14 = arith.constant 14 : index
    %14 = memref.load %arg2[%c14] : memref<16xf32, #tpu.memory_space<smem>>
    %c15 = arith.constant 15 : index
    %15 = memref.load %arg2[%c15] : memref<16xf32, #tpu.memory_space<smem>>
    %c0_0 = arith.constant 0 : index
    %16 = memref.load %arg3[%c0_0] : memref<16xf32, #tpu.memory_space<smem>>
    %c1_1 = arith.constant 1 : index
    %17 = memref.load %arg3[%c1_1] : memref<16xf32, #tpu.memory_space<smem>>
    %c2_2 = arith.constant 2 : index
    %18 = memref.load %arg3[%c2_2] : memref<16xf32, #tpu.memory_space<smem>>
    %c3_3 = arith.constant 3 : index
    %19 = memref.load %arg3[%c3_3] : memref<16xf32, #tpu.memory_space<smem>>
    %c4_4 = arith.constant 4 : index
    %20 = memref.load %arg3[%c4_4] : memref<16xf32, #tpu.memory_space<smem>>
    %c5_5 = arith.constant 5 : index
    %21 = memref.load %arg3[%c5_5] : memref<16xf32, #tpu.memory_space<smem>>
    %c6_6 = arith.constant 6 : index
    %22 = memref.load %arg3[%c6_6] : memref<16xf32, #tpu.memory_space<smem>>
    %c7_7 = arith.constant 7 : index
    %23 = memref.load %arg3[%c7_7] : memref<16xf32, #tpu.memory_space<smem>>
    %c8_8 = arith.constant 8 : index
    %24 = memref.load %arg3[%c8_8] : memref<16xf32, #tpu.memory_space<smem>>
    %c9_9 = arith.constant 9 : index
    %25 = memref.load %arg3[%c9_9] : memref<16xf32, #tpu.memory_space<smem>>
    %c10_10 = arith.constant 10 : index
    %26 = memref.load %arg3[%c10_10] : memref<16xf32, #tpu.memory_space<smem>>
    %c11_11 = arith.constant 11 : index
    %27 = memref.load %arg3[%c11_11] : memref<16xf32, #tpu.memory_space<smem>>
    %c12_12 = arith.constant 12 : index
    %28 = memref.load %arg3[%c12_12] : memref<16xf32, #tpu.memory_space<smem>>
    %c13_13 = arith.constant 13 : index
    %29 = memref.load %arg3[%c13_13] : memref<16xf32, #tpu.memory_space<smem>>
    %c14_14 = arith.constant 14 : index
    %30 = memref.load %arg3[%c14_14] : memref<16xf32, #tpu.memory_space<smem>>
    %c15_15 = arith.constant 15 : index
    %31 = memref.load %arg3[%c15_15] : memref<16xf32, #tpu.memory_space<smem>>
    %c0_16 = arith.constant 0 : index
    %c0_17 = arith.constant 0 : index
    %32 = memref.load %arg4[%c0_16, %c0_17] : memref<16x16xf32, #tpu.memory_space<smem>>
    %c0_18 = arith.constant 0 : index
    %c1_19 = arith.constant 1 : index
    %33 = memref.load %arg4[%c0_18, %c1_19] : memref<16x16xf32, #tpu.memory_space<smem>>
    %c0_20 = arith.constant 0 : index
    %c2_21 = arith.constant 2 : index
    %34 = memref.load %arg4[%c0_20, %c2_21] : memref<16x16xf32, #tpu.memory_space<smem>>
    %c0_22 = arith.constant 0 : index
    %c3_23 = arith.constant 3 : index
    %35 = memref.load %arg4[%c0_22, %c3_23] : memref<16x16xf32, #tpu.memory_space<smem>>
    %c0_24 = arith.constant 0 : index
    %c4_25 = arith.constant 4 : index
    %36 = memref.load %arg4[%c0_24, %c4_25] : memref<16x16xf32, #tpu.memory_space<smem>>
    %c0_26 = arith.constant 0 : index
    %c5_27 = arith.constant 5 : index
    %37 = memref.load %arg4[%c0_26, %c5_27] : memref<16x16xf32, #tpu.memory_space<smem>>
    %c0_28 = arith.constant 0 : index
    %c6_29 = arith.constant 6 : index
    %38 = memref.load %arg4[%c0_28, %c6_29] : memref<16x16xf32, #tpu.memory_space<smem>>
    %c0_30 = arith.constant 0 : index
    %c7_31 = arith.constant 7 : index
    %39 = memref.load %arg4[%c0_30, %c7_31] : memref<16x16xf32, #tpu.memory_space<smem>>
    %c0_32 = arith.constant 0 : index
    %c8_33 = arith.constant 8 : index
    %40 = memref.load %arg4[%c0_32, %c8_33] : memref<16x16xf32, #tpu.memory_space<smem>>
    %c0_34 = arith.constant 0 : index
    %c9_35 = arith.constant 9 : index
    %41 = memref.load %arg4[%c0_34, %c9_35] : memref<16x16xf32, #tpu.memory_space<smem>>
    %c0_36 = arith.constant 0 : index
    %c10_37 = arith.constant 10 : index
    %42 = memref.load %arg4[%c0_36, %c10_37] : memref<16x16xf32, #tpu.memory_space<smem>>
    %c0_38 = arith.constant 0 : index
    %c11_39 = arith.constant 11 : index
    %43 = memref.load %arg4[%c0_38, %c11_39] : memref<16x16xf32, #tpu.memory_space<smem>>
    %c0_40 = arith.constant 0 : index
    %c12_41 = arith.constant 12 : index
    %44 = memref.load %arg4[%c0_40, %c12_41] : memref<16x16xf32, #tpu.memory_space<smem>>
    %c0_42 = arith.constant 0 : index
    %c13_43 = arith.constant 13 : index
    %45 = memref.load %arg4[%c0_42, %c13_43] : memref<16x16xf32, #tpu.memory_space<smem>>
    %c0_44 = arith.constant 0 : index
    %c14_45 = arith.constant 14 : index
    %46 = memref.load %arg4[%c0_44, %c14_45] : memref<16x16xf32, #tpu.memory_space<smem>>
    %c0_46 = arith.constant 0 : index
    %c15_47 = arith.constant 15 : index
    %47 = memref.load %arg4[%c0_46, %c15_47] : memref<16x16xf32, #tpu.memory_space<smem>>
    %c1_48 = arith.constant 1 : index
    %c0_49 = arith.constant 0 : index
    %48 = memref.load %arg4[%c1_48, %c0_49] : memref<16x16xf32, #tpu.memory_space<smem>>
    %c1_50 = arith.constant 1 : index
    %c1_51 = arith.constant 1 : index
    %49 = memref.load %arg4[%c1_50, %c1_51] : memref<16x16xf32, #tpu.memory_space<smem>>
    %c1_52 = arith.constant 1 : index
    %c2_53 = arith.constant 2 : index
    %50 = memref.load %arg4[%c1_52, %c2_53] : memref<16x16xf32, #tpu.memory_space<smem>>
    %c1_54 = arith.constant 1 : index
    %c3_55 = arith.constant 3 : index
    %51 = memref.load %arg4[%c1_54, %c3_55] : memref<16x16xf32, #tpu.memory_space<smem>>
    %c1_56 = arith.constant 1 : index
    %c4_57 = arith.constant 4 : index
    %52 = memref.load %arg4[%c1_56, %c4_57] : memref<16x16xf32, #tpu.memory_space<smem>>
    %c1_58 = arith.constant 1 : index
    %c5_59 = arith.constant 5 : index
    %53 = memref.load %arg4[%c1_58, %c5_59] : memref<16x16xf32, #tpu.memory_space<smem>>
    %c1_60 = arith.constant 1 : index
    %c6_61 = arith.constant 6 : index
    %54 = memref.load %arg4[%c1_60, %c6_61] : memref<16x16xf32, #tpu.memory_space<smem>>
    %c1_62 = arith.constant 1 : index
    %c7_63 = arith.constant 7 : index
    %55 = memref.load %arg4[%c1_62, %c7_63] : memref<16x16xf32, #tpu.memory_space<smem>>
    %c1_64 = arith.constant 1 : index
    %c8_65 = arith.constant 8 : index
    %56 = memref.load %arg4[%c1_64, %c8_65] : memref<16x16xf32, #tpu.memory_space<smem>>
    %c1_66 = arith.constant 1 : index
    %c9_67 = arith.constant 9 : index
    %57 = memref.load %arg4[%c1_66, %c9_67] : memref<16x16xf32, #tpu.memory_space<smem>>
    %c1_68 = arith.constant 1 : index
    %c10_69 = arith.constant 10 : index
    %58 = memref.load %arg4[%c1_68, %c10_69] : memref<16x16xf32, #tpu.memory_space<smem>>
    %c1_70 = arith.constant 1 : index
    %c11_71 = arith.constant 11 : index
    %59 = memref.load %arg4[%c1_70, %c11_71] : memref<16x16xf32, #tpu.memory_space<smem>>
    %c1_72 = arith.constant 1 : index
    %c12_73 = arith.constant 12 : index
    %60 = memref.load %arg4[%c1_72, %c12_73] : memref<16x16xf32, #tpu.memory_space<smem>>
    %c1_74 = arith.constant 1 : index
    %c13_75 = arith.constant 13 : index
    %61 = memref.load %arg4[%c1_74, %c13_75] : memref<16x16xf32, #tpu.memory_space<smem>>
    %c1_76 = arith.constant 1 : index
    %c14_77 = arith.constant 14 : index
    %62 = memref.load %arg4[%c1_76, %c14_77] : memref<16x16xf32, #tpu.memory_space<smem>>
    %c1_78 = arith.constant 1 : index
    %c15_79 = arith.constant 15 : index
    %63 = memref.load %arg4[%c1_78, %c15_79] : memref<16x16xf32, #tpu.memory_space<smem>>
    %c2_80 = arith.constant 2 : index
    %c0_81 = arith.constant 0 : index
    %64 = memref.load %arg4[%c2_80, %c0_81] : memref<16x16xf32, #tpu.memory_space<smem>>
    %c2_82 = arith.constant 2 : index
    %c1_83 = arith.constant 1 : index
    %65 = memref.load %arg4[%c2_82, %c1_83] : memref<16x16xf32, #tpu.memory_space<smem>>
    %c2_84 = arith.constant 2 : index
    %c2_85 = arith.constant 2 : index
    %66 = memref.load %arg4[%c2_84, %c2_85] : memref<16x16xf32, #tpu.memory_space<smem>>
    %c2_86 = arith.constant 2 : index
    %c3_87 = arith.constant 3 : index
    %67 = memref.load %arg4[%c2_86, %c3_87] : memref<16x16xf32, #tpu.memory_space<smem>>
    %c2_88 = arith.constant 2 : index
    %c4_89 = arith.constant 4 : index
    %68 = memref.load %arg4[%c2_88, %c4_89] : memref<16x16xf32, #tpu.memory_space<smem>>
    %c2_90 = arith.constant 2 : index
    %c5_91 = arith.constant 5 : index
    %69 = memref.load %arg4[%c2_90, %c5_91] : memref<16x16xf32, #tpu.memory_space<smem>>
    %c2_92 = arith.constant 2 : index
    %c6_93 = arith.constant 6 : index
    %70 = memref.load %arg4[%c2_92, %c6_93] : memref<16x16xf32, #tpu.memory_space<smem>>
    %c2_94 = arith.constant 2 : index
    %c7_95 = arith.constant 7 : index
    %71 = memref.load %arg4[%c2_94, %c7_95] : memref<16x16xf32, #tpu.memory_space<smem>>
    %c2_96 = arith.constant 2 : index
    %c8_97 = arith.constant 8 : index
    %72 = memref.load %arg4[%c2_96, %c8_97] : memref<16x16xf32, #tpu.memory_space<smem>>
    %c2_98 = arith.constant 2 : index
    %c9_99 = arith.constant 9 : index
    %73 = memref.load %arg4[%c2_98, %c9_99] : memref<16x16xf32, #tpu.memory_space<smem>>
    %c2_100 = arith.constant 2 : index
    %c10_101 = arith.constant 10 : index
    %74 = memref.load %arg4[%c2_100, %c10_101] : memref<16x16xf32, #tpu.memory_space<smem>>
    %c2_102 = arith.constant 2 : index
    %c11_103 = arith.constant 11 : index
    %75 = memref.load %arg4[%c2_102, %c11_103] : memref<16x16xf32, #tpu.memory_space<smem>>
    %c2_104 = arith.constant 2 : index
    %c12_105 = arith.constant 12 : index
    %76 = memref.load %arg4[%c2_104, %c12_105] : memref<16x16xf32, #tpu.memory_space<smem>>
    %c2_106 = arith.constant 2 : index
    %c13_107 = arith.constant 13 : index
    %77 = memref.load %arg4[%c2_106, %c13_107] : memref<16x16xf32, #tpu.memory_space<smem>>
    %c2_108 = arith.constant 2 : index
    %c14_109 = arith.constant 14 : index
    %78 = memref.load %arg4[%c2_108, %c14_109] : memref<16x16xf32, #tpu.memory_space<smem>>
    %c2_110 = arith.constant 2 : index
    %c15_111 = arith.constant 15 : index
    %79 = memref.load %arg4[%c2_110, %c15_111] : memref<16x16xf32, #tpu.memory_space<smem>>
    %c3_112 = arith.constant 3 : index
    %c0_113 = arith.constant 0 : index
    %80 = memref.load %arg4[%c3_112, %c0_113] : memref<16x16xf32, #tpu.memory_space<smem>>
    %c3_114 = arith.constant 3 : index
    %c1_115 = arith.constant 1 : index
    %81 = memref.load %arg4[%c3_114, %c1_115] : memref<16x16xf32, #tpu.memory_space<smem>>
    %c3_116 = arith.constant 3 : index
    %c2_117 = arith.constant 2 : index
    %82 = memref.load %arg4[%c3_116, %c2_117] : memref<16x16xf32, #tpu.memory_space<smem>>
    %c3_118 = arith.constant 3 : index
    %c3_119 = arith.constant 3 : index
    %83 = memref.load %arg4[%c3_118, %c3_119] : memref<16x16xf32, #tpu.memory_space<smem>>
    %c3_120 = arith.constant 3 : index
    %c4_121 = arith.constant 4 : index
    %84 = memref.load %arg4[%c3_120, %c4_121] : memref<16x16xf32, #tpu.memory_space<smem>>
    %c3_122 = arith.constant 3 : index
    %c5_123 = arith.constant 5 : index
    %85 = memref.load %arg4[%c3_122, %c5_123] : memref<16x16xf32, #tpu.memory_space<smem>>
    %c3_124 = arith.constant 3 : index
    %c6_125 = arith.constant 6 : index
    %86 = memref.load %arg4[%c3_124, %c6_125] : memref<16x16xf32, #tpu.memory_space<smem>>
    %c3_126 = arith.constant 3 : index
    %c7_127 = arith.constant 7 : index
    %87 = memref.load %arg4[%c3_126, %c7_127] : memref<16x16xf32, #tpu.memory_space<smem>>
    %c3_128 = arith.constant 3 : index
    %c8_129 = arith.constant 8 : index
    %88 = memref.load %arg4[%c3_128, %c8_129] : memref<16x16xf32, #tpu.memory_space<smem>>
    %c3_130 = arith.constant 3 : index
    %c9_131 = arith.constant 9 : index
    %89 = memref.load %arg4[%c3_130, %c9_131] : memref<16x16xf32, #tpu.memory_space<smem>>
    %c3_132 = arith.constant 3 : index
    %c10_133 = arith.constant 10 : index
    %90 = memref.load %arg4[%c3_132, %c10_133] : memref<16x16xf32, #tpu.memory_space<smem>>
    %c3_134 = arith.constant 3 : index
    %c11_135 = arith.constant 11 : index
    %91 = memref.load %arg4[%c3_134, %c11_135] : memref<16x16xf32, #tpu.memory_space<smem>>
    %c3_136 = arith.constant 3 : index
    %c12_137 = arith.constant 12 : index
    %92 = memref.load %arg4[%c3_136, %c12_137] : memref<16x16xf32, #tpu.memory_space<smem>>
    %c3_138 = arith.constant 3 : index
    %c13_139 = arith.constant 13 : index
    %93 = memref.load %arg4[%c3_138, %c13_139] : memref<16x16xf32, #tpu.memory_space<smem>>
    %c3_140 = arith.constant 3 : index
    %c14_141 = arith.constant 14 : index
    %94 = memref.load %arg4[%c3_140, %c14_141] : memref<16x16xf32, #tpu.memory_space<smem>>
    %c3_142 = arith.constant 3 : index
    %c15_143 = arith.constant 15 : index
    %95 = memref.load %arg4[%c3_142, %c15_143] : memref<16x16xf32, #tpu.memory_space<smem>>
    %c4_144 = arith.constant 4 : index
    %c0_145 = arith.constant 0 : index
    %96 = memref.load %arg4[%c4_144, %c0_145] : memref<16x16xf32, #tpu.memory_space<smem>>
    %c4_146 = arith.constant 4 : index
    %c1_147 = arith.constant 1 : index
    %97 = memref.load %arg4[%c4_146, %c1_147] : memref<16x16xf32, #tpu.memory_space<smem>>
    %c4_148 = arith.constant 4 : index
    %c2_149 = arith.constant 2 : index
    %98 = memref.load %arg4[%c4_148, %c2_149] : memref<16x16xf32, #tpu.memory_space<smem>>
    %c4_150 = arith.constant 4 : index
    %c3_151 = arith.constant 3 : index
    %99 = memref.load %arg4[%c4_150, %c3_151] : memref<16x16xf32, #tpu.memory_space<smem>>
    %c4_152 = arith.constant 4 : index
    %c4_153 = arith.constant 4 : index
    %100 = memref.load %arg4[%c4_152, %c4_153] : memref<16x16xf32, #tpu.memory_space<smem>>
    %c4_154 = arith.constant 4 : index
    %c5_155 = arith.constant 5 : index
    %101 = memref.load %arg4[%c4_154, %c5_155] : memref<16x16xf32, #tpu.memory_space<smem>>
    %c4_156 = arith.constant 4 : index
    %c6_157 = arith.constant 6 : index
    %102 = memref.load %arg4[%c4_156, %c6_157] : memref<16x16xf32, #tpu.memory_space<smem>>
    %c4_158 = arith.constant 4 : index
    %c7_159 = arith.constant 7 : index
    %103 = memref.load %arg4[%c4_158, %c7_159] : memref<16x16xf32, #tpu.memory_space<smem>>
    %c4_160 = arith.constant 4 : index
    %c8_161 = arith.constant 8 : index
    %104 = memref.load %arg4[%c4_160, %c8_161] : memref<16x16xf32, #tpu.memory_space<smem>>
    %c4_162 = arith.constant 4 : index
    %c9_163 = arith.constant 9 : index
    %105 = memref.load %arg4[%c4_162, %c9_163] : memref<16x16xf32, #tpu.memory_space<smem>>
    %c4_164 = arith.constant 4 : index
    %c10_165 = arith.constant 10 : index
    %106 = memref.load %arg4[%c4_164, %c10_165] : memref<16x16xf32, #tpu.memory_space<smem>>
    %c4_166 = arith.constant 4 : index
    %c11_167 = arith.constant 11 : index
    %107 = memref.load %arg4[%c4_166, %c11_167] : memref<16x16xf32, #tpu.memory_space<smem>>
    %c4_168 = arith.constant 4 : index
    %c12_169 = arith.constant 12 : index
    %108 = memref.load %arg4[%c4_168, %c12_169] : memref<16x16xf32, #tpu.memory_space<smem>>
    %c4_170 = arith.constant 4 : index
    %c13_171 = arith.constant 13 : index
    %109 = memref.load %arg4[%c4_170, %c13_171] : memref<16x16xf32, #tpu.memory_space<smem>>
    %c4_172 = arith.constant 4 : index
    %c14_173 = arith.constant 14 : index
    %110 = memref.load %arg4[%c4_172, %c14_173] : memref<16x16xf32, #tpu.memory_space<smem>>
    %c4_174 = arith.constant 4 : index
    %c15_175 = arith.constant 15 : index
    %111 = memref.load %arg4[%c4_174, %c15_175] : memref<16x16xf32, #tpu.memory_space<smem>>
    %c5_176 = arith.constant 5 : index
    %c0_177 = arith.constant 0 : index
    %112 = memref.load %arg4[%c5_176, %c0_177] : memref<16x16xf32, #tpu.memory_space<smem>>
    %c5_178 = arith.constant 5 : index
    %c1_179 = arith.constant 1 : index
    %113 = memref.load %arg4[%c5_178, %c1_179] : memref<16x16xf32, #tpu.memory_space<smem>>
    %c5_180 = arith.constant 5 : index
    %c2_181 = arith.constant 2 : index
    %114 = memref.load %arg4[%c5_180, %c2_181] : memref<16x16xf32, #tpu.memory_space<smem>>
    %c5_182 = arith.constant 5 : index
    %c3_183 = arith.constant 3 : index
    %115 = memref.load %arg4[%c5_182, %c3_183] : memref<16x16xf32, #tpu.memory_space<smem>>
    %c5_184 = arith.constant 5 : index
    %c4_185 = arith.constant 4 : index
    %116 = memref.load %arg4[%c5_184, %c4_185] : memref<16x16xf32, #tpu.memory_space<smem>>
    %c5_186 = arith.constant 5 : index
    %c5_187 = arith.constant 5 : index
    %117 = memref.load %arg4[%c5_186, %c5_187] : memref<16x16xf32, #tpu.memory_space<smem>>
    %c5_188 = arith.constant 5 : index
    %c6_189 = arith.constant 6 : index
    %118 = memref.load %arg4[%c5_188, %c6_189] : memref<16x16xf32, #tpu.memory_space<smem>>
    %c5_190 = arith.constant 5 : index
    %c7_191 = arith.constant 7 : index
    %119 = memref.load %arg4[%c5_190, %c7_191] : memref<16x16xf32, #tpu.memory_space<smem>>
    %c5_192 = arith.constant 5 : index
    %c8_193 = arith.constant 8 : index
    %120 = memref.load %arg4[%c5_192, %c8_193] : memref<16x16xf32, #tpu.memory_space<smem>>
    %c5_194 = arith.constant 5 : index
    %c9_195 = arith.constant 9 : index
    %121 = memref.load %arg4[%c5_194, %c9_195] : memref<16x16xf32, #tpu.memory_space<smem>>
    %c5_196 = arith.constant 5 : index
    %c10_197 = arith.constant 10 : index
    %122 = memref.load %arg4[%c5_196, %c10_197] : memref<16x16xf32, #tpu.memory_space<smem>>
    %c5_198 = arith.constant 5 : index
    %c11_199 = arith.constant 11 : index
    %123 = memref.load %arg4[%c5_198, %c11_199] : memref<16x16xf32, #tpu.memory_space<smem>>
    %c5_200 = arith.constant 5 : index
    %c12_201 = arith.constant 12 : index
    %124 = memref.load %arg4[%c5_200, %c12_201] : memref<16x16xf32, #tpu.memory_space<smem>>
    %c5_202 = arith.constant 5 : index
    %c13_203 = arith.constant 13 : index
    %125 = memref.load %arg4[%c5_202, %c13_203] : memref<16x16xf32, #tpu.memory_space<smem>>
    %c5_204 = arith.constant 5 : index
    %c14_205 = arith.constant 14 : index
    %126 = memref.load %arg4[%c5_204, %c14_205] : memref<16x16xf32, #tpu.memory_space<smem>>
    %c5_206 = arith.constant 5 : index
    %c15_207 = arith.constant 15 : index
    %127 = memref.load %arg4[%c5_206, %c15_207] : memref<16x16xf32, #tpu.memory_space<smem>>
    %c6_208 = arith.constant 6 : index
    %c0_209 = arith.constant 0 : index
    %128 = memref.load %arg4[%c6_208, %c0_209] : memref<16x16xf32, #tpu.memory_space<smem>>
    %c6_210 = arith.constant 6 : index
    %c1_211 = arith.constant 1 : index
    %129 = memref.load %arg4[%c6_210, %c1_211] : memref<16x16xf32, #tpu.memory_space<smem>>
    %c6_212 = arith.constant 6 : index
    %c2_213 = arith.constant 2 : index
    %130 = memref.load %arg4[%c6_212, %c2_213] : memref<16x16xf32, #tpu.memory_space<smem>>
    %c6_214 = arith.constant 6 : index
    %c3_215 = arith.constant 3 : index
    %131 = memref.load %arg4[%c6_214, %c3_215] : memref<16x16xf32, #tpu.memory_space<smem>>
    %c6_216 = arith.constant 6 : index
    %c4_217 = arith.constant 4 : index
    %132 = memref.load %arg4[%c6_216, %c4_217] : memref<16x16xf32, #tpu.memory_space<smem>>
    %c6_218 = arith.constant 6 : index
    %c5_219 = arith.constant 5 : index
    %133 = memref.load %arg4[%c6_218, %c5_219] : memref<16x16xf32, #tpu.memory_space<smem>>
    %c6_220 = arith.constant 6 : index
    %c6_221 = arith.constant 6 : index
    %134 = memref.load %arg4[%c6_220, %c6_221] : memref<16x16xf32, #tpu.memory_space<smem>>
    %c6_222 = arith.constant 6 : index
    %c7_223 = arith.constant 7 : index
    %135 = memref.load %arg4[%c6_222, %c7_223] : memref<16x16xf32, #tpu.memory_space<smem>>
    %c6_224 = arith.constant 6 : index
    %c8_225 = arith.constant 8 : index
    %136 = memref.load %arg4[%c6_224, %c8_225] : memref<16x16xf32, #tpu.memory_space<smem>>
    %c6_226 = arith.constant 6 : index
    %c9_227 = arith.constant 9 : index
    %137 = memref.load %arg4[%c6_226, %c9_227] : memref<16x16xf32, #tpu.memory_space<smem>>
    %c6_228 = arith.constant 6 : index
    %c10_229 = arith.constant 10 : index
    %138 = memref.load %arg4[%c6_228, %c10_229] : memref<16x16xf32, #tpu.memory_space<smem>>
    %c6_230 = arith.constant 6 : index
    %c11_231 = arith.constant 11 : index
    %139 = memref.load %arg4[%c6_230, %c11_231] : memref<16x16xf32, #tpu.memory_space<smem>>
    %c6_232 = arith.constant 6 : index
    %c12_233 = arith.constant 12 : index
    %140 = memref.load %arg4[%c6_232, %c12_233] : memref<16x16xf32, #tpu.memory_space<smem>>
    %c6_234 = arith.constant 6 : index
    %c13_235 = arith.constant 13 : index
    %141 = memref.load %arg4[%c6_234, %c13_235] : memref<16x16xf32, #tpu.memory_space<smem>>
    %c6_236 = arith.constant 6 : index
    %c14_237 = arith.constant 14 : index
    %142 = memref.load %arg4[%c6_236, %c14_237] : memref<16x16xf32, #tpu.memory_space<smem>>
    %c6_238 = arith.constant 6 : index
    %c15_239 = arith.constant 15 : index
    %143 = memref.load %arg4[%c6_238, %c15_239] : memref<16x16xf32, #tpu.memory_space<smem>>
    %c7_240 = arith.constant 7 : index
    %c0_241 = arith.constant 0 : index
    %144 = memref.load %arg4[%c7_240, %c0_241] : memref<16x16xf32, #tpu.memory_space<smem>>
    %c7_242 = arith.constant 7 : index
    %c1_243 = arith.constant 1 : index
    %145 = memref.load %arg4[%c7_242, %c1_243] : memref<16x16xf32, #tpu.memory_space<smem>>
    %c7_244 = arith.constant 7 : index
    %c2_245 = arith.constant 2 : index
    %146 = memref.load %arg4[%c7_244, %c2_245] : memref<16x16xf32, #tpu.memory_space<smem>>
    %c7_246 = arith.constant 7 : index
    %c3_247 = arith.constant 3 : index
    %147 = memref.load %arg4[%c7_246, %c3_247] : memref<16x16xf32, #tpu.memory_space<smem>>
    %c7_248 = arith.constant 7 : index
    %c4_249 = arith.constant 4 : index
    %148 = memref.load %arg4[%c7_248, %c4_249] : memref<16x16xf32, #tpu.memory_space<smem>>
    %c7_250 = arith.constant 7 : index
    %c5_251 = arith.constant 5 : index
    %149 = memref.load %arg4[%c7_250, %c5_251] : memref<16x16xf32, #tpu.memory_space<smem>>
    %c7_252 = arith.constant 7 : index
    %c6_253 = arith.constant 6 : index
    %150 = memref.load %arg4[%c7_252, %c6_253] : memref<16x16xf32, #tpu.memory_space<smem>>
    %c7_254 = arith.constant 7 : index
    %c7_255 = arith.constant 7 : index
    %151 = memref.load %arg4[%c7_254, %c7_255] : memref<16x16xf32, #tpu.memory_space<smem>>
    %c7_256 = arith.constant 7 : index
    %c8_257 = arith.constant 8 : index
    %152 = memref.load %arg4[%c7_256, %c8_257] : memref<16x16xf32, #tpu.memory_space<smem>>
    %c7_258 = arith.constant 7 : index
    %c9_259 = arith.constant 9 : index
    %153 = memref.load %arg4[%c7_258, %c9_259] : memref<16x16xf32, #tpu.memory_space<smem>>
    %c7_260 = arith.constant 7 : index
    %c10_261 = arith.constant 10 : index
    %154 = memref.load %arg4[%c7_260, %c10_261] : memref<16x16xf32, #tpu.memory_space<smem>>
    %c7_262 = arith.constant 7 : index
    %c11_263 = arith.constant 11 : index
    %155 = memref.load %arg4[%c7_262, %c11_263] : memref<16x16xf32, #tpu.memory_space<smem>>
    %c7_264 = arith.constant 7 : index
    %c12_265 = arith.constant 12 : index
    %156 = memref.load %arg4[%c7_264, %c12_265] : memref<16x16xf32, #tpu.memory_space<smem>>
    %c7_266 = arith.constant 7 : index
    %c13_267 = arith.constant 13 : index
    %157 = memref.load %arg4[%c7_266, %c13_267] : memref<16x16xf32, #tpu.memory_space<smem>>
    %c7_268 = arith.constant 7 : index
    %c14_269 = arith.constant 14 : index
    %158 = memref.load %arg4[%c7_268, %c14_269] : memref<16x16xf32, #tpu.memory_space<smem>>
    %c7_270 = arith.constant 7 : index
    %c15_271 = arith.constant 15 : index
    %159 = memref.load %arg4[%c7_270, %c15_271] : memref<16x16xf32, #tpu.memory_space<smem>>
    %c8_272 = arith.constant 8 : index
    %c0_273 = arith.constant 0 : index
    %160 = memref.load %arg4[%c8_272, %c0_273] : memref<16x16xf32, #tpu.memory_space<smem>>
    %c8_274 = arith.constant 8 : index
    %c1_275 = arith.constant 1 : index
    %161 = memref.load %arg4[%c8_274, %c1_275] : memref<16x16xf32, #tpu.memory_space<smem>>
    %c8_276 = arith.constant 8 : index
    %c2_277 = arith.constant 2 : index
    %162 = memref.load %arg4[%c8_276, %c2_277] : memref<16x16xf32, #tpu.memory_space<smem>>
    %c8_278 = arith.constant 8 : index
    %c3_279 = arith.constant 3 : index
    %163 = memref.load %arg4[%c8_278, %c3_279] : memref<16x16xf32, #tpu.memory_space<smem>>
    %c8_280 = arith.constant 8 : index
    %c4_281 = arith.constant 4 : index
    %164 = memref.load %arg4[%c8_280, %c4_281] : memref<16x16xf32, #tpu.memory_space<smem>>
    %c8_282 = arith.constant 8 : index
    %c5_283 = arith.constant 5 : index
    %165 = memref.load %arg4[%c8_282, %c5_283] : memref<16x16xf32, #tpu.memory_space<smem>>
    %c8_284 = arith.constant 8 : index
    %c6_285 = arith.constant 6 : index
    %166 = memref.load %arg4[%c8_284, %c6_285] : memref<16x16xf32, #tpu.memory_space<smem>>
    %c8_286 = arith.constant 8 : index
    %c7_287 = arith.constant 7 : index
    %167 = memref.load %arg4[%c8_286, %c7_287] : memref<16x16xf32, #tpu.memory_space<smem>>
    %c8_288 = arith.constant 8 : index
    %c8_289 = arith.constant 8 : index
    %168 = memref.load %arg4[%c8_288, %c8_289] : memref<16x16xf32, #tpu.memory_space<smem>>
    %c8_290 = arith.constant 8 : index
    %c9_291 = arith.constant 9 : index
    %169 = memref.load %arg4[%c8_290, %c9_291] : memref<16x16xf32, #tpu.memory_space<smem>>
    %c8_292 = arith.constant 8 : index
    %c10_293 = arith.constant 10 : index
    %170 = memref.load %arg4[%c8_292, %c10_293] : memref<16x16xf32, #tpu.memory_space<smem>>
    %c8_294 = arith.constant 8 : index
    %c11_295 = arith.constant 11 : index
    %171 = memref.load %arg4[%c8_294, %c11_295] : memref<16x16xf32, #tpu.memory_space<smem>>
    %c8_296 = arith.constant 8 : index
    %c12_297 = arith.constant 12 : index
    %172 = memref.load %arg4[%c8_296, %c12_297] : memref<16x16xf32, #tpu.memory_space<smem>>
    %c8_298 = arith.constant 8 : index
    %c13_299 = arith.constant 13 : index
    %173 = memref.load %arg4[%c8_298, %c13_299] : memref<16x16xf32, #tpu.memory_space<smem>>
    %c8_300 = arith.constant 8 : index
    %c14_301 = arith.constant 14 : index
    %174 = memref.load %arg4[%c8_300, %c14_301] : memref<16x16xf32, #tpu.memory_space<smem>>
    %c8_302 = arith.constant 8 : index
    %c15_303 = arith.constant 15 : index
    %175 = memref.load %arg4[%c8_302, %c15_303] : memref<16x16xf32, #tpu.memory_space<smem>>
    %c9_304 = arith.constant 9 : index
    %c0_305 = arith.constant 0 : index
    %176 = memref.load %arg4[%c9_304, %c0_305] : memref<16x16xf32, #tpu.memory_space<smem>>
    %c9_306 = arith.constant 9 : index
    %c1_307 = arith.constant 1 : index
    %177 = memref.load %arg4[%c9_306, %c1_307] : memref<16x16xf32, #tpu.memory_space<smem>>
    %c9_308 = arith.constant 9 : index
    %c2_309 = arith.constant 2 : index
    %178 = memref.load %arg4[%c9_308, %c2_309] : memref<16x16xf32, #tpu.memory_space<smem>>
    %c9_310 = arith.constant 9 : index
    %c3_311 = arith.constant 3 : index
    %179 = memref.load %arg4[%c9_310, %c3_311] : memref<16x16xf32, #tpu.memory_space<smem>>
    %c9_312 = arith.constant 9 : index
    %c4_313 = arith.constant 4 : index
    %180 = memref.load %arg4[%c9_312, %c4_313] : memref<16x16xf32, #tpu.memory_space<smem>>
    %c9_314 = arith.constant 9 : index
    %c5_315 = arith.constant 5 : index
    %181 = memref.load %arg4[%c9_314, %c5_315] : memref<16x16xf32, #tpu.memory_space<smem>>
    %c9_316 = arith.constant 9 : index
    %c6_317 = arith.constant 6 : index
    %182 = memref.load %arg4[%c9_316, %c6_317] : memref<16x16xf32, #tpu.memory_space<smem>>
    %c9_318 = arith.constant 9 : index
    %c7_319 = arith.constant 7 : index
    %183 = memref.load %arg4[%c9_318, %c7_319] : memref<16x16xf32, #tpu.memory_space<smem>>
    %c9_320 = arith.constant 9 : index
    %c8_321 = arith.constant 8 : index
    %184 = memref.load %arg4[%c9_320, %c8_321] : memref<16x16xf32, #tpu.memory_space<smem>>
    %c9_322 = arith.constant 9 : index
    %c9_323 = arith.constant 9 : index
    %185 = memref.load %arg4[%c9_322, %c9_323] : memref<16x16xf32, #tpu.memory_space<smem>>
    %c9_324 = arith.constant 9 : index
    %c10_325 = arith.constant 10 : index
    %186 = memref.load %arg4[%c9_324, %c10_325] : memref<16x16xf32, #tpu.memory_space<smem>>
    %c9_326 = arith.constant 9 : index
    %c11_327 = arith.constant 11 : index
    %187 = memref.load %arg4[%c9_326, %c11_327] : memref<16x16xf32, #tpu.memory_space<smem>>
    %c9_328 = arith.constant 9 : index
    %c12_329 = arith.constant 12 : index
    %188 = memref.load %arg4[%c9_328, %c12_329] : memref<16x16xf32, #tpu.memory_space<smem>>
    %c9_330 = arith.constant 9 : index
    %c13_331 = arith.constant 13 : index
    %189 = memref.load %arg4[%c9_330, %c13_331] : memref<16x16xf32, #tpu.memory_space<smem>>
    %c9_332 = arith.constant 9 : index
    %c14_333 = arith.constant 14 : index
    %190 = memref.load %arg4[%c9_332, %c14_333] : memref<16x16xf32, #tpu.memory_space<smem>>
    %c9_334 = arith.constant 9 : index
    %c15_335 = arith.constant 15 : index
    %191 = memref.load %arg4[%c9_334, %c15_335] : memref<16x16xf32, #tpu.memory_space<smem>>
    %c10_336 = arith.constant 10 : index
    %c0_337 = arith.constant 0 : index
    %192 = memref.load %arg4[%c10_336, %c0_337] : memref<16x16xf32, #tpu.memory_space<smem>>
    %c10_338 = arith.constant 10 : index
    %c1_339 = arith.constant 1 : index
    %193 = memref.load %arg4[%c10_338, %c1_339] : memref<16x16xf32, #tpu.memory_space<smem>>
    %c10_340 = arith.constant 10 : index
    %c2_341 = arith.constant 2 : index
    %194 = memref.load %arg4[%c10_340, %c2_341] : memref<16x16xf32, #tpu.memory_space<smem>>
    %c10_342 = arith.constant 10 : index
    %c3_343 = arith.constant 3 : index
    %195 = memref.load %arg4[%c10_342, %c3_343] : memref<16x16xf32, #tpu.memory_space<smem>>
    %c10_344 = arith.constant 10 : index
    %c4_345 = arith.constant 4 : index
    %196 = memref.load %arg4[%c10_344, %c4_345] : memref<16x16xf32, #tpu.memory_space<smem>>
    %c10_346 = arith.constant 10 : index
    %c5_347 = arith.constant 5 : index
    %197 = memref.load %arg4[%c10_346, %c5_347] : memref<16x16xf32, #tpu.memory_space<smem>>
    %c10_348 = arith.constant 10 : index
    %c6_349 = arith.constant 6 : index
    %198 = memref.load %arg4[%c10_348, %c6_349] : memref<16x16xf32, #tpu.memory_space<smem>>
    %c10_350 = arith.constant 10 : index
    %c7_351 = arith.constant 7 : index
    %199 = memref.load %arg4[%c10_350, %c7_351] : memref<16x16xf32, #tpu.memory_space<smem>>
    %c10_352 = arith.constant 10 : index
    %c8_353 = arith.constant 8 : index
    %200 = memref.load %arg4[%c10_352, %c8_353] : memref<16x16xf32, #tpu.memory_space<smem>>
    %c10_354 = arith.constant 10 : index
    %c9_355 = arith.constant 9 : index
    %201 = memref.load %arg4[%c10_354, %c9_355] : memref<16x16xf32, #tpu.memory_space<smem>>
    %c10_356 = arith.constant 10 : index
    %c10_357 = arith.constant 10 : index
    %202 = memref.load %arg4[%c10_356, %c10_357] : memref<16x16xf32, #tpu.memory_space<smem>>
    %c10_358 = arith.constant 10 : index
    %c11_359 = arith.constant 11 : index
    %203 = memref.load %arg4[%c10_358, %c11_359] : memref<16x16xf32, #tpu.memory_space<smem>>
    %c10_360 = arith.constant 10 : index
    %c12_361 = arith.constant 12 : index
    %204 = memref.load %arg4[%c10_360, %c12_361] : memref<16x16xf32, #tpu.memory_space<smem>>
    %c10_362 = arith.constant 10 : index
    %c13_363 = arith.constant 13 : index
    %205 = memref.load %arg4[%c10_362, %c13_363] : memref<16x16xf32, #tpu.memory_space<smem>>
    %c10_364 = arith.constant 10 : index
    %c14_365 = arith.constant 14 : index
    %206 = memref.load %arg4[%c10_364, %c14_365] : memref<16x16xf32, #tpu.memory_space<smem>>
    %c10_366 = arith.constant 10 : index
    %c15_367 = arith.constant 15 : index
    %207 = memref.load %arg4[%c10_366, %c15_367] : memref<16x16xf32, #tpu.memory_space<smem>>
    %c11_368 = arith.constant 11 : index
    %c0_369 = arith.constant 0 : index
    %208 = memref.load %arg4[%c11_368, %c0_369] : memref<16x16xf32, #tpu.memory_space<smem>>
    %c11_370 = arith.constant 11 : index
    %c1_371 = arith.constant 1 : index
    %209 = memref.load %arg4[%c11_370, %c1_371] : memref<16x16xf32, #tpu.memory_space<smem>>
    %c11_372 = arith.constant 11 : index
    %c2_373 = arith.constant 2 : index
    %210 = memref.load %arg4[%c11_372, %c2_373] : memref<16x16xf32, #tpu.memory_space<smem>>
    %c11_374 = arith.constant 11 : index
    %c3_375 = arith.constant 3 : index
    %211 = memref.load %arg4[%c11_374, %c3_375] : memref<16x16xf32, #tpu.memory_space<smem>>
    %c11_376 = arith.constant 11 : index
    %c4_377 = arith.constant 4 : index
    %212 = memref.load %arg4[%c11_376, %c4_377] : memref<16x16xf32, #tpu.memory_space<smem>>
    %c11_378 = arith.constant 11 : index
    %c5_379 = arith.constant 5 : index
    %213 = memref.load %arg4[%c11_378, %c5_379] : memref<16x16xf32, #tpu.memory_space<smem>>
    %c11_380 = arith.constant 11 : index
    %c6_381 = arith.constant 6 : index
    %214 = memref.load %arg4[%c11_380, %c6_381] : memref<16x16xf32, #tpu.memory_space<smem>>
    %c11_382 = arith.constant 11 : index
    %c7_383 = arith.constant 7 : index
    %215 = memref.load %arg4[%c11_382, %c7_383] : memref<16x16xf32, #tpu.memory_space<smem>>
    %c11_384 = arith.constant 11 : index
    %c8_385 = arith.constant 8 : index
    %216 = memref.load %arg4[%c11_384, %c8_385] : memref<16x16xf32, #tpu.memory_space<smem>>
    %c11_386 = arith.constant 11 : index
    %c9_387 = arith.constant 9 : index
    %217 = memref.load %arg4[%c11_386, %c9_387] : memref<16x16xf32, #tpu.memory_space<smem>>
    %c11_388 = arith.constant 11 : index
    %c10_389 = arith.constant 10 : index
    %218 = memref.load %arg4[%c11_388, %c10_389] : memref<16x16xf32, #tpu.memory_space<smem>>
    %c11_390 = arith.constant 11 : index
    %c11_391 = arith.constant 11 : index
    %219 = memref.load %arg4[%c11_390, %c11_391] : memref<16x16xf32, #tpu.memory_space<smem>>
    %c11_392 = arith.constant 11 : index
    %c12_393 = arith.constant 12 : index
    %220 = memref.load %arg4[%c11_392, %c12_393] : memref<16x16xf32, #tpu.memory_space<smem>>
    %c11_394 = arith.constant 11 : index
    %c13_395 = arith.constant 13 : index
    %221 = memref.load %arg4[%c11_394, %c13_395] : memref<16x16xf32, #tpu.memory_space<smem>>
    %c11_396 = arith.constant 11 : index
    %c14_397 = arith.constant 14 : index
    %222 = memref.load %arg4[%c11_396, %c14_397] : memref<16x16xf32, #tpu.memory_space<smem>>
    %c11_398 = arith.constant 11 : index
    %c15_399 = arith.constant 15 : index
    %223 = memref.load %arg4[%c11_398, %c15_399] : memref<16x16xf32, #tpu.memory_space<smem>>
    %c12_400 = arith.constant 12 : index
    %c0_401 = arith.constant 0 : index
    %224 = memref.load %arg4[%c12_400, %c0_401] : memref<16x16xf32, #tpu.memory_space<smem>>
    %c12_402 = arith.constant 12 : index
    %c1_403 = arith.constant 1 : index
    %225 = memref.load %arg4[%c12_402, %c1_403] : memref<16x16xf32, #tpu.memory_space<smem>>
    %c12_404 = arith.constant 12 : index
    %c2_405 = arith.constant 2 : index
    %226 = memref.load %arg4[%c12_404, %c2_405] : memref<16x16xf32, #tpu.memory_space<smem>>
    %c12_406 = arith.constant 12 : index
    %c3_407 = arith.constant 3 : index
    %227 = memref.load %arg4[%c12_406, %c3_407] : memref<16x16xf32, #tpu.memory_space<smem>>
    %c12_408 = arith.constant 12 : index
    %c4_409 = arith.constant 4 : index
    %228 = memref.load %arg4[%c12_408, %c4_409] : memref<16x16xf32, #tpu.memory_space<smem>>
    %c12_410 = arith.constant 12 : index
    %c5_411 = arith.constant 5 : index
    %229 = memref.load %arg4[%c12_410, %c5_411] : memref<16x16xf32, #tpu.memory_space<smem>>
    %c12_412 = arith.constant 12 : index
    %c6_413 = arith.constant 6 : index
    %230 = memref.load %arg4[%c12_412, %c6_413] : memref<16x16xf32, #tpu.memory_space<smem>>
    %c12_414 = arith.constant 12 : index
    %c7_415 = arith.constant 7 : index
    %231 = memref.load %arg4[%c12_414, %c7_415] : memref<16x16xf32, #tpu.memory_space<smem>>
    %c12_416 = arith.constant 12 : index
    %c8_417 = arith.constant 8 : index
    %232 = memref.load %arg4[%c12_416, %c8_417] : memref<16x16xf32, #tpu.memory_space<smem>>
    %c12_418 = arith.constant 12 : index
    %c9_419 = arith.constant 9 : index
    %233 = memref.load %arg4[%c12_418, %c9_419] : memref<16x16xf32, #tpu.memory_space<smem>>
    %c12_420 = arith.constant 12 : index
    %c10_421 = arith.constant 10 : index
    %234 = memref.load %arg4[%c12_420, %c10_421] : memref<16x16xf32, #tpu.memory_space<smem>>
    %c12_422 = arith.constant 12 : index
    %c11_423 = arith.constant 11 : index
    %235 = memref.load %arg4[%c12_422, %c11_423] : memref<16x16xf32, #tpu.memory_space<smem>>
    %c12_424 = arith.constant 12 : index
    %c12_425 = arith.constant 12 : index
    %236 = memref.load %arg4[%c12_424, %c12_425] : memref<16x16xf32, #tpu.memory_space<smem>>
    %c12_426 = arith.constant 12 : index
    %c13_427 = arith.constant 13 : index
    %237 = memref.load %arg4[%c12_426, %c13_427] : memref<16x16xf32, #tpu.memory_space<smem>>
    %c12_428 = arith.constant 12 : index
    %c14_429 = arith.constant 14 : index
    %238 = memref.load %arg4[%c12_428, %c14_429] : memref<16x16xf32, #tpu.memory_space<smem>>
    %c12_430 = arith.constant 12 : index
    %c15_431 = arith.constant 15 : index
    %239 = memref.load %arg4[%c12_430, %c15_431] : memref<16x16xf32, #tpu.memory_space<smem>>
    %c13_432 = arith.constant 13 : index
    %c0_433 = arith.constant 0 : index
    %240 = memref.load %arg4[%c13_432, %c0_433] : memref<16x16xf32, #tpu.memory_space<smem>>
    %c13_434 = arith.constant 13 : index
    %c1_435 = arith.constant 1 : index
    %241 = memref.load %arg4[%c13_434, %c1_435] : memref<16x16xf32, #tpu.memory_space<smem>>
    %c13_436 = arith.constant 13 : index
    %c2_437 = arith.constant 2 : index
    %242 = memref.load %arg4[%c13_436, %c2_437] : memref<16x16xf32, #tpu.memory_space<smem>>
    %c13_438 = arith.constant 13 : index
    %c3_439 = arith.constant 3 : index
    %243 = memref.load %arg4[%c13_438, %c3_439] : memref<16x16xf32, #tpu.memory_space<smem>>
    %c13_440 = arith.constant 13 : index
    %c4_441 = arith.constant 4 : index
    %244 = memref.load %arg4[%c13_440, %c4_441] : memref<16x16xf32, #tpu.memory_space<smem>>
    %c13_442 = arith.constant 13 : index
    %c5_443 = arith.constant 5 : index
    %245 = memref.load %arg4[%c13_442, %c5_443] : memref<16x16xf32, #tpu.memory_space<smem>>
    %c13_444 = arith.constant 13 : index
    %c6_445 = arith.constant 6 : index
    %246 = memref.load %arg4[%c13_444, %c6_445] : memref<16x16xf32, #tpu.memory_space<smem>>
    %c13_446 = arith.constant 13 : index
    %c7_447 = arith.constant 7 : index
    %247 = memref.load %arg4[%c13_446, %c7_447] : memref<16x16xf32, #tpu.memory_space<smem>>
    %c13_448 = arith.constant 13 : index
    %c8_449 = arith.constant 8 : index
    %248 = memref.load %arg4[%c13_448, %c8_449] : memref<16x16xf32, #tpu.memory_space<smem>>
    %c13_450 = arith.constant 13 : index
    %c9_451 = arith.constant 9 : index
    %249 = memref.load %arg4[%c13_450, %c9_451] : memref<16x16xf32, #tpu.memory_space<smem>>
    %c13_452 = arith.constant 13 : index
    %c10_453 = arith.constant 10 : index
    %250 = memref.load %arg4[%c13_452, %c10_453] : memref<16x16xf32, #tpu.memory_space<smem>>
    %c13_454 = arith.constant 13 : index
    %c11_455 = arith.constant 11 : index
    %251 = memref.load %arg4[%c13_454, %c11_455] : memref<16x16xf32, #tpu.memory_space<smem>>
    %c13_456 = arith.constant 13 : index
    %c12_457 = arith.constant 12 : index
    %252 = memref.load %arg4[%c13_456, %c12_457] : memref<16x16xf32, #tpu.memory_space<smem>>
    %c13_458 = arith.constant 13 : index
    %c13_459 = arith.constant 13 : index
    %253 = memref.load %arg4[%c13_458, %c13_459] : memref<16x16xf32, #tpu.memory_space<smem>>
    %c13_460 = arith.constant 13 : index
    %c14_461 = arith.constant 14 : index
    %254 = memref.load %arg4[%c13_460, %c14_461] : memref<16x16xf32, #tpu.memory_space<smem>>
    %c13_462 = arith.constant 13 : index
    %c15_463 = arith.constant 15 : index
    %255 = memref.load %arg4[%c13_462, %c15_463] : memref<16x16xf32, #tpu.memory_space<smem>>
    %c14_464 = arith.constant 14 : index
    %c0_465 = arith.constant 0 : index
    %256 = memref.load %arg4[%c14_464, %c0_465] : memref<16x16xf32, #tpu.memory_space<smem>>
    %c14_466 = arith.constant 14 : index
    %c1_467 = arith.constant 1 : index
    %257 = memref.load %arg4[%c14_466, %c1_467] : memref<16x16xf32, #tpu.memory_space<smem>>
    %c14_468 = arith.constant 14 : index
    %c2_469 = arith.constant 2 : index
    %258 = memref.load %arg4[%c14_468, %c2_469] : memref<16x16xf32, #tpu.memory_space<smem>>
    %c14_470 = arith.constant 14 : index
    %c3_471 = arith.constant 3 : index
    %259 = memref.load %arg4[%c14_470, %c3_471] : memref<16x16xf32, #tpu.memory_space<smem>>
    %c14_472 = arith.constant 14 : index
    %c4_473 = arith.constant 4 : index
    %260 = memref.load %arg4[%c14_472, %c4_473] : memref<16x16xf32, #tpu.memory_space<smem>>
    %c14_474 = arith.constant 14 : index
    %c5_475 = arith.constant 5 : index
    %261 = memref.load %arg4[%c14_474, %c5_475] : memref<16x16xf32, #tpu.memory_space<smem>>
    %c14_476 = arith.constant 14 : index
    %c6_477 = arith.constant 6 : index
    %262 = memref.load %arg4[%c14_476, %c6_477] : memref<16x16xf32, #tpu.memory_space<smem>>
    %c14_478 = arith.constant 14 : index
    %c7_479 = arith.constant 7 : index
    %263 = memref.load %arg4[%c14_478, %c7_479] : memref<16x16xf32, #tpu.memory_space<smem>>
    %c14_480 = arith.constant 14 : index
    %c8_481 = arith.constant 8 : index
    %264 = memref.load %arg4[%c14_480, %c8_481] : memref<16x16xf32, #tpu.memory_space<smem>>
    %c14_482 = arith.constant 14 : index
    %c9_483 = arith.constant 9 : index
    %265 = memref.load %arg4[%c14_482, %c9_483] : memref<16x16xf32, #tpu.memory_space<smem>>
    %c14_484 = arith.constant 14 : index
    %c10_485 = arith.constant 10 : index
    %266 = memref.load %arg4[%c14_484, %c10_485] : memref<16x16xf32, #tpu.memory_space<smem>>
    %c14_486 = arith.constant 14 : index
    %c11_487 = arith.constant 11 : index
    %267 = memref.load %arg4[%c14_486, %c11_487] : memref<16x16xf32, #tpu.memory_space<smem>>
    %c14_488 = arith.constant 14 : index
    %c12_489 = arith.constant 12 : index
    %268 = memref.load %arg4[%c14_488, %c12_489] : memref<16x16xf32, #tpu.memory_space<smem>>
    %c14_490 = arith.constant 14 : index
    %c13_491 = arith.constant 13 : index
    %269 = memref.load %arg4[%c14_490, %c13_491] : memref<16x16xf32, #tpu.memory_space<smem>>
    %c14_492 = arith.constant 14 : index
    %c14_493 = arith.constant 14 : index
    %270 = memref.load %arg4[%c14_492, %c14_493] : memref<16x16xf32, #tpu.memory_space<smem>>
    %c14_494 = arith.constant 14 : index
    %c15_495 = arith.constant 15 : index
    %271 = memref.load %arg4[%c14_494, %c15_495] : memref<16x16xf32, #tpu.memory_space<smem>>
    %c15_496 = arith.constant 15 : index
    %c0_497 = arith.constant 0 : index
    %272 = memref.load %arg4[%c15_496, %c0_497] : memref<16x16xf32, #tpu.memory_space<smem>>
    %c15_498 = arith.constant 15 : index
    %c1_499 = arith.constant 1 : index
    %273 = memref.load %arg4[%c15_498, %c1_499] : memref<16x16xf32, #tpu.memory_space<smem>>
    %c15_500 = arith.constant 15 : index
    %c2_501 = arith.constant 2 : index
    %274 = memref.load %arg4[%c15_500, %c2_501] : memref<16x16xf32, #tpu.memory_space<smem>>
    %c15_502 = arith.constant 15 : index
    %c3_503 = arith.constant 3 : index
    %275 = memref.load %arg4[%c15_502, %c3_503] : memref<16x16xf32, #tpu.memory_space<smem>>
    %c15_504 = arith.constant 15 : index
    %c4_505 = arith.constant 4 : index
    %276 = memref.load %arg4[%c15_504, %c4_505] : memref<16x16xf32, #tpu.memory_space<smem>>
    %c15_506 = arith.constant 15 : index
    %c5_507 = arith.constant 5 : index
    %277 = memref.load %arg4[%c15_506, %c5_507] : memref<16x16xf32, #tpu.memory_space<smem>>
    %c15_508 = arith.constant 15 : index
    %c6_509 = arith.constant 6 : index
    %278 = memref.load %arg4[%c15_508, %c6_509] : memref<16x16xf32, #tpu.memory_space<smem>>
    %c15_510 = arith.constant 15 : index
    %c7_511 = arith.constant 7 : index
    %279 = memref.load %arg4[%c15_510, %c7_511] : memref<16x16xf32, #tpu.memory_space<smem>>
    %c15_512 = arith.constant 15 : index
    %c8_513 = arith.constant 8 : index
    %280 = memref.load %arg4[%c15_512, %c8_513] : memref<16x16xf32, #tpu.memory_space<smem>>
    %c15_514 = arith.constant 15 : index
    %c9_515 = arith.constant 9 : index
    %281 = memref.load %arg4[%c15_514, %c9_515] : memref<16x16xf32, #tpu.memory_space<smem>>
    %c15_516 = arith.constant 15 : index
    %c10_517 = arith.constant 10 : index
    %282 = memref.load %arg4[%c15_516, %c10_517] : memref<16x16xf32, #tpu.memory_space<smem>>
    %c15_518 = arith.constant 15 : index
    %c11_519 = arith.constant 11 : index
    %283 = memref.load %arg4[%c15_518, %c11_519] : memref<16x16xf32, #tpu.memory_space<smem>>
    %c15_520 = arith.constant 15 : index
    %c12_521 = arith.constant 12 : index
    %284 = memref.load %arg4[%c15_520, %c12_521] : memref<16x16xf32, #tpu.memory_space<smem>>
    %c15_522 = arith.constant 15 : index
    %c13_523 = arith.constant 13 : index
    %285 = memref.load %arg4[%c15_522, %c13_523] : memref<16x16xf32, #tpu.memory_space<smem>>
    %c15_524 = arith.constant 15 : index
    %c14_525 = arith.constant 14 : index
    %286 = memref.load %arg4[%c15_524, %c14_525] : memref<16x16xf32, #tpu.memory_space<smem>>
    %c15_526 = arith.constant 15 : index
    %c15_527 = arith.constant 15 : index
    %287 = memref.load %arg4[%c15_526, %c15_527] : memref<16x16xf32, #tpu.memory_space<smem>>
    %c0_528 = arith.constant 0 : index
    %288 = memref.load %arg5[%c0_528] : memref<16xf32, #tpu.memory_space<smem>>
    %c1_529 = arith.constant 1 : index
    %289 = memref.load %arg5[%c1_529] : memref<16xf32, #tpu.memory_space<smem>>
    %c2_530 = arith.constant 2 : index
    %290 = memref.load %arg5[%c2_530] : memref<16xf32, #tpu.memory_space<smem>>
    %c3_531 = arith.constant 3 : index
    %291 = memref.load %arg5[%c3_531] : memref<16xf32, #tpu.memory_space<smem>>
    %c4_532 = arith.constant 4 : index
    %292 = memref.load %arg5[%c4_532] : memref<16xf32, #tpu.memory_space<smem>>
    %c5_533 = arith.constant 5 : index
    %293 = memref.load %arg5[%c5_533] : memref<16xf32, #tpu.memory_space<smem>>
    %c6_534 = arith.constant 6 : index
    %294 = memref.load %arg5[%c6_534] : memref<16xf32, #tpu.memory_space<smem>>
    %c7_535 = arith.constant 7 : index
    %295 = memref.load %arg5[%c7_535] : memref<16xf32, #tpu.memory_space<smem>>
    %c8_536 = arith.constant 8 : index
    %296 = memref.load %arg5[%c8_536] : memref<16xf32, #tpu.memory_space<smem>>
    %c9_537 = arith.constant 9 : index
    %297 = memref.load %arg5[%c9_537] : memref<16xf32, #tpu.memory_space<smem>>
    %c10_538 = arith.constant 10 : index
    %298 = memref.load %arg5[%c10_538] : memref<16xf32, #tpu.memory_space<smem>>
    %c11_539 = arith.constant 11 : index
    %299 = memref.load %arg5[%c11_539] : memref<16xf32, #tpu.memory_space<smem>>
    %c12_540 = arith.constant 12 : index
    %300 = memref.load %arg5[%c12_540] : memref<16xf32, #tpu.memory_space<smem>>
    %c13_541 = arith.constant 13 : index
    %301 = memref.load %arg5[%c13_541] : memref<16xf32, #tpu.memory_space<smem>>
    %c14_542 = arith.constant 14 : index
    %302 = memref.load %arg5[%c14_542] : memref<16xf32, #tpu.memory_space<smem>>
    %c15_543 = arith.constant 15 : index
    %303 = memref.load %arg5[%c15_543] : memref<16xf32, #tpu.memory_space<smem>>
    %c0_544 = arith.constant 0 : index
    %304 = memref.load %arg6[%c0_544] : memref<16xf32, #tpu.memory_space<smem>>
    %c1_545 = arith.constant 1 : index
    %305 = memref.load %arg6[%c1_545] : memref<16xf32, #tpu.memory_space<smem>>
    %c2_546 = arith.constant 2 : index
    %306 = memref.load %arg6[%c2_546] : memref<16xf32, #tpu.memory_space<smem>>
    %c3_547 = arith.constant 3 : index
    %307 = memref.load %arg6[%c3_547] : memref<16xf32, #tpu.memory_space<smem>>
    %c4_548 = arith.constant 4 : index
    %308 = memref.load %arg6[%c4_548] : memref<16xf32, #tpu.memory_space<smem>>
    %c5_549 = arith.constant 5 : index
    %309 = memref.load %arg6[%c5_549] : memref<16xf32, #tpu.memory_space<smem>>
    %c6_550 = arith.constant 6 : index
    %310 = memref.load %arg6[%c6_550] : memref<16xf32, #tpu.memory_space<smem>>
    %c7_551 = arith.constant 7 : index
    %311 = memref.load %arg6[%c7_551] : memref<16xf32, #tpu.memory_space<smem>>
    %c8_552 = arith.constant 8 : index
    %312 = memref.load %arg6[%c8_552] : memref<16xf32, #tpu.memory_space<smem>>
    %c9_553 = arith.constant 9 : index
    %313 = memref.load %arg6[%c9_553] : memref<16xf32, #tpu.memory_space<smem>>
    %c10_554 = arith.constant 10 : index
    %314 = memref.load %arg6[%c10_554] : memref<16xf32, #tpu.memory_space<smem>>
    %c11_555 = arith.constant 11 : index
    %315 = memref.load %arg6[%c11_555] : memref<16xf32, #tpu.memory_space<smem>>
    %c12_556 = arith.constant 12 : index
    %316 = memref.load %arg6[%c12_556] : memref<16xf32, #tpu.memory_space<smem>>
    %c13_557 = arith.constant 13 : index
    %317 = memref.load %arg6[%c13_557] : memref<16xf32, #tpu.memory_space<smem>>
    %c14_558 = arith.constant 14 : index
    %318 = memref.load %arg6[%c14_558] : memref<16xf32, #tpu.memory_space<smem>>
    %c15_559 = arith.constant 15 : index
    %319 = memref.load %arg6[%c15_559] : memref<16xf32, #tpu.memory_space<smem>>
    %c0_560 = arith.constant 0 : index
    %320 = memref.load %arg7[%c0_560] : memref<1xf32, #tpu.memory_space<smem>>
    %c0_i32 = arith.constant 0 : i32
    %c16_i32 = arith.constant 16 : i32
    %321 = arith.muli %c0_i32, %c16_i32 : i32
    %322 = tpu.assume_multiple %321, 16 : i32
    %323 = arith.index_cast %322 : i32 to index
    %c0_561 = arith.constant 0 : index
    %324 = vector.load %arg1[%323, %c0_561] : memref<16x128xf32, #tpu.memory_space<vmem>>, vector<16x128xf32>
    %325 = vector.broadcast %0 : f32 to vector<16x128xf32>
    %326 = arith.mulf %324, %325 : vector<16x128xf32>
    %327 = vector.broadcast %16 : f32 to vector<16x128xf32>
    %328 = arith.addf %326, %327 : vector<16x128xf32>
    %cst = arith.constant 0.000000e+00 : f32
    %329 = vector.broadcast %cst : f32 to vector<16x128xf32>
    %330 = arith.maximumf %328, %329 : vector<16x128xf32>
    %331 = vector.broadcast %1 : f32 to vector<16x128xf32>
    %332 = arith.mulf %324, %331 : vector<16x128xf32>
    %333 = vector.broadcast %17 : f32 to vector<16x128xf32>
    %334 = arith.addf %332, %333 : vector<16x128xf32>
    %cst_562 = arith.constant 0.000000e+00 : f32
    %335 = vector.broadcast %cst_562 : f32 to vector<16x128xf32>
    %336 = arith.maximumf %334, %335 : vector<16x128xf32>
    %337 = vector.broadcast %2 : f32 to vector<16x128xf32>
    %338 = arith.mulf %324, %337 : vector<16x128xf32>
    %339 = vector.broadcast %18 : f32 to vector<16x128xf32>
    %340 = arith.addf %338, %339 : vector<16x128xf32>
    %cst_563 = arith.constant 0.000000e+00 : f32
    %341 = vector.broadcast %cst_563 : f32 to vector<16x128xf32>
    %342 = arith.maximumf %340, %341 : vector<16x128xf32>
    %343 = vector.broadcast %3 : f32 to vector<16x128xf32>
    %344 = arith.mulf %324, %343 : vector<16x128xf32>
    %345 = vector.broadcast %19 : f32 to vector<16x128xf32>
    %346 = arith.addf %344, %345 : vector<16x128xf32>
    %cst_564 = arith.constant 0.000000e+00 : f32
    %347 = vector.broadcast %cst_564 : f32 to vector<16x128xf32>
    %348 = arith.maximumf %346, %347 : vector<16x128xf32>
    %349 = vector.broadcast %4 : f32 to vector<16x128xf32>
    %350 = arith.mulf %324, %349 : vector<16x128xf32>
    %351 = vector.broadcast %20 : f32 to vector<16x128xf32>
    %352 = arith.addf %350, %351 : vector<16x128xf32>
    %cst_565 = arith.constant 0.000000e+00 : f32
    %353 = vector.broadcast %cst_565 : f32 to vector<16x128xf32>
    %354 = arith.maximumf %352, %353 : vector<16x128xf32>
    %355 = vector.broadcast %5 : f32 to vector<16x128xf32>
    %356 = arith.mulf %324, %355 : vector<16x128xf32>
    %357 = vector.broadcast %21 : f32 to vector<16x128xf32>
    %358 = arith.addf %356, %357 : vector<16x128xf32>
    %cst_566 = arith.constant 0.000000e+00 : f32
    %359 = vector.broadcast %cst_566 : f32 to vector<16x128xf32>
    %360 = arith.maximumf %358, %359 : vector<16x128xf32>
    %361 = vector.broadcast %6 : f32 to vector<16x128xf32>
    %362 = arith.mulf %324, %361 : vector<16x128xf32>
    %363 = vector.broadcast %22 : f32 to vector<16x128xf32>
    %364 = arith.addf %362, %363 : vector<16x128xf32>
    %cst_567 = arith.constant 0.000000e+00 : f32
    %365 = vector.broadcast %cst_567 : f32 to vector<16x128xf32>
    %366 = arith.maximumf %364, %365 : vector<16x128xf32>
    %367 = vector.broadcast %7 : f32 to vector<16x128xf32>
    %368 = arith.mulf %324, %367 : vector<16x128xf32>
    %369 = vector.broadcast %23 : f32 to vector<16x128xf32>
    %370 = arith.addf %368, %369 : vector<16x128xf32>
    %cst_568 = arith.constant 0.000000e+00 : f32
    %371 = vector.broadcast %cst_568 : f32 to vector<16x128xf32>
    %372 = arith.maximumf %370, %371 : vector<16x128xf32>
    %373 = vector.broadcast %8 : f32 to vector<16x128xf32>
    %374 = arith.mulf %324, %373 : vector<16x128xf32>
    %375 = vector.broadcast %24 : f32 to vector<16x128xf32>
    %376 = arith.addf %374, %375 : vector<16x128xf32>
    %cst_569 = arith.constant 0.000000e+00 : f32
    %377 = vector.broadcast %cst_569 : f32 to vector<16x128xf32>
    %378 = arith.maximumf %376, %377 : vector<16x128xf32>
    %379 = vector.broadcast %9 : f32 to vector<16x128xf32>
    %380 = arith.mulf %324, %379 : vector<16x128xf32>
    %381 = vector.broadcast %25 : f32 to vector<16x128xf32>
    %382 = arith.addf %380, %381 : vector<16x128xf32>
    %cst_570 = arith.constant 0.000000e+00 : f32
    %383 = vector.broadcast %cst_570 : f32 to vector<16x128xf32>
    %384 = arith.maximumf %382, %383 : vector<16x128xf32>
    %385 = vector.broadcast %10 : f32 to vector<16x128xf32>
    %386 = arith.mulf %324, %385 : vector<16x128xf32>
    %387 = vector.broadcast %26 : f32 to vector<16x128xf32>
    %388 = arith.addf %386, %387 : vector<16x128xf32>
    %cst_571 = arith.constant 0.000000e+00 : f32
    %389 = vector.broadcast %cst_571 : f32 to vector<16x128xf32>
    %390 = arith.maximumf %388, %389 : vector<16x128xf32>
    %391 = vector.broadcast %11 : f32 to vector<16x128xf32>
    %392 = arith.mulf %324, %391 : vector<16x128xf32>
    %393 = vector.broadcast %27 : f32 to vector<16x128xf32>
    %394 = arith.addf %392, %393 : vector<16x128xf32>
    %cst_572 = arith.constant 0.000000e+00 : f32
    %395 = vector.broadcast %cst_572 : f32 to vector<16x128xf32>
    %396 = arith.maximumf %394, %395 : vector<16x128xf32>
    %397 = vector.broadcast %12 : f32 to vector<16x128xf32>
    %398 = arith.mulf %324, %397 : vector<16x128xf32>
    %399 = vector.broadcast %28 : f32 to vector<16x128xf32>
    %400 = arith.addf %398, %399 : vector<16x128xf32>
    %cst_573 = arith.constant 0.000000e+00 : f32
    %401 = vector.broadcast %cst_573 : f32 to vector<16x128xf32>
    %402 = arith.maximumf %400, %401 : vector<16x128xf32>
    %403 = vector.broadcast %13 : f32 to vector<16x128xf32>
    %404 = arith.mulf %324, %403 : vector<16x128xf32>
    %405 = vector.broadcast %29 : f32 to vector<16x128xf32>
    %406 = arith.addf %404, %405 : vector<16x128xf32>
    %cst_574 = arith.constant 0.000000e+00 : f32
    %407 = vector.broadcast %cst_574 : f32 to vector<16x128xf32>
    %408 = arith.maximumf %406, %407 : vector<16x128xf32>
    %409 = vector.broadcast %14 : f32 to vector<16x128xf32>
    %410 = arith.mulf %324, %409 : vector<16x128xf32>
    %411 = vector.broadcast %30 : f32 to vector<16x128xf32>
    %412 = arith.addf %410, %411 : vector<16x128xf32>
    %cst_575 = arith.constant 0.000000e+00 : f32
    %413 = vector.broadcast %cst_575 : f32 to vector<16x128xf32>
    %414 = arith.maximumf %412, %413 : vector<16x128xf32>
    %415 = vector.broadcast %15 : f32 to vector<16x128xf32>
    %416 = arith.mulf %324, %415 : vector<16x128xf32>
    %417 = vector.broadcast %31 : f32 to vector<16x128xf32>
    %418 = arith.addf %416, %417 : vector<16x128xf32>
    %cst_576 = arith.constant 0.000000e+00 : f32
    %419 = vector.broadcast %cst_576 : f32 to vector<16x128xf32>
    %420 = arith.maximumf %418, %419 : vector<16x128xf32>
    %421 = vector.broadcast %32 : f32 to vector<16x128xf32>
    %422 = arith.mulf %330, %421 : vector<16x128xf32>
    %423 = vector.broadcast %48 : f32 to vector<16x128xf32>
    %424 = arith.mulf %336, %423 : vector<16x128xf32>
    %425 = arith.addf %422, %424 : vector<16x128xf32>
    %426 = vector.broadcast %64 : f32 to vector<16x128xf32>
    %427 = arith.mulf %342, %426 : vector<16x128xf32>
    %428 = vector.broadcast %80 : f32 to vector<16x128xf32>
    %429 = arith.mulf %348, %428 : vector<16x128xf32>
    %430 = arith.addf %427, %429 : vector<16x128xf32>
    %431 = arith.addf %425, %430 : vector<16x128xf32>
    %432 = vector.broadcast %96 : f32 to vector<16x128xf32>
    %433 = arith.mulf %354, %432 : vector<16x128xf32>
    %434 = vector.broadcast %112 : f32 to vector<16x128xf32>
    %435 = arith.mulf %360, %434 : vector<16x128xf32>
    %436 = arith.addf %433, %435 : vector<16x128xf32>
    %437 = vector.broadcast %128 : f32 to vector<16x128xf32>
    %438 = arith.mulf %366, %437 : vector<16x128xf32>
    %439 = vector.broadcast %144 : f32 to vector<16x128xf32>
    %440 = arith.mulf %372, %439 : vector<16x128xf32>
    %441 = arith.addf %438, %440 : vector<16x128xf32>
    %442 = arith.addf %436, %441 : vector<16x128xf32>
    %443 = arith.addf %431, %442 : vector<16x128xf32>
    %444 = vector.broadcast %160 : f32 to vector<16x128xf32>
    %445 = arith.mulf %378, %444 : vector<16x128xf32>
    %446 = vector.broadcast %176 : f32 to vector<16x128xf32>
    %447 = arith.mulf %384, %446 : vector<16x128xf32>
    %448 = arith.addf %445, %447 : vector<16x128xf32>
    %449 = vector.broadcast %192 : f32 to vector<16x128xf32>
    %450 = arith.mulf %390, %449 : vector<16x128xf32>
    %451 = vector.broadcast %208 : f32 to vector<16x128xf32>
    %452 = arith.mulf %396, %451 : vector<16x128xf32>
    %453 = arith.addf %450, %452 : vector<16x128xf32>
    %454 = arith.addf %448, %453 : vector<16x128xf32>
    %455 = vector.broadcast %224 : f32 to vector<16x128xf32>
    %456 = arith.mulf %402, %455 : vector<16x128xf32>
    %457 = vector.broadcast %240 : f32 to vector<16x128xf32>
    %458 = arith.mulf %408, %457 : vector<16x128xf32>
    %459 = arith.addf %456, %458 : vector<16x128xf32>
    %460 = vector.broadcast %256 : f32 to vector<16x128xf32>
    %461 = arith.mulf %414, %460 : vector<16x128xf32>
    %462 = vector.broadcast %272 : f32 to vector<16x128xf32>
    %463 = arith.mulf %420, %462 : vector<16x128xf32>
    %464 = arith.addf %461, %463 : vector<16x128xf32>
    %465 = arith.addf %459, %464 : vector<16x128xf32>
    %466 = arith.addf %454, %465 : vector<16x128xf32>
    %467 = arith.addf %443, %466 : vector<16x128xf32>
    %468 = vector.broadcast %288 : f32 to vector<16x128xf32>
    %469 = arith.addf %467, %468 : vector<16x128xf32>
    %cst_577 = arith.constant 0.000000e+00 : f32
    %470 = vector.broadcast %cst_577 : f32 to vector<16x128xf32>
    %471 = arith.maximumf %469, %470 : vector<16x128xf32>
    %472 = vector.broadcast %304 : f32 to vector<16x128xf32>
    %473 = arith.mulf %471, %472 : vector<16x128xf32>
    %474 = vector.broadcast %33 : f32 to vector<16x128xf32>
    %475 = arith.mulf %330, %474 : vector<16x128xf32>
    %476 = vector.broadcast %49 : f32 to vector<16x128xf32>
    %477 = arith.mulf %336, %476 : vector<16x128xf32>
    %478 = arith.addf %475, %477 : vector<16x128xf32>
    %479 = vector.broadcast %65 : f32 to vector<16x128xf32>
    %480 = arith.mulf %342, %479 : vector<16x128xf32>
    %481 = vector.broadcast %81 : f32 to vector<16x128xf32>
    %482 = arith.mulf %348, %481 : vector<16x128xf32>
    %483 = arith.addf %480, %482 : vector<16x128xf32>
    %484 = arith.addf %478, %483 : vector<16x128xf32>
    %485 = vector.broadcast %97 : f32 to vector<16x128xf32>
    %486 = arith.mulf %354, %485 : vector<16x128xf32>
    %487 = vector.broadcast %113 : f32 to vector<16x128xf32>
    %488 = arith.mulf %360, %487 : vector<16x128xf32>
    %489 = arith.addf %486, %488 : vector<16x128xf32>
    %490 = vector.broadcast %129 : f32 to vector<16x128xf32>
    %491 = arith.mulf %366, %490 : vector<16x128xf32>
    %492 = vector.broadcast %145 : f32 to vector<16x128xf32>
    %493 = arith.mulf %372, %492 : vector<16x128xf32>
    %494 = arith.addf %491, %493 : vector<16x128xf32>
    %495 = arith.addf %489, %494 : vector<16x128xf32>
    %496 = arith.addf %484, %495 : vector<16x128xf32>
    %497 = vector.broadcast %161 : f32 to vector<16x128xf32>
    %498 = arith.mulf %378, %497 : vector<16x128xf32>
    %499 = vector.broadcast %177 : f32 to vector<16x128xf32>
    %500 = arith.mulf %384, %499 : vector<16x128xf32>
    %501 = arith.addf %498, %500 : vector<16x128xf32>
    %502 = vector.broadcast %193 : f32 to vector<16x128xf32>
    %503 = arith.mulf %390, %502 : vector<16x128xf32>
    %504 = vector.broadcast %209 : f32 to vector<16x128xf32>
    %505 = arith.mulf %396, %504 : vector<16x128xf32>
    %506 = arith.addf %503, %505 : vector<16x128xf32>
    %507 = arith.addf %501, %506 : vector<16x128xf32>
    %508 = vector.broadcast %225 : f32 to vector<16x128xf32>
    %509 = arith.mulf %402, %508 : vector<16x128xf32>
    %510 = vector.broadcast %241 : f32 to vector<16x128xf32>
    %511 = arith.mulf %408, %510 : vector<16x128xf32>
    %512 = arith.addf %509, %511 : vector<16x128xf32>
    %513 = vector.broadcast %257 : f32 to vector<16x128xf32>
    %514 = arith.mulf %414, %513 : vector<16x128xf32>
    %515 = vector.broadcast %273 : f32 to vector<16x128xf32>
    %516 = arith.mulf %420, %515 : vector<16x128xf32>
    %517 = arith.addf %514, %516 : vector<16x128xf32>
    %518 = arith.addf %512, %517 : vector<16x128xf32>
    %519 = arith.addf %507, %518 : vector<16x128xf32>
    %520 = arith.addf %496, %519 : vector<16x128xf32>
    %521 = vector.broadcast %289 : f32 to vector<16x128xf32>
    %522 = arith.addf %520, %521 : vector<16x128xf32>
    %cst_578 = arith.constant 0.000000e+00 : f32
    %523 = vector.broadcast %cst_578 : f32 to vector<16x128xf32>
    %524 = arith.maximumf %522, %523 : vector<16x128xf32>
    %525 = vector.broadcast %305 : f32 to vector<16x128xf32>
    %526 = arith.mulf %524, %525 : vector<16x128xf32>
    %527 = arith.addf %473, %526 : vector<16x128xf32>
    %528 = vector.broadcast %34 : f32 to vector<16x128xf32>
    %529 = arith.mulf %330, %528 : vector<16x128xf32>
    %530 = vector.broadcast %50 : f32 to vector<16x128xf32>
    %531 = arith.mulf %336, %530 : vector<16x128xf32>
    %532 = arith.addf %529, %531 : vector<16x128xf32>
    %533 = vector.broadcast %66 : f32 to vector<16x128xf32>
    %534 = arith.mulf %342, %533 : vector<16x128xf32>
    %535 = vector.broadcast %82 : f32 to vector<16x128xf32>
    %536 = arith.mulf %348, %535 : vector<16x128xf32>
    %537 = arith.addf %534, %536 : vector<16x128xf32>
    %538 = arith.addf %532, %537 : vector<16x128xf32>
    %539 = vector.broadcast %98 : f32 to vector<16x128xf32>
    %540 = arith.mulf %354, %539 : vector<16x128xf32>
    %541 = vector.broadcast %114 : f32 to vector<16x128xf32>
    %542 = arith.mulf %360, %541 : vector<16x128xf32>
    %543 = arith.addf %540, %542 : vector<16x128xf32>
    %544 = vector.broadcast %130 : f32 to vector<16x128xf32>
    %545 = arith.mulf %366, %544 : vector<16x128xf32>
    %546 = vector.broadcast %146 : f32 to vector<16x128xf32>
    %547 = arith.mulf %372, %546 : vector<16x128xf32>
    %548 = arith.addf %545, %547 : vector<16x128xf32>
    %549 = arith.addf %543, %548 : vector<16x128xf32>
    %550 = arith.addf %538, %549 : vector<16x128xf32>
    %551 = vector.broadcast %162 : f32 to vector<16x128xf32>
    %552 = arith.mulf %378, %551 : vector<16x128xf32>
    %553 = vector.broadcast %178 : f32 to vector<16x128xf32>
    %554 = arith.mulf %384, %553 : vector<16x128xf32>
    %555 = arith.addf %552, %554 : vector<16x128xf32>
    %556 = vector.broadcast %194 : f32 to vector<16x128xf32>
    %557 = arith.mulf %390, %556 : vector<16x128xf32>
    %558 = vector.broadcast %210 : f32 to vector<16x128xf32>
    %559 = arith.mulf %396, %558 : vector<16x128xf32>
    %560 = arith.addf %557, %559 : vector<16x128xf32>
    %561 = arith.addf %555, %560 : vector<16x128xf32>
    %562 = vector.broadcast %226 : f32 to vector<16x128xf32>
    %563 = arith.mulf %402, %562 : vector<16x128xf32>
    %564 = vector.broadcast %242 : f32 to vector<16x128xf32>
    %565 = arith.mulf %408, %564 : vector<16x128xf32>
    %566 = arith.addf %563, %565 : vector<16x128xf32>
    %567 = vector.broadcast %258 : f32 to vector<16x128xf32>
    %568 = arith.mulf %414, %567 : vector<16x128xf32>
    %569 = vector.broadcast %274 : f32 to vector<16x128xf32>
    %570 = arith.mulf %420, %569 : vector<16x128xf32>
    %571 = arith.addf %568, %570 : vector<16x128xf32>
    %572 = arith.addf %566, %571 : vector<16x128xf32>
    %573 = arith.addf %561, %572 : vector<16x128xf32>
    %574 = arith.addf %550, %573 : vector<16x128xf32>
    %575 = vector.broadcast %290 : f32 to vector<16x128xf32>
    %576 = arith.addf %574, %575 : vector<16x128xf32>
    %cst_579 = arith.constant 0.000000e+00 : f32
    %577 = vector.broadcast %cst_579 : f32 to vector<16x128xf32>
    %578 = arith.maximumf %576, %577 : vector<16x128xf32>
    %579 = vector.broadcast %306 : f32 to vector<16x128xf32>
    %580 = arith.mulf %578, %579 : vector<16x128xf32>
    %581 = arith.addf %527, %580 : vector<16x128xf32>
    %582 = vector.broadcast %35 : f32 to vector<16x128xf32>
    %583 = arith.mulf %330, %582 : vector<16x128xf32>
    %584 = vector.broadcast %51 : f32 to vector<16x128xf32>
    %585 = arith.mulf %336, %584 : vector<16x128xf32>
    %586 = arith.addf %583, %585 : vector<16x128xf32>
    %587 = vector.broadcast %67 : f32 to vector<16x128xf32>
    %588 = arith.mulf %342, %587 : vector<16x128xf32>
    %589 = vector.broadcast %83 : f32 to vector<16x128xf32>
    %590 = arith.mulf %348, %589 : vector<16x128xf32>
    %591 = arith.addf %588, %590 : vector<16x128xf32>
    %592 = arith.addf %586, %591 : vector<16x128xf32>
    %593 = vector.broadcast %99 : f32 to vector<16x128xf32>
    %594 = arith.mulf %354, %593 : vector<16x128xf32>
    %595 = vector.broadcast %115 : f32 to vector<16x128xf32>
    %596 = arith.mulf %360, %595 : vector<16x128xf32>
    %597 = arith.addf %594, %596 : vector<16x128xf32>
    %598 = vector.broadcast %131 : f32 to vector<16x128xf32>
    %599 = arith.mulf %366, %598 : vector<16x128xf32>
    %600 = vector.broadcast %147 : f32 to vector<16x128xf32>
    %601 = arith.mulf %372, %600 : vector<16x128xf32>
    %602 = arith.addf %599, %601 : vector<16x128xf32>
    %603 = arith.addf %597, %602 : vector<16x128xf32>
    %604 = arith.addf %592, %603 : vector<16x128xf32>
    %605 = vector.broadcast %163 : f32 to vector<16x128xf32>
    %606 = arith.mulf %378, %605 : vector<16x128xf32>
    %607 = vector.broadcast %179 : f32 to vector<16x128xf32>
    %608 = arith.mulf %384, %607 : vector<16x128xf32>
    %609 = arith.addf %606, %608 : vector<16x128xf32>
    %610 = vector.broadcast %195 : f32 to vector<16x128xf32>
    %611 = arith.mulf %390, %610 : vector<16x128xf32>
    %612 = vector.broadcast %211 : f32 to vector<16x128xf32>
    %613 = arith.mulf %396, %612 : vector<16x128xf32>
    %614 = arith.addf %611, %613 : vector<16x128xf32>
    %615 = arith.addf %609, %614 : vector<16x128xf32>
    %616 = vector.broadcast %227 : f32 to vector<16x128xf32>
    %617 = arith.mulf %402, %616 : vector<16x128xf32>
    %618 = vector.broadcast %243 : f32 to vector<16x128xf32>
    %619 = arith.mulf %408, %618 : vector<16x128xf32>
    %620 = arith.addf %617, %619 : vector<16x128xf32>
    %621 = vector.broadcast %259 : f32 to vector<16x128xf32>
    %622 = arith.mulf %414, %621 : vector<16x128xf32>
    %623 = vector.broadcast %275 : f32 to vector<16x128xf32>
    %624 = arith.mulf %420, %623 : vector<16x128xf32>
    %625 = arith.addf %622, %624 : vector<16x128xf32>
    %626 = arith.addf %620, %625 : vector<16x128xf32>
    %627 = arith.addf %615, %626 : vector<16x128xf32>
    %628 = arith.addf %604, %627 : vector<16x128xf32>
    %629 = vector.broadcast %291 : f32 to vector<16x128xf32>
    %630 = arith.addf %628, %629 : vector<16x128xf32>
    %cst_580 = arith.constant 0.000000e+00 : f32
    %631 = vector.broadcast %cst_580 : f32 to vector<16x128xf32>
    %632 = arith.maximumf %630, %631 : vector<16x128xf32>
    %633 = vector.broadcast %307 : f32 to vector<16x128xf32>
    %634 = arith.mulf %632, %633 : vector<16x128xf32>
    %635 = arith.addf %581, %634 : vector<16x128xf32>
    %636 = vector.broadcast %36 : f32 to vector<16x128xf32>
    %637 = arith.mulf %330, %636 : vector<16x128xf32>
    %638 = vector.broadcast %52 : f32 to vector<16x128xf32>
    %639 = arith.mulf %336, %638 : vector<16x128xf32>
    %640 = arith.addf %637, %639 : vector<16x128xf32>
    %641 = vector.broadcast %68 : f32 to vector<16x128xf32>
    %642 = arith.mulf %342, %641 : vector<16x128xf32>
    %643 = vector.broadcast %84 : f32 to vector<16x128xf32>
    %644 = arith.mulf %348, %643 : vector<16x128xf32>
    %645 = arith.addf %642, %644 : vector<16x128xf32>
    %646 = arith.addf %640, %645 : vector<16x128xf32>
    %647 = vector.broadcast %100 : f32 to vector<16x128xf32>
    %648 = arith.mulf %354, %647 : vector<16x128xf32>
    %649 = vector.broadcast %116 : f32 to vector<16x128xf32>
    %650 = arith.mulf %360, %649 : vector<16x128xf32>
    %651 = arith.addf %648, %650 : vector<16x128xf32>
    %652 = vector.broadcast %132 : f32 to vector<16x128xf32>
    %653 = arith.mulf %366, %652 : vector<16x128xf32>
    %654 = vector.broadcast %148 : f32 to vector<16x128xf32>
    %655 = arith.mulf %372, %654 : vector<16x128xf32>
    %656 = arith.addf %653, %655 : vector<16x128xf32>
    %657 = arith.addf %651, %656 : vector<16x128xf32>
    %658 = arith.addf %646, %657 : vector<16x128xf32>
    %659 = vector.broadcast %164 : f32 to vector<16x128xf32>
    %660 = arith.mulf %378, %659 : vector<16x128xf32>
    %661 = vector.broadcast %180 : f32 to vector<16x128xf32>
    %662 = arith.mulf %384, %661 : vector<16x128xf32>
    %663 = arith.addf %660, %662 : vector<16x128xf32>
    %664 = vector.broadcast %196 : f32 to vector<16x128xf32>
    %665 = arith.mulf %390, %664 : vector<16x128xf32>
    %666 = vector.broadcast %212 : f32 to vector<16x128xf32>
    %667 = arith.mulf %396, %666 : vector<16x128xf32>
    %668 = arith.addf %665, %667 : vector<16x128xf32>
    %669 = arith.addf %663, %668 : vector<16x128xf32>
    %670 = vector.broadcast %228 : f32 to vector<16x128xf32>
    %671 = arith.mulf %402, %670 : vector<16x128xf32>
    %672 = vector.broadcast %244 : f32 to vector<16x128xf32>
    %673 = arith.mulf %408, %672 : vector<16x128xf32>
    %674 = arith.addf %671, %673 : vector<16x128xf32>
    %675 = vector.broadcast %260 : f32 to vector<16x128xf32>
    %676 = arith.mulf %414, %675 : vector<16x128xf32>
    %677 = vector.broadcast %276 : f32 to vector<16x128xf32>
    %678 = arith.mulf %420, %677 : vector<16x128xf32>
    %679 = arith.addf %676, %678 : vector<16x128xf32>
    %680 = arith.addf %674, %679 : vector<16x128xf32>
    %681 = arith.addf %669, %680 : vector<16x128xf32>
    %682 = arith.addf %658, %681 : vector<16x128xf32>
    %683 = vector.broadcast %292 : f32 to vector<16x128xf32>
    %684 = arith.addf %682, %683 : vector<16x128xf32>
    %cst_581 = arith.constant 0.000000e+00 : f32
    %685 = vector.broadcast %cst_581 : f32 to vector<16x128xf32>
    %686 = arith.maximumf %684, %685 : vector<16x128xf32>
    %687 = vector.broadcast %308 : f32 to vector<16x128xf32>
    %688 = arith.mulf %686, %687 : vector<16x128xf32>
    %689 = arith.addf %635, %688 : vector<16x128xf32>
    %690 = vector.broadcast %37 : f32 to vector<16x128xf32>
    %691 = arith.mulf %330, %690 : vector<16x128xf32>
    %692 = vector.broadcast %53 : f32 to vector<16x128xf32>
    %693 = arith.mulf %336, %692 : vector<16x128xf32>
    %694 = arith.addf %691, %693 : vector<16x128xf32>
    %695 = vector.broadcast %69 : f32 to vector<16x128xf32>
    %696 = arith.mulf %342, %695 : vector<16x128xf32>
    %697 = vector.broadcast %85 : f32 to vector<16x128xf32>
    %698 = arith.mulf %348, %697 : vector<16x128xf32>
    %699 = arith.addf %696, %698 : vector<16x128xf32>
    %700 = arith.addf %694, %699 : vector<16x128xf32>
    %701 = vector.broadcast %101 : f32 to vector<16x128xf32>
    %702 = arith.mulf %354, %701 : vector<16x128xf32>
    %703 = vector.broadcast %117 : f32 to vector<16x128xf32>
    %704 = arith.mulf %360, %703 : vector<16x128xf32>
    %705 = arith.addf %702, %704 : vector<16x128xf32>
    %706 = vector.broadcast %133 : f32 to vector<16x128xf32>
    %707 = arith.mulf %366, %706 : vector<16x128xf32>
    %708 = vector.broadcast %149 : f32 to vector<16x128xf32>
    %709 = arith.mulf %372, %708 : vector<16x128xf32>
    %710 = arith.addf %707, %709 : vector<16x128xf32>
    %711 = arith.addf %705, %710 : vector<16x128xf32>
    %712 = arith.addf %700, %711 : vector<16x128xf32>
    %713 = vector.broadcast %165 : f32 to vector<16x128xf32>
    %714 = arith.mulf %378, %713 : vector<16x128xf32>
    %715 = vector.broadcast %181 : f32 to vector<16x128xf32>
    %716 = arith.mulf %384, %715 : vector<16x128xf32>
    %717 = arith.addf %714, %716 : vector<16x128xf32>
    %718 = vector.broadcast %197 : f32 to vector<16x128xf32>
    %719 = arith.mulf %390, %718 : vector<16x128xf32>
    %720 = vector.broadcast %213 : f32 to vector<16x128xf32>
    %721 = arith.mulf %396, %720 : vector<16x128xf32>
    %722 = arith.addf %719, %721 : vector<16x128xf32>
    %723 = arith.addf %717, %722 : vector<16x128xf32>
    %724 = vector.broadcast %229 : f32 to vector<16x128xf32>
    %725 = arith.mulf %402, %724 : vector<16x128xf32>
    %726 = vector.broadcast %245 : f32 to vector<16x128xf32>
    %727 = arith.mulf %408, %726 : vector<16x128xf32>
    %728 = arith.addf %725, %727 : vector<16x128xf32>
    %729 = vector.broadcast %261 : f32 to vector<16x128xf32>
    %730 = arith.mulf %414, %729 : vector<16x128xf32>
    %731 = vector.broadcast %277 : f32 to vector<16x128xf32>
    %732 = arith.mulf %420, %731 : vector<16x128xf32>
    %733 = arith.addf %730, %732 : vector<16x128xf32>
    %734 = arith.addf %728, %733 : vector<16x128xf32>
    %735 = arith.addf %723, %734 : vector<16x128xf32>
    %736 = arith.addf %712, %735 : vector<16x128xf32>
    %737 = vector.broadcast %293 : f32 to vector<16x128xf32>
    %738 = arith.addf %736, %737 : vector<16x128xf32>
    %cst_582 = arith.constant 0.000000e+00 : f32
    %739 = vector.broadcast %cst_582 : f32 to vector<16x128xf32>
    %740 = arith.maximumf %738, %739 : vector<16x128xf32>
    %741 = vector.broadcast %309 : f32 to vector<16x128xf32>
    %742 = arith.mulf %740, %741 : vector<16x128xf32>
    %743 = arith.addf %689, %742 : vector<16x128xf32>
    %744 = vector.broadcast %38 : f32 to vector<16x128xf32>
    %745 = arith.mulf %330, %744 : vector<16x128xf32>
    %746 = vector.broadcast %54 : f32 to vector<16x128xf32>
    %747 = arith.mulf %336, %746 : vector<16x128xf32>
    %748 = arith.addf %745, %747 : vector<16x128xf32>
    %749 = vector.broadcast %70 : f32 to vector<16x128xf32>
    %750 = arith.mulf %342, %749 : vector<16x128xf32>
    %751 = vector.broadcast %86 : f32 to vector<16x128xf32>
    %752 = arith.mulf %348, %751 : vector<16x128xf32>
    %753 = arith.addf %750, %752 : vector<16x128xf32>
    %754 = arith.addf %748, %753 : vector<16x128xf32>
    %755 = vector.broadcast %102 : f32 to vector<16x128xf32>
    %756 = arith.mulf %354, %755 : vector<16x128xf32>
    %757 = vector.broadcast %118 : f32 to vector<16x128xf32>
    %758 = arith.mulf %360, %757 : vector<16x128xf32>
    %759 = arith.addf %756, %758 : vector<16x128xf32>
    %760 = vector.broadcast %134 : f32 to vector<16x128xf32>
    %761 = arith.mulf %366, %760 : vector<16x128xf32>
    %762 = vector.broadcast %150 : f32 to vector<16x128xf32>
    %763 = arith.mulf %372, %762 : vector<16x128xf32>
    %764 = arith.addf %761, %763 : vector<16x128xf32>
    %765 = arith.addf %759, %764 : vector<16x128xf32>
    %766 = arith.addf %754, %765 : vector<16x128xf32>
    %767 = vector.broadcast %166 : f32 to vector<16x128xf32>
    %768 = arith.mulf %378, %767 : vector<16x128xf32>
    %769 = vector.broadcast %182 : f32 to vector<16x128xf32>
    %770 = arith.mulf %384, %769 : vector<16x128xf32>
    %771 = arith.addf %768, %770 : vector<16x128xf32>
    %772 = vector.broadcast %198 : f32 to vector<16x128xf32>
    %773 = arith.mulf %390, %772 : vector<16x128xf32>
    %774 = vector.broadcast %214 : f32 to vector<16x128xf32>
    %775 = arith.mulf %396, %774 : vector<16x128xf32>
    %776 = arith.addf %773, %775 : vector<16x128xf32>
    %777 = arith.addf %771, %776 : vector<16x128xf32>
    %778 = vector.broadcast %230 : f32 to vector<16x128xf32>
    %779 = arith.mulf %402, %778 : vector<16x128xf32>
    %780 = vector.broadcast %246 : f32 to vector<16x128xf32>
    %781 = arith.mulf %408, %780 : vector<16x128xf32>
    %782 = arith.addf %779, %781 : vector<16x128xf32>
    %783 = vector.broadcast %262 : f32 to vector<16x128xf32>
    %784 = arith.mulf %414, %783 : vector<16x128xf32>
    %785 = vector.broadcast %278 : f32 to vector<16x128xf32>
    %786 = arith.mulf %420, %785 : vector<16x128xf32>
    %787 = arith.addf %784, %786 : vector<16x128xf32>
    %788 = arith.addf %782, %787 : vector<16x128xf32>
    %789 = arith.addf %777, %788 : vector<16x128xf32>
    %790 = arith.addf %766, %789 : vector<16x128xf32>
    %791 = vector.broadcast %294 : f32 to vector<16x128xf32>
    %792 = arith.addf %790, %791 : vector<16x128xf32>
    %cst_583 = arith.constant 0.000000e+00 : f32
    %793 = vector.broadcast %cst_583 : f32 to vector<16x128xf32>
    %794 = arith.maximumf %792, %793 : vector<16x128xf32>
    %795 = vector.broadcast %310 : f32 to vector<16x128xf32>
    %796 = arith.mulf %794, %795 : vector<16x128xf32>
    %797 = arith.addf %743, %796 : vector<16x128xf32>
    %798 = vector.broadcast %39 : f32 to vector<16x128xf32>
    %799 = arith.mulf %330, %798 : vector<16x128xf32>
    %800 = vector.broadcast %55 : f32 to vector<16x128xf32>
    %801 = arith.mulf %336, %800 : vector<16x128xf32>
    %802 = arith.addf %799, %801 : vector<16x128xf32>
    %803 = vector.broadcast %71 : f32 to vector<16x128xf32>
    %804 = arith.mulf %342, %803 : vector<16x128xf32>
    %805 = vector.broadcast %87 : f32 to vector<16x128xf32>
    %806 = arith.mulf %348, %805 : vector<16x128xf32>
    %807 = arith.addf %804, %806 : vector<16x128xf32>
    %808 = arith.addf %802, %807 : vector<16x128xf32>
    %809 = vector.broadcast %103 : f32 to vector<16x128xf32>
    %810 = arith.mulf %354, %809 : vector<16x128xf32>
    %811 = vector.broadcast %119 : f32 to vector<16x128xf32>
    %812 = arith.mulf %360, %811 : vector<16x128xf32>
    %813 = arith.addf %810, %812 : vector<16x128xf32>
    %814 = vector.broadcast %135 : f32 to vector<16x128xf32>
    %815 = arith.mulf %366, %814 : vector<16x128xf32>
    %816 = vector.broadcast %151 : f32 to vector<16x128xf32>
    %817 = arith.mulf %372, %816 : vector<16x128xf32>
    %818 = arith.addf %815, %817 : vector<16x128xf32>
    %819 = arith.addf %813, %818 : vector<16x128xf32>
    %820 = arith.addf %808, %819 : vector<16x128xf32>
    %821 = vector.broadcast %167 : f32 to vector<16x128xf32>
    %822 = arith.mulf %378, %821 : vector<16x128xf32>
    %823 = vector.broadcast %183 : f32 to vector<16x128xf32>
    %824 = arith.mulf %384, %823 : vector<16x128xf32>
    %825 = arith.addf %822, %824 : vector<16x128xf32>
    %826 = vector.broadcast %199 : f32 to vector<16x128xf32>
    %827 = arith.mulf %390, %826 : vector<16x128xf32>
    %828 = vector.broadcast %215 : f32 to vector<16x128xf32>
    %829 = arith.mulf %396, %828 : vector<16x128xf32>
    %830 = arith.addf %827, %829 : vector<16x128xf32>
    %831 = arith.addf %825, %830 : vector<16x128xf32>
    %832 = vector.broadcast %231 : f32 to vector<16x128xf32>
    %833 = arith.mulf %402, %832 : vector<16x128xf32>
    %834 = vector.broadcast %247 : f32 to vector<16x128xf32>
    %835 = arith.mulf %408, %834 : vector<16x128xf32>
    %836 = arith.addf %833, %835 : vector<16x128xf32>
    %837 = vector.broadcast %263 : f32 to vector<16x128xf32>
    %838 = arith.mulf %414, %837 : vector<16x128xf32>
    %839 = vector.broadcast %279 : f32 to vector<16x128xf32>
    %840 = arith.mulf %420, %839 : vector<16x128xf32>
    %841 = arith.addf %838, %840 : vector<16x128xf32>
    %842 = arith.addf %836, %841 : vector<16x128xf32>
    %843 = arith.addf %831, %842 : vector<16x128xf32>
    %844 = arith.addf %820, %843 : vector<16x128xf32>
    %845 = vector.broadcast %295 : f32 to vector<16x128xf32>
    %846 = arith.addf %844, %845 : vector<16x128xf32>
    %cst_584 = arith.constant 0.000000e+00 : f32
    %847 = vector.broadcast %cst_584 : f32 to vector<16x128xf32>
    %848 = arith.maximumf %846, %847 : vector<16x128xf32>
    %849 = vector.broadcast %311 : f32 to vector<16x128xf32>
    %850 = arith.mulf %848, %849 : vector<16x128xf32>
    %851 = arith.addf %797, %850 : vector<16x128xf32>
    %852 = vector.broadcast %40 : f32 to vector<16x128xf32>
    %853 = arith.mulf %330, %852 : vector<16x128xf32>
    %854 = vector.broadcast %56 : f32 to vector<16x128xf32>
    %855 = arith.mulf %336, %854 : vector<16x128xf32>
    %856 = arith.addf %853, %855 : vector<16x128xf32>
    %857 = vector.broadcast %72 : f32 to vector<16x128xf32>
    %858 = arith.mulf %342, %857 : vector<16x128xf32>
    %859 = vector.broadcast %88 : f32 to vector<16x128xf32>
    %860 = arith.mulf %348, %859 : vector<16x128xf32>
    %861 = arith.addf %858, %860 : vector<16x128xf32>
    %862 = arith.addf %856, %861 : vector<16x128xf32>
    %863 = vector.broadcast %104 : f32 to vector<16x128xf32>
    %864 = arith.mulf %354, %863 : vector<16x128xf32>
    %865 = vector.broadcast %120 : f32 to vector<16x128xf32>
    %866 = arith.mulf %360, %865 : vector<16x128xf32>
    %867 = arith.addf %864, %866 : vector<16x128xf32>
    %868 = vector.broadcast %136 : f32 to vector<16x128xf32>
    %869 = arith.mulf %366, %868 : vector<16x128xf32>
    %870 = vector.broadcast %152 : f32 to vector<16x128xf32>
    %871 = arith.mulf %372, %870 : vector<16x128xf32>
    %872 = arith.addf %869, %871 : vector<16x128xf32>
    %873 = arith.addf %867, %872 : vector<16x128xf32>
    %874 = arith.addf %862, %873 : vector<16x128xf32>
    %875 = vector.broadcast %168 : f32 to vector<16x128xf32>
    %876 = arith.mulf %378, %875 : vector<16x128xf32>
    %877 = vector.broadcast %184 : f32 to vector<16x128xf32>
    %878 = arith.mulf %384, %877 : vector<16x128xf32>
    %879 = arith.addf %876, %878 : vector<16x128xf32>
    %880 = vector.broadcast %200 : f32 to vector<16x128xf32>
    %881 = arith.mulf %390, %880 : vector<16x128xf32>
    %882 = vector.broadcast %216 : f32 to vector<16x128xf32>
    %883 = arith.mulf %396, %882 : vector<16x128xf32>
    %884 = arith.addf %881, %883 : vector<16x128xf32>
    %885 = arith.addf %879, %884 : vector<16x128xf32>
    %886 = vector.broadcast %232 : f32 to vector<16x128xf32>
    %887 = arith.mulf %402, %886 : vector<16x128xf32>
    %888 = vector.broadcast %248 : f32 to vector<16x128xf32>
    %889 = arith.mulf %408, %888 : vector<16x128xf32>
    %890 = arith.addf %887, %889 : vector<16x128xf32>
    %891 = vector.broadcast %264 : f32 to vector<16x128xf32>
    %892 = arith.mulf %414, %891 : vector<16x128xf32>
    %893 = vector.broadcast %280 : f32 to vector<16x128xf32>
    %894 = arith.mulf %420, %893 : vector<16x128xf32>
    %895 = arith.addf %892, %894 : vector<16x128xf32>
    %896 = arith.addf %890, %895 : vector<16x128xf32>
    %897 = arith.addf %885, %896 : vector<16x128xf32>
    %898 = arith.addf %874, %897 : vector<16x128xf32>
    %899 = vector.broadcast %296 : f32 to vector<16x128xf32>
    %900 = arith.addf %898, %899 : vector<16x128xf32>
    %cst_585 = arith.constant 0.000000e+00 : f32
    %901 = vector.broadcast %cst_585 : f32 to vector<16x128xf32>
    %902 = arith.maximumf %900, %901 : vector<16x128xf32>
    %903 = vector.broadcast %312 : f32 to vector<16x128xf32>
    %904 = arith.mulf %902, %903 : vector<16x128xf32>
    %905 = arith.addf %851, %904 : vector<16x128xf32>
    %906 = vector.broadcast %41 : f32 to vector<16x128xf32>
    %907 = arith.mulf %330, %906 : vector<16x128xf32>
    %908 = vector.broadcast %57 : f32 to vector<16x128xf32>
    %909 = arith.mulf %336, %908 : vector<16x128xf32>
    %910 = arith.addf %907, %909 : vector<16x128xf32>
    %911 = vector.broadcast %73 : f32 to vector<16x128xf32>
    %912 = arith.mulf %342, %911 : vector<16x128xf32>
    %913 = vector.broadcast %89 : f32 to vector<16x128xf32>
    %914 = arith.mulf %348, %913 : vector<16x128xf32>
    %915 = arith.addf %912, %914 : vector<16x128xf32>
    %916 = arith.addf %910, %915 : vector<16x128xf32>
    %917 = vector.broadcast %105 : f32 to vector<16x128xf32>
    %918 = arith.mulf %354, %917 : vector<16x128xf32>
    %919 = vector.broadcast %121 : f32 to vector<16x128xf32>
    %920 = arith.mulf %360, %919 : vector<16x128xf32>
    %921 = arith.addf %918, %920 : vector<16x128xf32>
    %922 = vector.broadcast %137 : f32 to vector<16x128xf32>
    %923 = arith.mulf %366, %922 : vector<16x128xf32>
    %924 = vector.broadcast %153 : f32 to vector<16x128xf32>
    %925 = arith.mulf %372, %924 : vector<16x128xf32>
    %926 = arith.addf %923, %925 : vector<16x128xf32>
    %927 = arith.addf %921, %926 : vector<16x128xf32>
    %928 = arith.addf %916, %927 : vector<16x128xf32>
    %929 = vector.broadcast %169 : f32 to vector<16x128xf32>
    %930 = arith.mulf %378, %929 : vector<16x128xf32>
    %931 = vector.broadcast %185 : f32 to vector<16x128xf32>
    %932 = arith.mulf %384, %931 : vector<16x128xf32>
    %933 = arith.addf %930, %932 : vector<16x128xf32>
    %934 = vector.broadcast %201 : f32 to vector<16x128xf32>
    %935 = arith.mulf %390, %934 : vector<16x128xf32>
    %936 = vector.broadcast %217 : f32 to vector<16x128xf32>
    %937 = arith.mulf %396, %936 : vector<16x128xf32>
    %938 = arith.addf %935, %937 : vector<16x128xf32>
    %939 = arith.addf %933, %938 : vector<16x128xf32>
    %940 = vector.broadcast %233 : f32 to vector<16x128xf32>
    %941 = arith.mulf %402, %940 : vector<16x128xf32>
    %942 = vector.broadcast %249 : f32 to vector<16x128xf32>
    %943 = arith.mulf %408, %942 : vector<16x128xf32>
    %944 = arith.addf %941, %943 : vector<16x128xf32>
    %945 = vector.broadcast %265 : f32 to vector<16x128xf32>
    %946 = arith.mulf %414, %945 : vector<16x128xf32>
    %947 = vector.broadcast %281 : f32 to vector<16x128xf32>
    %948 = arith.mulf %420, %947 : vector<16x128xf32>
    %949 = arith.addf %946, %948 : vector<16x128xf32>
    %950 = arith.addf %944, %949 : vector<16x128xf32>
    %951 = arith.addf %939, %950 : vector<16x128xf32>
    %952 = arith.addf %928, %951 : vector<16x128xf32>
    %953 = vector.broadcast %297 : f32 to vector<16x128xf32>
    %954 = arith.addf %952, %953 : vector<16x128xf32>
    %cst_586 = arith.constant 0.000000e+00 : f32
    %955 = vector.broadcast %cst_586 : f32 to vector<16x128xf32>
    %956 = arith.maximumf %954, %955 : vector<16x128xf32>
    %957 = vector.broadcast %313 : f32 to vector<16x128xf32>
    %958 = arith.mulf %956, %957 : vector<16x128xf32>
    %959 = arith.addf %905, %958 : vector<16x128xf32>
    %960 = vector.broadcast %42 : f32 to vector<16x128xf32>
    %961 = arith.mulf %330, %960 : vector<16x128xf32>
    %962 = vector.broadcast %58 : f32 to vector<16x128xf32>
    %963 = arith.mulf %336, %962 : vector<16x128xf32>
    %964 = arith.addf %961, %963 : vector<16x128xf32>
    %965 = vector.broadcast %74 : f32 to vector<16x128xf32>
    %966 = arith.mulf %342, %965 : vector<16x128xf32>
    %967 = vector.broadcast %90 : f32 to vector<16x128xf32>
    %968 = arith.mulf %348, %967 : vector<16x128xf32>
    %969 = arith.addf %966, %968 : vector<16x128xf32>
    %970 = arith.addf %964, %969 : vector<16x128xf32>
    %971 = vector.broadcast %106 : f32 to vector<16x128xf32>
    %972 = arith.mulf %354, %971 : vector<16x128xf32>
    %973 = vector.broadcast %122 : f32 to vector<16x128xf32>
    %974 = arith.mulf %360, %973 : vector<16x128xf32>
    %975 = arith.addf %972, %974 : vector<16x128xf32>
    %976 = vector.broadcast %138 : f32 to vector<16x128xf32>
    %977 = arith.mulf %366, %976 : vector<16x128xf32>
    %978 = vector.broadcast %154 : f32 to vector<16x128xf32>
    %979 = arith.mulf %372, %978 : vector<16x128xf32>
    %980 = arith.addf %977, %979 : vector<16x128xf32>
    %981 = arith.addf %975, %980 : vector<16x128xf32>
    %982 = arith.addf %970, %981 : vector<16x128xf32>
    %983 = vector.broadcast %170 : f32 to vector<16x128xf32>
    %984 = arith.mulf %378, %983 : vector<16x128xf32>
    %985 = vector.broadcast %186 : f32 to vector<16x128xf32>
    %986 = arith.mulf %384, %985 : vector<16x128xf32>
    %987 = arith.addf %984, %986 : vector<16x128xf32>
    %988 = vector.broadcast %202 : f32 to vector<16x128xf32>
    %989 = arith.mulf %390, %988 : vector<16x128xf32>
    %990 = vector.broadcast %218 : f32 to vector<16x128xf32>
    %991 = arith.mulf %396, %990 : vector<16x128xf32>
    %992 = arith.addf %989, %991 : vector<16x128xf32>
    %993 = arith.addf %987, %992 : vector<16x128xf32>
    %994 = vector.broadcast %234 : f32 to vector<16x128xf32>
    %995 = arith.mulf %402, %994 : vector<16x128xf32>
    %996 = vector.broadcast %250 : f32 to vector<16x128xf32>
    %997 = arith.mulf %408, %996 : vector<16x128xf32>
    %998 = arith.addf %995, %997 : vector<16x128xf32>
    %999 = vector.broadcast %266 : f32 to vector<16x128xf32>
    %1000 = arith.mulf %414, %999 : vector<16x128xf32>
    %1001 = vector.broadcast %282 : f32 to vector<16x128xf32>
    %1002 = arith.mulf %420, %1001 : vector<16x128xf32>
    %1003 = arith.addf %1000, %1002 : vector<16x128xf32>
    %1004 = arith.addf %998, %1003 : vector<16x128xf32>
    %1005 = arith.addf %993, %1004 : vector<16x128xf32>
    %1006 = arith.addf %982, %1005 : vector<16x128xf32>
    %1007 = vector.broadcast %298 : f32 to vector<16x128xf32>
    %1008 = arith.addf %1006, %1007 : vector<16x128xf32>
    %cst_587 = arith.constant 0.000000e+00 : f32
    %1009 = vector.broadcast %cst_587 : f32 to vector<16x128xf32>
    %1010 = arith.maximumf %1008, %1009 : vector<16x128xf32>
    %1011 = vector.broadcast %314 : f32 to vector<16x128xf32>
    %1012 = arith.mulf %1010, %1011 : vector<16x128xf32>
    %1013 = arith.addf %959, %1012 : vector<16x128xf32>
    %1014 = vector.broadcast %43 : f32 to vector<16x128xf32>
    %1015 = arith.mulf %330, %1014 : vector<16x128xf32>
    %1016 = vector.broadcast %59 : f32 to vector<16x128xf32>
    %1017 = arith.mulf %336, %1016 : vector<16x128xf32>
    %1018 = arith.addf %1015, %1017 : vector<16x128xf32>
    %1019 = vector.broadcast %75 : f32 to vector<16x128xf32>
    %1020 = arith.mulf %342, %1019 : vector<16x128xf32>
    %1021 = vector.broadcast %91 : f32 to vector<16x128xf32>
    %1022 = arith.mulf %348, %1021 : vector<16x128xf32>
    %1023 = arith.addf %1020, %1022 : vector<16x128xf32>
    %1024 = arith.addf %1018, %1023 : vector<16x128xf32>
    %1025 = vector.broadcast %107 : f32 to vector<16x128xf32>
    %1026 = arith.mulf %354, %1025 : vector<16x128xf32>
    %1027 = vector.broadcast %123 : f32 to vector<16x128xf32>
    %1028 = arith.mulf %360, %1027 : vector<16x128xf32>
    %1029 = arith.addf %1026, %1028 : vector<16x128xf32>
    %1030 = vector.broadcast %139 : f32 to vector<16x128xf32>
    %1031 = arith.mulf %366, %1030 : vector<16x128xf32>
    %1032 = vector.broadcast %155 : f32 to vector<16x128xf32>
    %1033 = arith.mulf %372, %1032 : vector<16x128xf32>
    %1034 = arith.addf %1031, %1033 : vector<16x128xf32>
    %1035 = arith.addf %1029, %1034 : vector<16x128xf32>
    %1036 = arith.addf %1024, %1035 : vector<16x128xf32>
    %1037 = vector.broadcast %171 : f32 to vector<16x128xf32>
    %1038 = arith.mulf %378, %1037 : vector<16x128xf32>
    %1039 = vector.broadcast %187 : f32 to vector<16x128xf32>
    %1040 = arith.mulf %384, %1039 : vector<16x128xf32>
    %1041 = arith.addf %1038, %1040 : vector<16x128xf32>
    %1042 = vector.broadcast %203 : f32 to vector<16x128xf32>
    %1043 = arith.mulf %390, %1042 : vector<16x128xf32>
    %1044 = vector.broadcast %219 : f32 to vector<16x128xf32>
    %1045 = arith.mulf %396, %1044 : vector<16x128xf32>
    %1046 = arith.addf %1043, %1045 : vector<16x128xf32>
    %1047 = arith.addf %1041, %1046 : vector<16x128xf32>
    %1048 = vector.broadcast %235 : f32 to vector<16x128xf32>
    %1049 = arith.mulf %402, %1048 : vector<16x128xf32>
    %1050 = vector.broadcast %251 : f32 to vector<16x128xf32>
    %1051 = arith.mulf %408, %1050 : vector<16x128xf32>
    %1052 = arith.addf %1049, %1051 : vector<16x128xf32>
    %1053 = vector.broadcast %267 : f32 to vector<16x128xf32>
    %1054 = arith.mulf %414, %1053 : vector<16x128xf32>
    %1055 = vector.broadcast %283 : f32 to vector<16x128xf32>
    %1056 = arith.mulf %420, %1055 : vector<16x128xf32>
    %1057 = arith.addf %1054, %1056 : vector<16x128xf32>
    %1058 = arith.addf %1052, %1057 : vector<16x128xf32>
    %1059 = arith.addf %1047, %1058 : vector<16x128xf32>
    %1060 = arith.addf %1036, %1059 : vector<16x128xf32>
    %1061 = vector.broadcast %299 : f32 to vector<16x128xf32>
    %1062 = arith.addf %1060, %1061 : vector<16x128xf32>
    %cst_588 = arith.constant 0.000000e+00 : f32
    %1063 = vector.broadcast %cst_588 : f32 to vector<16x128xf32>
    %1064 = arith.maximumf %1062, %1063 : vector<16x128xf32>
    %1065 = vector.broadcast %315 : f32 to vector<16x128xf32>
    %1066 = arith.mulf %1064, %1065 : vector<16x128xf32>
    %1067 = arith.addf %1013, %1066 : vector<16x128xf32>
    %1068 = vector.broadcast %44 : f32 to vector<16x128xf32>
    %1069 = arith.mulf %330, %1068 : vector<16x128xf32>
    %1070 = vector.broadcast %60 : f32 to vector<16x128xf32>
    %1071 = arith.mulf %336, %1070 : vector<16x128xf32>
    %1072 = arith.addf %1069, %1071 : vector<16x128xf32>
    %1073 = vector.broadcast %76 : f32 to vector<16x128xf32>
    %1074 = arith.mulf %342, %1073 : vector<16x128xf32>
    %1075 = vector.broadcast %92 : f32 to vector<16x128xf32>
    %1076 = arith.mulf %348, %1075 : vector<16x128xf32>
    %1077 = arith.addf %1074, %1076 : vector<16x128xf32>
    %1078 = arith.addf %1072, %1077 : vector<16x128xf32>
    %1079 = vector.broadcast %108 : f32 to vector<16x128xf32>
    %1080 = arith.mulf %354, %1079 : vector<16x128xf32>
    %1081 = vector.broadcast %124 : f32 to vector<16x128xf32>
    %1082 = arith.mulf %360, %1081 : vector<16x128xf32>
    %1083 = arith.addf %1080, %1082 : vector<16x128xf32>
    %1084 = vector.broadcast %140 : f32 to vector<16x128xf32>
    %1085 = arith.mulf %366, %1084 : vector<16x128xf32>
    %1086 = vector.broadcast %156 : f32 to vector<16x128xf32>
    %1087 = arith.mulf %372, %1086 : vector<16x128xf32>
    %1088 = arith.addf %1085, %1087 : vector<16x128xf32>
    %1089 = arith.addf %1083, %1088 : vector<16x128xf32>
    %1090 = arith.addf %1078, %1089 : vector<16x128xf32>
    %1091 = vector.broadcast %172 : f32 to vector<16x128xf32>
    %1092 = arith.mulf %378, %1091 : vector<16x128xf32>
    %1093 = vector.broadcast %188 : f32 to vector<16x128xf32>
    %1094 = arith.mulf %384, %1093 : vector<16x128xf32>
    %1095 = arith.addf %1092, %1094 : vector<16x128xf32>
    %1096 = vector.broadcast %204 : f32 to vector<16x128xf32>
    %1097 = arith.mulf %390, %1096 : vector<16x128xf32>
    %1098 = vector.broadcast %220 : f32 to vector<16x128xf32>
    %1099 = arith.mulf %396, %1098 : vector<16x128xf32>
    %1100 = arith.addf %1097, %1099 : vector<16x128xf32>
    %1101 = arith.addf %1095, %1100 : vector<16x128xf32>
    %1102 = vector.broadcast %236 : f32 to vector<16x128xf32>
    %1103 = arith.mulf %402, %1102 : vector<16x128xf32>
    %1104 = vector.broadcast %252 : f32 to vector<16x128xf32>
    %1105 = arith.mulf %408, %1104 : vector<16x128xf32>
    %1106 = arith.addf %1103, %1105 : vector<16x128xf32>
    %1107 = vector.broadcast %268 : f32 to vector<16x128xf32>
    %1108 = arith.mulf %414, %1107 : vector<16x128xf32>
    %1109 = vector.broadcast %284 : f32 to vector<16x128xf32>
    %1110 = arith.mulf %420, %1109 : vector<16x128xf32>
    %1111 = arith.addf %1108, %1110 : vector<16x128xf32>
    %1112 = arith.addf %1106, %1111 : vector<16x128xf32>
    %1113 = arith.addf %1101, %1112 : vector<16x128xf32>
    %1114 = arith.addf %1090, %1113 : vector<16x128xf32>
    %1115 = vector.broadcast %300 : f32 to vector<16x128xf32>
    %1116 = arith.addf %1114, %1115 : vector<16x128xf32>
    %cst_589 = arith.constant 0.000000e+00 : f32
    %1117 = vector.broadcast %cst_589 : f32 to vector<16x128xf32>
    %1118 = arith.maximumf %1116, %1117 : vector<16x128xf32>
    %1119 = vector.broadcast %316 : f32 to vector<16x128xf32>
    %1120 = arith.mulf %1118, %1119 : vector<16x128xf32>
    %1121 = arith.addf %1067, %1120 : vector<16x128xf32>
    %1122 = vector.broadcast %45 : f32 to vector<16x128xf32>
    %1123 = arith.mulf %330, %1122 : vector<16x128xf32>
    %1124 = vector.broadcast %61 : f32 to vector<16x128xf32>
    %1125 = arith.mulf %336, %1124 : vector<16x128xf32>
    %1126 = arith.addf %1123, %1125 : vector<16x128xf32>
    %1127 = vector.broadcast %77 : f32 to vector<16x128xf32>
    %1128 = arith.mulf %342, %1127 : vector<16x128xf32>
    %1129 = vector.broadcast %93 : f32 to vector<16x128xf32>
    %1130 = arith.mulf %348, %1129 : vector<16x128xf32>
    %1131 = arith.addf %1128, %1130 : vector<16x128xf32>
    %1132 = arith.addf %1126, %1131 : vector<16x128xf32>
    %1133 = vector.broadcast %109 : f32 to vector<16x128xf32>
    %1134 = arith.mulf %354, %1133 : vector<16x128xf32>
    %1135 = vector.broadcast %125 : f32 to vector<16x128xf32>
    %1136 = arith.mulf %360, %1135 : vector<16x128xf32>
    %1137 = arith.addf %1134, %1136 : vector<16x128xf32>
    %1138 = vector.broadcast %141 : f32 to vector<16x128xf32>
    %1139 = arith.mulf %366, %1138 : vector<16x128xf32>
    %1140 = vector.broadcast %157 : f32 to vector<16x128xf32>
    %1141 = arith.mulf %372, %1140 : vector<16x128xf32>
    %1142 = arith.addf %1139, %1141 : vector<16x128xf32>
    %1143 = arith.addf %1137, %1142 : vector<16x128xf32>
    %1144 = arith.addf %1132, %1143 : vector<16x128xf32>
    %1145 = vector.broadcast %173 : f32 to vector<16x128xf32>
    %1146 = arith.mulf %378, %1145 : vector<16x128xf32>
    %1147 = vector.broadcast %189 : f32 to vector<16x128xf32>
    %1148 = arith.mulf %384, %1147 : vector<16x128xf32>
    %1149 = arith.addf %1146, %1148 : vector<16x128xf32>
    %1150 = vector.broadcast %205 : f32 to vector<16x128xf32>
    %1151 = arith.mulf %390, %1150 : vector<16x128xf32>
    %1152 = vector.broadcast %221 : f32 to vector<16x128xf32>
    %1153 = arith.mulf %396, %1152 : vector<16x128xf32>
    %1154 = arith.addf %1151, %1153 : vector<16x128xf32>
    %1155 = arith.addf %1149, %1154 : vector<16x128xf32>
    %1156 = vector.broadcast %237 : f32 to vector<16x128xf32>
    %1157 = arith.mulf %402, %1156 : vector<16x128xf32>
    %1158 = vector.broadcast %253 : f32 to vector<16x128xf32>
    %1159 = arith.mulf %408, %1158 : vector<16x128xf32>
    %1160 = arith.addf %1157, %1159 : vector<16x128xf32>
    %1161 = vector.broadcast %269 : f32 to vector<16x128xf32>
    %1162 = arith.mulf %414, %1161 : vector<16x128xf32>
    %1163 = vector.broadcast %285 : f32 to vector<16x128xf32>
    %1164 = arith.mulf %420, %1163 : vector<16x128xf32>
    %1165 = arith.addf %1162, %1164 : vector<16x128xf32>
    %1166 = arith.addf %1160, %1165 : vector<16x128xf32>
    %1167 = arith.addf %1155, %1166 : vector<16x128xf32>
    %1168 = arith.addf %1144, %1167 : vector<16x128xf32>
    %1169 = vector.broadcast %301 : f32 to vector<16x128xf32>
    %1170 = arith.addf %1168, %1169 : vector<16x128xf32>
    %cst_590 = arith.constant 0.000000e+00 : f32
    %1171 = vector.broadcast %cst_590 : f32 to vector<16x128xf32>
    %1172 = arith.maximumf %1170, %1171 : vector<16x128xf32>
    %1173 = vector.broadcast %317 : f32 to vector<16x128xf32>
    %1174 = arith.mulf %1172, %1173 : vector<16x128xf32>
    %1175 = arith.addf %1121, %1174 : vector<16x128xf32>
    %1176 = vector.broadcast %46 : f32 to vector<16x128xf32>
    %1177 = arith.mulf %330, %1176 : vector<16x128xf32>
    %1178 = vector.broadcast %62 : f32 to vector<16x128xf32>
    %1179 = arith.mulf %336, %1178 : vector<16x128xf32>
    %1180 = arith.addf %1177, %1179 : vector<16x128xf32>
    %1181 = vector.broadcast %78 : f32 to vector<16x128xf32>
    %1182 = arith.mulf %342, %1181 : vector<16x128xf32>
    %1183 = vector.broadcast %94 : f32 to vector<16x128xf32>
    %1184 = arith.mulf %348, %1183 : vector<16x128xf32>
    %1185 = arith.addf %1182, %1184 : vector<16x128xf32>
    %1186 = arith.addf %1180, %1185 : vector<16x128xf32>
    %1187 = vector.broadcast %110 : f32 to vector<16x128xf32>
    %1188 = arith.mulf %354, %1187 : vector<16x128xf32>
    %1189 = vector.broadcast %126 : f32 to vector<16x128xf32>
    %1190 = arith.mulf %360, %1189 : vector<16x128xf32>
    %1191 = arith.addf %1188, %1190 : vector<16x128xf32>
    %1192 = vector.broadcast %142 : f32 to vector<16x128xf32>
    %1193 = arith.mulf %366, %1192 : vector<16x128xf32>
    %1194 = vector.broadcast %158 : f32 to vector<16x128xf32>
    %1195 = arith.mulf %372, %1194 : vector<16x128xf32>
    %1196 = arith.addf %1193, %1195 : vector<16x128xf32>
    %1197 = arith.addf %1191, %1196 : vector<16x128xf32>
    %1198 = arith.addf %1186, %1197 : vector<16x128xf32>
    %1199 = vector.broadcast %174 : f32 to vector<16x128xf32>
    %1200 = arith.mulf %378, %1199 : vector<16x128xf32>
    %1201 = vector.broadcast %190 : f32 to vector<16x128xf32>
    %1202 = arith.mulf %384, %1201 : vector<16x128xf32>
    %1203 = arith.addf %1200, %1202 : vector<16x128xf32>
    %1204 = vector.broadcast %206 : f32 to vector<16x128xf32>
    %1205 = arith.mulf %390, %1204 : vector<16x128xf32>
    %1206 = vector.broadcast %222 : f32 to vector<16x128xf32>
    %1207 = arith.mulf %396, %1206 : vector<16x128xf32>
    %1208 = arith.addf %1205, %1207 : vector<16x128xf32>
    %1209 = arith.addf %1203, %1208 : vector<16x128xf32>
    %1210 = vector.broadcast %238 : f32 to vector<16x128xf32>
    %1211 = arith.mulf %402, %1210 : vector<16x128xf32>
    %1212 = vector.broadcast %254 : f32 to vector<16x128xf32>
    %1213 = arith.mulf %408, %1212 : vector<16x128xf32>
    %1214 = arith.addf %1211, %1213 : vector<16x128xf32>
    %1215 = vector.broadcast %270 : f32 to vector<16x128xf32>
    %1216 = arith.mulf %414, %1215 : vector<16x128xf32>
    %1217 = vector.broadcast %286 : f32 to vector<16x128xf32>
    %1218 = arith.mulf %420, %1217 : vector<16x128xf32>
    %1219 = arith.addf %1216, %1218 : vector<16x128xf32>
    %1220 = arith.addf %1214, %1219 : vector<16x128xf32>
    %1221 = arith.addf %1209, %1220 : vector<16x128xf32>
    %1222 = arith.addf %1198, %1221 : vector<16x128xf32>
    %1223 = vector.broadcast %302 : f32 to vector<16x128xf32>
    %1224 = arith.addf %1222, %1223 : vector<16x128xf32>
    %cst_591 = arith.constant 0.000000e+00 : f32
    %1225 = vector.broadcast %cst_591 : f32 to vector<16x128xf32>
    %1226 = arith.maximumf %1224, %1225 : vector<16x128xf32>
    %1227 = vector.broadcast %318 : f32 to vector<16x128xf32>
    %1228 = arith.mulf %1226, %1227 : vector<16x128xf32>
    %1229 = arith.addf %1175, %1228 : vector<16x128xf32>
    %1230 = vector.broadcast %47 : f32 to vector<16x128xf32>
    %1231 = arith.mulf %330, %1230 : vector<16x128xf32>
    %1232 = vector.broadcast %63 : f32 to vector<16x128xf32>
    %1233 = arith.mulf %336, %1232 : vector<16x128xf32>
    %1234 = arith.addf %1231, %1233 : vector<16x128xf32>
    %1235 = vector.broadcast %79 : f32 to vector<16x128xf32>
    %1236 = arith.mulf %342, %1235 : vector<16x128xf32>
    %1237 = vector.broadcast %95 : f32 to vector<16x128xf32>
    %1238 = arith.mulf %348, %1237 : vector<16x128xf32>
    %1239 = arith.addf %1236, %1238 : vector<16x128xf32>
    %1240 = arith.addf %1234, %1239 : vector<16x128xf32>
    %1241 = vector.broadcast %111 : f32 to vector<16x128xf32>
    %1242 = arith.mulf %354, %1241 : vector<16x128xf32>
    %1243 = vector.broadcast %127 : f32 to vector<16x128xf32>
    %1244 = arith.mulf %360, %1243 : vector<16x128xf32>
    %1245 = arith.addf %1242, %1244 : vector<16x128xf32>
    %1246 = vector.broadcast %143 : f32 to vector<16x128xf32>
    %1247 = arith.mulf %366, %1246 : vector<16x128xf32>
    %1248 = vector.broadcast %159 : f32 to vector<16x128xf32>
    %1249 = arith.mulf %372, %1248 : vector<16x128xf32>
    %1250 = arith.addf %1247, %1249 : vector<16x128xf32>
    %1251 = arith.addf %1245, %1250 : vector<16x128xf32>
    %1252 = arith.addf %1240, %1251 : vector<16x128xf32>
    %1253 = vector.broadcast %175 : f32 to vector<16x128xf32>
    %1254 = arith.mulf %378, %1253 : vector<16x128xf32>
    %1255 = vector.broadcast %191 : f32 to vector<16x128xf32>
    %1256 = arith.mulf %384, %1255 : vector<16x128xf32>
    %1257 = arith.addf %1254, %1256 : vector<16x128xf32>
    %1258 = vector.broadcast %207 : f32 to vector<16x128xf32>
    %1259 = arith.mulf %390, %1258 : vector<16x128xf32>
    %1260 = vector.broadcast %223 : f32 to vector<16x128xf32>
    %1261 = arith.mulf %396, %1260 : vector<16x128xf32>
    %1262 = arith.addf %1259, %1261 : vector<16x128xf32>
    %1263 = arith.addf %1257, %1262 : vector<16x128xf32>
    %1264 = vector.broadcast %239 : f32 to vector<16x128xf32>
    %1265 = arith.mulf %402, %1264 : vector<16x128xf32>
    %1266 = vector.broadcast %255 : f32 to vector<16x128xf32>
    %1267 = arith.mulf %408, %1266 : vector<16x128xf32>
    %1268 = arith.addf %1265, %1267 : vector<16x128xf32>
    %1269 = vector.broadcast %271 : f32 to vector<16x128xf32>
    %1270 = arith.mulf %414, %1269 : vector<16x128xf32>
    %1271 = vector.broadcast %287 : f32 to vector<16x128xf32>
    %1272 = arith.mulf %420, %1271 : vector<16x128xf32>
    %1273 = arith.addf %1270, %1272 : vector<16x128xf32>
    %1274 = arith.addf %1268, %1273 : vector<16x128xf32>
    %1275 = arith.addf %1263, %1274 : vector<16x128xf32>
    %1276 = arith.addf %1252, %1275 : vector<16x128xf32>
    %1277 = vector.broadcast %303 : f32 to vector<16x128xf32>
    %1278 = arith.addf %1276, %1277 : vector<16x128xf32>
    %cst_592 = arith.constant 0.000000e+00 : f32
    %1279 = vector.broadcast %cst_592 : f32 to vector<16x128xf32>
    %1280 = arith.maximumf %1278, %1279 : vector<16x128xf32>
    %1281 = vector.broadcast %319 : f32 to vector<16x128xf32>
    %1282 = arith.mulf %1280, %1281 : vector<16x128xf32>
    %1283 = arith.addf %1229, %1282 : vector<16x128xf32>
    %1284 = vector.broadcast %320 : f32 to vector<16x128xf32>
    %1285 = arith.addf %1283, %1284 : vector<16x128xf32>
    %1286 = arith.index_cast %322 : i32 to index
    %c0_593 = arith.constant 0 : index
    %1287 = vector.load %arg8[%1286, %c0_593] : memref<16x128xf32, #tpu.memory_space<vmem>>, vector<16x128xf32>
    tpu.vector_store %arg8[%1286, %c0_593], %1285 {strides = array<i32>} : memref<16x128xf32, #tpu.memory_space<vmem>>, vector<16x128xf32>,
    %c1_i32 = arith.constant 1 : i32
    return
  }
  func.func @transform_0(%arg0: i32) -> (i32, i32) {
    %c0_i32 = arith.constant 0 : i32
    %c0_i32_0 = arith.constant 0 : i32
    return %arg0, %c0_i32 : i32, i32
  }
  func.func @transform_1(%arg0: i32) -> i32 {
    %c0_i32 = arith.constant 0 : i32
    %c0_i32_0 = arith.constant 0 : i32
    return %c0_i32 : i32
  }
  func.func @transform_2(%arg0: i32) -> i32 {
    %c0_i32 = arith.constant 0 : i32
    %c0_i32_0 = arith.constant 0 : i32
    return %c0_i32 : i32
  }
  func.func @transform_3(%arg0: i32) -> (i32, i32) {
    %c0_i32 = arith.constant 0 : i32
    %c0_i32_0 = arith.constant 0 : i32
    %c0_i32_1 = arith.constant 0 : i32
    return %c0_i32, %c0_i32_0 : i32, i32
  }
  func.func @transform_4(%arg0: i32) -> i32 {
    %c0_i32 = arith.constant 0 : i32
    %c0_i32_0 = arith.constant 0 : i32
    return %c0_i32 : i32
  }
  func.func @transform_5(%arg0: i32) -> i32 {
    %c0_i32 = arith.constant 0 : i32
    %c0_i32_0 = arith.constant 0 : i32
    return %c0_i32 : i32
  }
  func.func @transform_6(%arg0: i32) -> i32 {
    %c0_i32 = arith.constant 0 : i32
    %c0_i32_0 = arith.constant 0 : i32
    return %c0_i32 : i32
  }
  func.func @transform_7(%arg0: i32) -> (i32, i32) {
    %c0_i32 = arith.constant 0 : i32
    %c0_i32_0 = arith.constant 0 : i32
    return %arg0, %c0_i32 : i32, i32
  }
}

</mosaic_0001>

<llo_original>
// kernel: tpu_custom_call.1
$region0: #{tpu_custom_call.1}
  #allocation0 [shape = 'u32[]', space=smem, size = 0x4, offset = 0x4, fixed_abs, tag = 'smem constant byte address 0x4 - core index']
  #allocation1 [shape = 'u32[144,128]{1,0:T(1,128)}', space=vmem, size = 0x12000, scoped, tag = 'internal scratch']
  #allocation2 [shape = 'f32[1]{0:T(128)S(6)}', space=smem, size = 0x200, scoped, tag = 'scoped memory for tpu_custom_call.1']
  %s0 = inlined_call_operand.hbm [shape: f32[16,128], index: 0, kind: input, shape index: {}]
  %s1 = inlined_call_operand.vmem [shape: f32[16], index: 1, kind: input, shape index: {}]
  %s2 = inlined_call_operand.vmem [shape: f32[16], index: 2, kind: input, shape index: {}]
  %s3 = inlined_call_operand.hbm [shape: f32[16,16], index: 3, kind: input, shape index: {}]
  %s4 = inlined_call_operand.vmem [shape: f32[16], index: 4, kind: input, shape index: {}]
  %s5 = inlined_call_operand.vmem [shape: f32[16], index: 5, kind: input, shape index: {}]
  %s6 = inlined_call_operand.<no memory space> [shape: f32[1], index: 6, kind: input, shape index: {}]
  %s7 = inlined_call_operand.hbm [shape: f32[16,128], index: 7, kind: output, shape index: {}]
  %s8 = sld [smem:[#allocation0]]
  $region62: #{tpu_custom_call.1} parent=0
    _
  %s10 = ssub.s32 1, %s8
  %s11 = scalar_select 0, %s10, %s8
  %12 = sst [smem:[#allocation2]] %s6
  $region1: #{tpu_custom_call.1} parent=0
    #allocation3 [shape = 'u8[8192]{0}', space=vmem, size = 0x2000, scoped, tag = 'input window, operand 0, single buffered']
    #allocation4 [shape = 's32[1]{0}', space=sflag, size = 0x4, scoped, tag = 'scoped memory for tpu_custom_call.1']
    #allocation5 [shape = 's32[1]{0}', space=sflag, size = 0x4, scoped, tag = 'scoped memory for tpu_custom_call.1']
    #allocation6 [shape = 's32[1]{0}', space=sflag, size = 0x4, scoped, tag = 'scoped memory for tpu_custom_call.1']
    #allocation7 [shape = 's32[1]{0}', space=sflag, size = 0x4, scoped, tag = 'scoped memory for tpu_custom_call.1']
    #allocation8 [shape = 'u8[512]{0}', space=smem, size = 0x200, scoped, tag = 'input window, operand 1, single buffered']
    #allocation9 [shape = 'u8[512]{0}', space=smem, size = 0x200, scoped, tag = 'input window, operand 2, single buffered']
    #allocation10 [shape = 's32[1]{0}', space=sflag, size = 0x4, scoped, tag = 'scoped memory for tpu_custom_call.1']
    #allocation11 [shape = 'u8[8192]{0}', space=smem, size = 0x2000, scoped, tag = 'input window, operand 3, single buffered']
    #allocation12 [shape = 'u8[512]{0}', space=smem, size = 0x200, scoped, tag = 'input window, operand 4, single buffered']
    #allocation13 [shape = 'u8[512]{0}', space=smem, size = 0x200, scoped, tag = 'input window, operand 5, single buffered']
    #allocation14 [shape = 's32[1]{0}', space=sflag, size = 0x4, scoped, tag = 'scoped memory for tpu_custom_call.1']
    #allocation15 [shape = 'u8[8192]{0}', space=vmem, size = 0x2000, scoped, tag = 'output window, operand 0, single buffered']
    %13 = vsyncpa [#allocation4], 0
    %14 = vsyncpa [#allocation7], 0
    %15 = vsyncpa [#allocation10], 0
    %16 = vsyncpa [#allocation6], 0
    %17 = vsyncpa [#allocation14], 0
    %18 = vsyncpa [#allocation5], 0
    // Predicated region
    $region2: #{tpu_custom_call.1} parent=1 // pred_check
      _
    $region3: #{tpu_custom_call.1} parent=1 // pred_check_branch
      %20 = sbr.rel (0) target = $region5
    $region4: #{tpu_custom_call.1} parent=1 // pred_region
      %s22 = ssub.s32 256, 256
      %23 = vsyncadd [#allocation4], %s22
      %s24 = sshll.u32 [#allocation3], 4
      %s25 = int_to_ptr.vmem [resolvable:$true] %s24
      %30 = dma.hbm_to_vmem [thread:$0]  %s0, 256, %s25, [#allocation4], 128, 128, 8
    $region5: #{tpu_custom_call.1} parent=1 // pred_fallthru
      _
    // Predicated region
    $region6: #{tpu_custom_call.1} parent=1 // pred_check
      _
    $region7: #{tpu_custom_call.1} parent=1 // pred_check_branch
      %32 = sbr.rel (0) target = $region9
    $region8: #{tpu_custom_call.1} parent=1 // pred_region
      %s34 = ssub.s32 16, 16
      %35 = vsyncadd [#allocation7], %s34
      %s37 = sshll.u32 %s1, 4
      %s38 = int_to_ptr.vmem [resolvable:$true] %s37
      %40 = dma.vmem_to_smem %s38, 16, [#allocation8], [#allocation7]
    $region9: #{tpu_custom_call.1} parent=1 // pred_fallthru
      _
    // Predicated region
    $region10: #{tpu_custom_call.1} parent=1 // pred_check
      _
    $region11: #{tpu_custom_call.1} parent=1 // pred_check_branch
      %42 = sbr.rel (0) target = $region13
    $region12: #{tpu_custom_call.1} parent=1 // pred_region
      %s44 = ssub.s32 16, 16
      %45 = vsyncadd [#allocation10], %s44
      %s47 = sshll.u32 %s2, 4
      %s48 = int_to_ptr.vmem [resolvable:$true] %s47
      %50 = dma.vmem_to_smem %s48, 16, [#allocation9], [#allocation10]
    $region13: #{tpu_custom_call.1} parent=1 // pred_fallthru
      _
    // Predicated region
    $region14: #{tpu_custom_call.1} parent=1 // pred_check
      _
    $region15: #{tpu_custom_call.1} parent=1 // pred_check_branch
      %52 = sbr.rel (0) target = $region17
    $region16: #{tpu_custom_call.1} parent=1 // pred_region
      %s54 = ssub.s32 256, 256
      %55 = vsyncadd [#allocation6], %s54
      %60 = dma.hbm_to_smem %s3, 256, [#allocation11], [#allocation6], 128, 128, 8
    $region17: #{tpu_custom_call.1} parent=1 // pred_fallthru
      _
    // Predicated region
    $region18: #{tpu_custom_call.1} parent=1 // pred_check
      _
    $region19: #{tpu_custom_call.1} parent=1 // pred_check_branch
      %62 = sbr.rel (0) target = $region21
    $region20: #{tpu_custom_call.1} parent=1 // pred_region
      %s64 = ssub.s32 16, 16
      %65 = vsyncadd [#allocation10], %s64
      %s67 = sshll.u32 %s4, 4
      %s68 = int_to_ptr.vmem [resolvable:$true] %s67
      %70 = dma.vmem_to_smem %s68, 16, [#allocation12], [#allocation10]
    $region21: #{tpu_custom_call.1} parent=1 // pred_fallthru
      _
    // Predicated region
    $region22: #{tpu_custom_call.1} parent=1 // pred_check
      _
    $region23: #{tpu_custom_call.1} parent=1 // pred_check_branch
      %72 = sbr.rel (0) target = $region25
    $region24: #{tpu_custom_call.1} parent=1 // pred_region
      %s74 = ssub.s32 16, 16
      %75 = vsyncadd [#allocation14], %s74
      %s77 = sshll.u32 %s5, 4
      %s78 = int_to_ptr.vmem [resolvable:$true] %s77
      %80 = dma.vmem_to_smem %s78, 16, [#allocation13], [#allocation14]
    $region25: #{tpu_custom_call.1} parent=1 // pred_fallthru
      _
    // Predicated region
    $region26: #{tpu_custom_call.1} parent=1 // pred_check
      _
    $region27: #{tpu_custom_call.1} parent=1 // pred_check_branch
      %82 = sbr.rel (0) target = $region29
    $region28: #{tpu_custom_call.1} parent=1 // pred_region
      _
    $region29: #{tpu_custom_call.1} parent=1 // pred_fallthru
      _
    // Predicated region
    $region30: #{tpu_custom_call.1} parent=1 // pred_check
      _
    $region31: #{tpu_custom_call.1} parent=1 // pred_check_branch
      %84 = sbr.rel (0) target = $region33
    $region32: #{tpu_custom_call.1} parent=1 // pred_region
      %85 = dma.done [#allocation4], 256
    $region33: #{tpu_custom_call.1} parent=1 // pred_fallthru
      _
    // Predicated region
    $region34: #{tpu_custom_call.1} parent=1 // pred_check
      _
    $region35: #{tpu_custom_call.1} parent=1 // pred_check_branch
      %87 = sbr.rel (0) target = $region37
    $region36: #{tpu_custom_call.1} parent=1 // pred_region
      %88 = dma.done [#allocation7], 16
    $region37: #{tpu_custom_call.1} parent=1 // pred_fallthru
      _
    // Predicated region
    $region38: #{tpu_custom_call.1} parent=1 // pred_check
      _
    $region39: #{tpu_custom_call.1} parent=1 // pred_check_branch
      %90 = sbr.rel (0) target = $region41
    $region40: #{tpu_custom_call.1} parent=1 // pred_region
      %91 = dma.done [#allocation10], 16
    $region41: #{tpu_custom_call.1} parent=1 // pred_fallthru
      _
    // Predicated region
    $region42: #{tpu_custom_call.1} parent=1 // pred_check
      _
    $region43: #{tpu_custom_call.1} parent=1 // pred_check_branch
      %93 = sbr.rel (0) target = $region45
    $region44: #{tpu_custom_call.1} parent=1 // pred_region
      %94 = dma.done [#allocation6], 256
    $region45: #{tpu_custom_call.1} parent=1 // pred_fallthru
      _
    // Predicated region
    $region46: #{tpu_custom_call.1} parent=1 // pred_check
      _
    $region47: #{tpu_custom_call.1} parent=1 // pred_check_branch
      %96 = sbr.rel (0) target = $region49
    $region48: #{tpu_custom_call.1} parent=1 // pred_region
      %97 = dma.done [#allocation10], 16
    $region49: #{tpu_custom_call.1} parent=1 // pred_fallthru
      _
    // Predicated region
    $region50: #{tpu_custom_call.1} parent=1 // pred_check
      _
    $region51: #{tpu_custom_call.1} parent=1 // pred_check_branch
      %99 = sbr.rel (0) target = $region53
    $region52: #{tpu_custom_call.1} parent=1 // pred_region
      %100 = dma.done [#allocation14], 16
    $region53: #{tpu_custom_call.1} parent=1 // pred_fallthru
      _
    %101 = sfence
    %s102 = sld [smem:[#allocation8]]
    %s103 = sld [smem:[#allocation8 + $0x1]]
    %s104 = sld [smem:[#allocation8 + $0x2]]
    %s105 = sld [smem:[#allocation8 + $0x3]]
    %s106 = sld [smem:[#allocation8 + $0x4]]
    %s107 = sld [smem:[#allocation8 + $0x5]]
    %s108 = sld [smem:[#allocation8 + $0x6]]
    %s109 = sld [smem:[#allocation8 + $0x7]]
    %s110 = sld [smem:[#allocation8 + $0x8]]
    %s111 = sld [smem:[#allocation8 + $0x9]]
    %s112 = sld [smem:[#allocation8 + $0xa]]
    %s113 = sld [smem:[#allocation8 + $0xb]]
    %s114 = sld [smem:[#allocation8 + $0xc]]
    %s115 = sld [smem:[#allocation8 + $0xd]]
    %s116 = sld [smem:[#allocation8 + $0xe]]
    %s117 = sld [smem:[#allocation8 + $0xf]]
    %s118 = sld [smem:[#allocation9]]
    %s119 = sld [smem:[#allocation9 + $0x1]]
    %s120 = sld [smem:[#allocation9 + $0x2]]
    %s121 = sld [smem:[#allocation9 + $0x3]]
    %s122 = sld [smem:[#allocation9 + $0x4]]
    %s123 = sld [smem:[#allocation9 + $0x5]]
    %s124 = sld [smem:[#allocation9 + $0x6]]
    %s125 = sld [smem:[#allocation9 + $0x7]]
    %s126 = sld [smem:[#allocation9 + $0x8]]
    %s127 = sld [smem:[#allocation9 + $0x9]]
    %s128 = sld [smem:[#allocation9 + $0xa]]
    %s129 = sld [smem:[#allocation9 + $0xb]]
    %s130 = sld [smem:[#allocation9 + $0xc]]
    %s131 = sld [smem:[#allocation9 + $0xd]]
    %s132 = sld [smem:[#allocation9 + $0xe]]
    %s133 = sld [smem:[#allocation9 + $0xf]]
    %s134 = sld [smem:[#allocation11]]
    %s135 = sld [smem:[#allocation11 + $0x1]]
    %s136 = sld [smem:[#allocation11 + $0x2]]
    %s137 = sld [smem:[#allocation11 + $0x3]]
    %s138 = sld [smem:[#allocation11 + $0x4]]
    %s139 = sld [smem:[#allocation11 + $0x5]]
    %s140 = sld [smem:[#allocation11 + $0x6]]
    %s141 = sld [smem:[#allocation11 + $0x7]]
    %s142 = sld [smem:[#allocation11 + $0x8]]
    %s143 = sld [smem:[#allocation11 + $0x9]]
    %s144 = sld [smem:[#allocation11 + $0xa]]
    %s145 = sld [smem:[#allocation11 + $0xb]]
    %s146 = sld [smem:[#allocation11 + $0xc]]
    %s147 = sld [smem:[#allocation11 + $0xd]]
    %s148 = sld [smem:[#allocation11 + $0xe]]
    %s149 = sld [smem:[#allocation11 + $0xf]]
    %s150 = sld [smem:[#allocation11 + $0x80]]
    %s151 = sld [smem:[#allocation11 + $0x81]]
    %s152 = sld [smem:[#allocation11 + $0x82]]
    %s153 = sld [smem:[#allocation11 + $0x83]]
    %s154 = sld [smem:[#allocation11 + $0x84]]
    %s155 = sld [smem:[#allocation11 + $0x85]]
    %s156 = sld [smem:[#allocation11 + $0x86]]
    %s157 = sld [smem:[#allocation11 + $0x87]]
    %s158 = sld [smem:[#allocation11 + $0x88]]
    %s159 = sld [smem:[#allocation11 + $0x89]]
    %s160 = sld [smem:[#allocation11 + $0x8a]]
    %s161 = sld [smem:[#allocation11 + $0x8b]]
    %s162 = sld [smem:[#allocation11 + $0x8c]]
    %s163 = sld [smem:[#allocation11 + $0x8d]]
    %s164 = sld [smem:[#allocation11 + $0x8e]]
    %s165 = sld [smem:[#allocation11 + $0x8f]]
    %s166 = sld [smem:[#allocation11 + $0x100]]
    %s167 = sld [smem:[#allocation11 + $0x101]]
    %s168 = sld [smem:[#allocation11 + $0x102]]
    %s169 = sld [smem:[#allocation11 + $0x103]]
    %s170 = sld [smem:[#allocation11 + $0x104]]
    %s171 = sld [smem:[#allocation11 + $0x105]]
    %s172 = sld [smem:[#allocation11 + $0x106]]
    %s173 = sld [smem:[#allocation11 + $0x107]]
    %s174 = sld [smem:[#allocation11 + $0x108]]
    %s175 = sld [smem:[#allocation11 + $0x109]]
    %s176 = sld [smem:[#allocation11 + $0x10a]]
    %s177 = sld [smem:[#allocation11 + $0x10b]]
    %s178 = sld [smem:[#allocation11 + $0x10c]]
    %s179 = sld [smem:[#allocation11 + $0x10d]]
    %s180 = sld [smem:[#allocation11 + $0x10e]]
    %s181 = sld [smem:[#allocation11 + $0x10f]]
    %s182 = sld [smem:[#allocation11 + $0x180]]
    %s183 = sld [smem:[#allocation11 + $0x181]]
    %s184 = sld [smem:[#allocation11 + $0x182]]
    %s185 = sld [smem:[#allocation11 + $0x183]]
    %s186 = sld [smem:[#allocation11 + $0x184]]
    %s187 = sld [smem:[#allocation11 + $0x185]]
    %s188 = sld [smem:[#allocation11 + $0x186]]
    %s189 = sld [smem:[#allocation11 + $0x187]]
    %s190 = sld [smem:[#allocation11 + $0x188]]
    %s191 = sld [smem:[#allocation11 + $0x189]]
    %s192 = sld [smem:[#allocation11 + $0x18a]]
    %s193 = sld [smem:[#allocation11 + $0x18b]]
    %s194 = sld [smem:[#allocation11 + $0x18c]]
    %s195 = sld [smem:[#allocation11 + $0x18d]]
    %s196 = sld [smem:[#allocation11 + $0x18e]]
    %s197 = sld [smem:[#allocation11 + $0x18f]]
    %s198 = sld [smem:[#allocation11 + $0x200]]
    %s199 = sld [smem:[#allocation11 + $0x201]]
    %s200 = sld [smem:[#allocation11 + $0x202]]
    %s201 = sld [smem:[#allocation11 + $0x203]]
    %s202 = sld [smem:[#allocation11 + $0x204]]
    %s203 = sld [smem:[#allocation11 + $0x205]]
    %s204 = sld [smem:[#allocation11 + $0x206]]
    %s205 = sld [smem:[#allocation11 + $0x207]]
    %s206 = sld [smem:[#allocation11 + $0x208]]
    %s207 = sld [smem:[#allocation11 + $0x209]]
    %s208 = sld [smem:[#allocation11 + $0x20a]]
    %s209 = sld [smem:[#allocation11 + $0x20b]]
    %s210 = sld [smem:[#allocation11 + $0x20c]]
    %s211 = sld [smem:[#allocation11 + $0x20d]]
    %s212 = sld [smem:[#allocation11 + $0x20e]]
    %s213 = sld [smem:[#allocation11 + $0x20f]]
    %s214 = sld [smem:[#allocation11 + $0x280]]
    %s215 = sld [smem:[#allocation11 + $0x281]]
    %s216 = sld [smem:[#allocation11 + $0x282]]
    %s217 = sld [smem:[#allocation11 + $0x283]]
    %s218 = sld [smem:[#allocation11 + $0x284]]
    %s219 = sld [smem:[#allocation11 + $0x285]]
    %s220 = sld [smem:[#allocation11 + $0x286]]
    %s221 = sld [smem:[#allocation11 + $0x287]]
    %s222 = sld [smem:[#allocation11 + $0x288]]
    %s223 = sld [smem:[#allocation11 + $0x289]]
    %s224 = sld [smem:[#allocation11 + $0x28a]]
    %s225 = sld [smem:[#allocation11 + $0x28b]]
    %s226 = sld [smem:[#allocation11 + $0x28c]]
    %s227 = sld [smem:[#allocation11 + $0x28d]]
    %s228 = sld [smem:[#allocation11 + $0x28e]]
    %s229 = sld [smem:[#allocation11 + $0x28f]]
    %s230 = sld [smem:[#allocation11 + $0x300]]
    %s231 = sld [smem:[#allocation11 + $0x301]]
    %s232 = sld [smem:[#allocation11 + $0x302]]
    %s233 = sld [smem:[#allocation11 + $0x303]]
    %s234 = sld [smem:[#allocation11 + $0x304]]
    %s235 = sld [smem:[#allocation11 + $0x305]]
    %s236 = sld [smem:[#allocation11 + $0x306]]
    %s237 = sld [smem:[#allocation11 + $0x307]]
    %s238 = sld [smem:[#allocation11 + $0x308]]
    %s239 = sld [smem:[#allocation11 + $0x309]]
    %s240 = sld [smem:[#allocation11 + $0x30a]]
    %s241 = sld [smem:[#allocation11 + $0x30b]]
    %s242 = sld [smem:[#allocation11 + $0x30c]]
    %s243 = sld [smem:[#allocation11 + $0x30d]]
    %s244 = sld [smem:[#allocation11 + $0x30e]]
    %s245 = sld [smem:[#allocation11 + $0x30f]]
    %s246 = sld [smem:[#allocation11 + $0x380]]
    %s247 = sld [smem:[#allocation11 + $0x381]]
    %s248 = sld [smem:[#allocation11 + $0x382]]
    %s249 = sld [smem:[#allocation11 + $0x383]]
    %s250 = sld [smem:[#allocation11 + $0x384]]
    %s251 = sld [smem:[#allocation11 + $0x385]]
    %s252 = sld [smem:[#allocation11 + $0x386]]
    %s253 = sld [smem:[#allocation11 + $0x387]]
    %s254 = sld [smem:[#allocation11 + $0x388]]
    %s255 = sld [smem:[#allocation11 + $0x389]]
    %s256 = sld [smem:[#allocation11 + $0x38a]]
    %s257 = sld [smem:[#allocation11 + $0x38b]]
    %s258 = sld [smem:[#allocation11 + $0x38c]]
    %s259 = sld [smem:[#allocation11 + $0x38d]]
    %s260 = sld [smem:[#allocation11 + $0x38e]]
    %s261 = sld [smem:[#allocation11 + $0x38f]]
    %s262 = sld [smem:[#allocation11 + $0x400]]
    %s263 = sld [smem:[#allocation11 + $0x401]]
    %s264 = sld [smem:[#allocation11 + $0x402]]
    %s265 = sld [smem:[#allocation11 + $0x403]]
    %s266 = sld [smem:[#allocation11 + $0x404]]
    %s267 = sld [smem:[#allocation11 + $0x405]]
    %s268 = sld [smem:[#allocation11 + $0x406]]
    %s269 = sld [smem:[#allocation11 + $0x407]]
    %s270 = sld [smem:[#allocation11 + $0x408]]
    %s271 = sld [smem:[#allocation11 + $0x409]]
    %s272 = sld [smem:[#allocation11 + $0x40a]]
    %s273 = sld [smem:[#allocation11 + $0x40b]]
    %s274 = sld [smem:[#allocation11 + $0x40c]]
    %s275 = sld [smem:[#allocation11 + $0x40d]]
    %s276 = sld [smem:[#allocation11 + $0x40e]]
    %s277 = sld [smem:[#allocation11 + $0x40f]]
    %s278 = sld [smem:[#allocation11 + $0x480]]
    %s279 = sld [smem:[#allocation11 + $0x481]]
    %s280 = sld [smem:[#allocation11 + $0x482]]
    %s281 = sld [smem:[#allocation11 + $0x483]]
    %s282 = sld [smem:[#allocation11 + $0x484]]
    %s283 = sld [smem:[#allocation11 + $0x485]]
    %s284 = sld [smem:[#allocation11 + $0x486]]
    %s285 = sld [smem:[#allocation11 + $0x487]]
    %s286 = sld [smem:[#allocation11 + $0x488]]
    %s287 = sld [smem:[#allocation11 + $0x489]]
    %s288 = sld [smem:[#allocation11 + $0x48a]]
    %s289 = sld [smem:[#allocation11 + $0x48b]]
    %s290 = sld [smem:[#allocation11 + $0x48c]]
    %s291 = sld [smem:[#allocation11 + $0x48d]]
    %s292 = sld [smem:[#allocation11 + $0x48e]]
    %s293 = sld [smem:[#allocation11 + $0x48f]]
    %s294 = sld [smem:[#allocation11 + $0x500]]
    %s295 = sld [smem:[#allocation11 + $0x501]]
    %s296 = sld [smem:[#allocation11 + $0x502]]
    %s297 = sld [smem:[#allocation11 + $0x503]]
    %s298 = sld [smem:[#allocation11 + $0x504]]
    %s299 = sld [smem:[#allocation11 + $0x505]]
    %s300 = sld [smem:[#allocation11 + $0x506]]
    %s301 = sld [smem:[#allocation11 + $0x507]]
    %s302 = sld [smem:[#allocation11 + $0x508]]
    %s303 = sld [smem:[#allocation11 + $0x509]]
    %s304 = sld [smem:[#allocation11 + $0x50a]]
    %s305 = sld [smem:[#allocation11 + $0x50b]]
    %s306 = sld [smem:[#allocation11 + $0x50c]]
    %s307 = sld [smem:[#allocation11 + $0x50d]]
    %s308 = sld [smem:[#allocation11 + $0x50e]]
    %s309 = sld [smem:[#allocation11 + $0x50f]]
    %s310 = sld [smem:[#allocation11 + $0x580]]
    %s311 = sld [smem:[#allocation11 + $0x581]]
    %s312 = sld [smem:[#allocation11 + $0x582]]
    %s313 = sld [smem:[#allocation11 + $0x583]]
    %s314 = sld [smem:[#allocation11 + $0x584]]
    %s315 = sld [smem:[#allocation11 + $0x585]]
    %s316 = sld [smem:[#allocation11 + $0x586]]
    %s317 = sld [smem:[#allocation11 + $0x587]]
    %s318 = sld [smem:[#allocation11 + $0x588]]
    %s319 = sld [smem:[#allocation11 + $0x589]]
    %s320 = sld [smem:[#allocation11 + $0x58a]]
    %s321 = sld [smem:[#allocation11 + $0x58b]]
    %s322 = sld [smem:[#allocation11 + $0x58c]]
    %s323 = sld [smem:[#allocation11 + $0x58d]]
    %s324 = sld [smem:[#allocation11 + $0x58e]]
    %s325 = sld [smem:[#allocation11 + $0x58f]]
    %s326 = sld [smem:[#allocation11 + $0x600]]
    %s327 = sld [smem:[#allocation11 + $0x601]]
    %s328 = sld [smem:[#allocation11 + $0x602]]
    %s329 = sld [smem:[#allocation11 + $0x603]]
    %s330 = sld [smem:[#allocation11 + $0x604]]
    %s331 = sld [smem:[#allocation11 + $0x605]]
    %s332 = sld [smem:[#allocation11 + $0x606]]
    %s333 = sld [smem:[#allocation11 + $0x607]]
    %s334 = sld [smem:[#allocation11 + $0x608]]
    %s335 = sld [smem:[#allocation11 + $0x609]]
    %s336 = sld [smem:[#allocation11 + $0x60a]]
    %s337 = sld [smem:[#allocation11 + $0x60b]]
    %s338 = sld [smem:[#allocation11 + $0x60c]]
    %s339 = sld [smem:[#allocation11 + $0x60d]]
    %s340 = sld [smem:[#allocation11 + $0x60e]]
    %s341 = sld [smem:[#allocation11 + $0x60f]]
    %s342 = sld [smem:[#allocation11 + $0x680]]
    %s343 = sld [smem:[#allocation11 + $0x681]]
    %s344 = sld [smem:[#allocation11 + $0x682]]
    %s345 = sld [smem:[#allocation11 + $0x683]]
    %s346 = sld [smem:[#allocation11 + $0x684]]
    %s347 = sld [smem:[#allocation11 + $0x685]]
    %s348 = sld [smem:[#allocation11 + $0x686]]
    %s349 = sld [smem:[#allocation11 + $0x687]]
    %s350 = sld [smem:[#allocation11 + $0x688]]
    %s351 = sld [smem:[#allocation11 + $0x689]]
    %s352 = sld [smem:[#allocation11 + $0x68a]]
    %s353 = sld [smem:[#allocation11 + $0x68b]]
    %s354 = sld [smem:[#allocation11 + $0x68c]]
    %s355 = sld [smem:[#allocation11 + $0x68d]]
    %s356 = sld [smem:[#allocation11 + $0x68e]]
    %s357 = sld [smem:[#allocation11 + $0x68f]]
    %s358 = sld [smem:[#allocation11 + $0x700]]
    %s359 = sld [smem:[#allocation11 + $0x701]]
    %s360 = sld [smem:[#allocation11 + $0x702]]
    %s361 = sld [smem:[#allocation11 + $0x703]]
    %s362 = sld [smem:[#allocation11 + $0x704]]
    %s363 = sld [smem:[#allocation11 + $0x705]]
    %s364 = sld [smem:[#allocation11 + $0x706]]
    %s365 = sld [smem:[#allocation11 + $0x707]]
    %s366 = sld [smem:[#allocation11 + $0x708]]
    %s367 = sld [smem:[#allocation11 + $0x709]]
    %s368 = sld [smem:[#allocation11 + $0x70a]]
    %s369 = sld [smem:[#allocation11 + $0x70b]]
    %s370 = sld [smem:[#allocation11 + $0x70c]]
    %s371 = sld [smem:[#allocation11 + $0x70d]]
    %s372 = sld [smem:[#allocation11 + $0x70e]]
    %s373 = sld [smem:[#allocation11 + $0x70f]]
    %s374 = sld [smem:[#allocation11 + $0x780]]
    %s375 = sld [smem:[#allocation11 + $0x781]]
    %s376 = sld [smem:[#allocation11 + $0x782]]
    %s377 = sld [smem:[#allocation11 + $0x783]]
    %s378 = sld [smem:[#allocation11 + $0x784]]
    %s379 = sld [smem:[#allocation11 + $0x785]]
    %s380 = sld [smem:[#allocation11 + $0x786]]
    %s381 = sld [smem:[#allocation11 + $0x787]]
    %s382 = sld [smem:[#allocation11 + $0x788]]
    %s383 = sld [smem:[#allocation11 + $0x789]]
    %s384 = sld [smem:[#allocation11 + $0x78a]]
    %s385 = sld [smem:[#allocation11 + $0x78b]]
    %s386 = sld [smem:[#allocation11 + $0x78c]]
    %s387 = sld [smem:[#allocation11 + $0x78d]]
    %s388 = sld [smem:[#allocation11 + $0x78e]]
    %s389 = sld [smem:[#allocation11 + $0x78f]]
    %s390 = sld [smem:[#allocation12]]
    %s391 = sld [smem:[#allocation12 + $0x1]]
    %s392 = sld [smem:[#allocation12 + $0x2]]
    %s393 = sld [smem:[#allocation12 + $0x3]]
    %s394 = sld [smem:[#allocation12 + $0x4]]
    %s395 = sld [smem:[#allocation12 + $0x5]]
    %s396 = sld [smem:[#allocation12 + $0x6]]
    %s397 = sld [smem:[#allocation12 + $0x7]]
    %s398 = sld [smem:[#allocation12 + $0x8]]
    %s399 = sld [smem:[#allocation12 + $0x9]]
    %s400 = sld [smem:[#allocation12 + $0xa]]
    %s401 = sld [smem:[#allocation12 + $0xb]]
    %s402 = sld [smem:[#allocation12 + $0xc]]
    %s403 = sld [smem:[#allocation12 + $0xd]]
    %s404 = sld [smem:[#allocation12 + $0xe]]
    %s405 = sld [smem:[#allocation12 + $0xf]]
    %s406 = sld [smem:[#allocation13]]
    %s407 = sld [smem:[#allocation13 + $0x1]]
    %s408 = sld [smem:[#allocation13 + $0x2]]
    %s409 = sld [smem:[#allocation13 + $0x3]]
    %s410 = sld [smem:[#allocation13 + $0x4]]
    %s411 = sld [smem:[#allocation13 + $0x5]]
    %s412 = sld [smem:[#allocation13 + $0x6]]
    %s413 = sld [smem:[#allocation13 + $0x7]]
    %s414 = sld [smem:[#allocation13 + $0x8]]
    %s415 = sld [smem:[#allocation13 + $0x9]]
    %s416 = sld [smem:[#allocation13 + $0xa]]
    %s417 = sld [smem:[#allocation13 + $0xb]]
    %s418 = sld [smem:[#allocation13 + $0xc]]
    %s419 = sld [smem:[#allocation13 + $0xd]]
    %s420 = sld [smem:[#allocation13 + $0xe]]
    %s421 = sld [smem:[#allocation13 + $0xf]]
    %s422 = sld [smem:[#allocation2]]
    %v423 = vld [vmem:[#allocation3] sm:$0xff]
    %v424 = vld [vmem:[#allocation3 + $0x8] sm:$0xff]
    %v425 = vstv %s102
    %v426 = vmul.f32 %v423, %v425
    %v427 = vmul.f32 %v424, %v425
    %v428 = vstv %s118
    %v429 = vadd.f32 %v426, %v428
    %v430 = vadd.f32 %v427, %v428
    %v431 = vmax.f32 %v429, 0.0
    %v432 = vmax.f32 %v430, 0.0
    %v433 = vstv %s103
    %v434 = vmul.f32 %v423, %v433
    %v435 = vmul.f32 %v424, %v433
    %v436 = vstv %s119
    %v437 = vadd.f32 %v434, %v436
    %v438 = vadd.f32 %v435, %v436
    %v439 = vmax.f32 %v437, 0.0
    %v440 = vmax.f32 %v438, 0.0
    %v441 = vstv %s104
    %v442 = vmul.f32 %v423, %v441
    %v443 = vmul.f32 %v424, %v441
    %v444 = vstv %s120
    %v445 = vadd.f32 %v442, %v444
    %v446 = vadd.f32 %v443, %v444
    %v447 = vmax.f32 %v445, 0.0
    %v448 = vmax.f32 %v446, 0.0
    %v449 = vstv %s105
    %v450 = vmul.f32 %v423, %v449
    %v451 = vmul.f32 %v424, %v449
    %v452 = vstv %s121
    %v453 = vadd.f32 %v450, %v452
    %v454 = vadd.f32 %v451, %v452
    %v455 = vmax.f32 %v453, 0.0
    %v456 = vmax.f32 %v454, 0.0
    %v457 = vstv %s106
    %v458 = vmul.f32 %v423, %v457
    %v459 = vmul.f32 %v424, %v457
    %v460 = vstv %s122
    %v461 = vadd.f32 %v458, %v460
    %v462 = vadd.f32 %v459, %v460
    %v463 = vmax.f32 %v461, 0.0
    %v464 = vmax.f32 %v462, 0.0
    %v465 = vstv %s107
    %v466 = vmul.f32 %v423, %v465
    %v467 = vmul.f32 %v424, %v465
    %v468 = vstv %s123
    %v469 = vadd.f32 %v466, %v468
    %v470 = vadd.f32 %v467, %v468
    %v471 = vmax.f32 %v469, 0.0
    %v472 = vmax.f32 %v470, 0.0
    %v473 = vstv %s108
    %v474 = vmul.f32 %v423, %v473
    %v475 = vmul.f32 %v424, %v473
    %v476 = vstv %s124
    %v477 = vadd.f32 %v474, %v476
    %v478 = vadd.f32 %v475, %v476
    %v479 = vmax.f32 %v477, 0.0
    %v480 = vmax.f32 %v478, 0.0
    %v481 = vstv %s109
    %v482 = vmul.f32 %v423, %v481
    %v483 = vmul.f32 %v424, %v481
    %v484 = vstv %s125
    %v485 = vadd.f32 %v482, %v484
    %v486 = vadd.f32 %v483, %v484
    %v487 = vmax.f32 %v485, 0.0
    %v488 = vmax.f32 %v486, 0.0
    %v489 = vstv %s110
    %v490 = vmul.f32 %v423, %v489
    %v491 = vmul.f32 %v424, %v489
    %v492 = vstv %s126
    %v493 = vadd.f32 %v490, %v492
    %v494 = vadd.f32 %v491, %v492
    %v495 = vmax.f32 %v493, 0.0
    %v496 = vmax.f32 %v494, 0.0
    %v497 = vstv %s111
    %v498 = vmul.f32 %v423, %v497
    %v499 = vmul.f32 %v424, %v497
    %v500 = vstv %s127
    %v501 = vadd.f32 %v498, %v500
    %v502 = vadd.f32 %v499, %v500
    %v503 = vmax.f32 %v501, 0.0
    %v504 = vmax.f32 %v502, 0.0
    %v505 = vstv %s112
    %v506 = vmul.f32 %v423, %v505
    %v507 = vmul.f32 %v424, %v505
    %v508 = vstv %s128
    %v509 = vadd.f32 %v506, %v508
    %v510 = vadd.f32 %v507, %v508
    %v511 = vmax.f32 %v509, 0.0
    %v512 = vmax.f32 %v510, 0.0
    %v513 = vstv %s113
    %v514 = vmul.f32 %v423, %v513
    %v515 = vmul.f32 %v424, %v513
    %v516 = vstv %s129
    %v517 = vadd.f32 %v514, %v516
    %v518 = vadd.f32 %v515, %v516
    %v519 = vmax.f32 %v517, 0.0
    %v520 = vmax.f32 %v518, 0.0
    %v521 = vstv %s114
    %v522 = vmul.f32 %v423, %v521
    %v523 = vmul.f32 %v424, %v521
    %v524 = vstv %s130
    %v525 = vadd.f32 %v522, %v524
    %v526 = vadd.f32 %v523, %v524
    %v527 = vmax.f32 %v525, 0.0
    %v528 = vmax.f32 %v526, 0.0
    %v529 = vstv %s115
    %v530 = vmul.f32 %v423, %v529
    %v531 = vmul.f32 %v424, %v529
    %v532 = vstv %s131
    %v533 = vadd.f32 %v530, %v532
    %v534 = vadd.f32 %v531, %v532
    %v535 = vmax.f32 %v533, 0.0
    %v536 = vmax.f32 %v534, 0.0
    %v537 = vstv %s116
    %v538 = vmul.f32 %v423, %v537
    %v539 = vmul.f32 %v424, %v537
    %v540 = vstv %s132
    %v541 = vadd.f32 %v538, %v540
    %v542 = vadd.f32 %v539, %v540
    %v543 = vmax.f32 %v541, 0.0
    %v544 = vmax.f32 %v542, 0.0
    %v545 = vstv %s117
    %v546 = vmul.f32 %v423, %v545
    %v547 = vmul.f32 %v424, %v545
    %v548 = vstv %s133
    %v549 = vadd.f32 %v546, %v548
    %v550 = vadd.f32 %v547, %v548
    %v551 = vmax.f32 %v549, 0.0
    %v552 = vmax.f32 %v550, 0.0
    %v553 = vstv %s134
    %v554 = vmul.f32 %v431, %v553
    %v555 = vmul.f32 %v432, %v553
    %v556 = vstv %s150
    %v557 = vmul.f32 %v439, %v556
    %v558 = vmul.f32 %v440, %v556
    %v559 = vadd.f32 %v554, %v557
    %v560 = vadd.f32 %v555, %v558
    %v561 = vstv %s166
    %v562 = vmul.f32 %v447, %v561
    %v563 = vmul.f32 %v448, %v561
    %v564 = vstv %s182
    %v565 = vmul.f32 %v455, %v564
    %v566 = vmul.f32 %v456, %v564
    %v567 = vadd.f32 %v562, %v565
    %v568 = vadd.f32 %v563, %v566
    %v569 = vadd.f32 %v559, %v567
    %v570 = vadd.f32 %v560, %v568
    %v571 = vstv %s198
    %v572 = vmul.f32 %v463, %v571
    %v573 = vmul.f32 %v464, %v571
    %v574 = vstv %s214
    %v575 = vmul.f32 %v471, %v574
    %v576 = vmul.f32 %v472, %v574
    %v577 = vadd.f32 %v572, %v575
    %v578 = vadd.f32 %v573, %v576
    %v579 = vstv %s230
    %v580 = vmul.f32 %v479, %v579
    %v581 = vmul.f32 %v480, %v579
    %v582 = vstv %s246
    %v583 = vmul.f32 %v487, %v582
    %v584 = vmul.f32 %v488, %v582
    %v585 = vadd.f32 %v580, %v583
    %v586 = vadd.f32 %v581, %v584
    %v587 = vadd.f32 %v577, %v585
    %v588 = vadd.f32 %v578, %v586
    %v589 = vadd.f32 %v569, %v587
    %v590 = vadd.f32 %v570, %v588
    %v591 = vstv %s262
    %v592 = vmul.f32 %v495, %v591
    %v593 = vmul.f32 %v496, %v591
    %v594 = vstv %s278
    %v595 = vmul.f32 %v503, %v594
    %v596 = vmul.f32 %v504, %v594
    %v597 = vadd.f32 %v592, %v595
    %v598 = vadd.f32 %v593, %v596
    %v599 = vstv %s294
    %v600 = vmul.f32 %v511, %v599
    %v601 = vmul.f32 %v512, %v599
    %v602 = vstv %s310
    %v603 = vmul.f32 %v519, %v602
    %v604 = vmul.f32 %v520, %v602
    %v605 = vadd.f32 %v600, %v603
    %v606 = vadd.f32 %v601, %v604
    %v607 = vadd.f32 %v597, %v605
    %v608 = vadd.f32 %v598, %v606
    %v609 = vstv %s326
    %v610 = vmul.f32 %v527, %v609
    %v611 = vmul.f32 %v528, %v609
    %v612 = vstv %s342
    %v613 = vmul.f32 %v535, %v612
    %v614 = vmul.f32 %v536, %v612
    %v615 = vadd.f32 %v610, %v613
    %v616 = vadd.f32 %v611, %v614
    %v617 = vstv %s358
    %v618 = vmul.f32 %v543, %v617
    %v619 = vmul.f32 %v544, %v617
    %v620 = vstv %s374
    %v621 = vmul.f32 %v551, %v620
    %v622 = vmul.f32 %v552, %v620
    %v623 = vadd.f32 %v618, %v621
    %v624 = vadd.f32 %v619, %v622
    %v625 = vadd.f32 %v615, %v623
    %v626 = vadd.f32 %v616, %v624
    %v627 = vadd.f32 %v607, %v625
    %v628 = vadd.f32 %v608, %v626
    %v629 = vadd.f32 %v589, %v627
    %v630 = vadd.f32 %v590, %v628
    %v631 = vstv %s390
    %v632 = vadd.f32 %v629, %v631
    %v633 = vadd.f32 %v630, %v631
    %v634 = vmax.f32 %v632, 0.0
    %v635 = vmax.f32 %v633, 0.0
    %v636 = vstv %s406
    %v637 = vmul.f32 %v634, %v636
    %v638 = vmul.f32 %v635, %v636
    %v639 = vstv %s135
    %v640 = vmul.f32 %v431, %v639
    %v641 = vmul.f32 %v432, %v639
    %v642 = vstv %s151
    %v643 = vmul.f32 %v439, %v642
    %v644 = vmul.f32 %v440, %v642
    %v645 = vadd.f32 %v640, %v643
    %v646 = vadd.f32 %v641, %v644
    %v647 = vstv %s167
    %v648 = vmul.f32 %v447, %v647
    %v649 = vmul.f32 %v448, %v647
    %v650 = vstv %s183
    %v651 = vmul.f32 %v455, %v650
    %v652 = vmul.f32 %v456, %v650
    %v653 = vadd.f32 %v648, %v651
    %v654 = vadd.f32 %v649, %v652
    %v655 = vadd.f32 %v645, %v653
    %v656 = vadd.f32 %v646, %v654
    %v657 = vstv %s199
    %v658 = vmul.f32 %v463, %v657
    %v659 = vmul.f32 %v464, %v657
    %v660 = vstv %s215
    %v661 = vmul.f32 %v471, %v660
    %v662 = vmul.f32 %v472, %v660
    %v663 = vadd.f32 %v658, %v661
    %v664 = vadd.f32 %v659, %v662
    %v665 = vstv %s231
    %v666 = vmul.f32 %v479, %v665
    %v667 = vmul.f32 %v480, %v665
    %v668 = vstv %s247
    %v669 = vmul.f32 %v487, %v668
    %v670 = vmul.f32 %v488, %v668
    %v671 = vadd.f32 %v666, %v669
    %v672 = vadd.f32 %v667, %v670
    %v673 = vadd.f32 %v663, %v671
    %v674 = vadd.f32 %v664, %v672
    %v675 = vadd.f32 %v655, %v673
    %v676 = vadd.f32 %v656, %v674
    %v677 = vstv %s263
    %v678 = vmul.f32 %v495, %v677
    %v679 = vmul.f32 %v496, %v677
    %v680 = vstv %s279
    %v681 = vmul.f32 %v503, %v680
    %v682 = vmul.f32 %v504, %v680
    %v683 = vadd.f32 %v678, %v681
    %v684 = vadd.f32 %v679, %v682
    %v685 = vstv %s295
    %v686 = vmul.f32 %v511, %v685
    %v687 = vmul.f32 %v512, %v685
    %v688 = vstv %s311
    %v689 = vmul.f32 %v519, %v688
    %v690 = vmul.f32 %v520, %v688
    %v691 = vadd.f32 %v686, %v689
    %v692 = vadd.f32 %v687, %v690
    %v693 = vadd.f32 %v683, %v691
    %v694 = vadd.f32 %v684, %v692
    %v695 = vstv %s327
    %v696 = vmul.f32 %v527, %v695
    %v697 = vmul.f32 %v528, %v695
    %v698 = vstv %s343
    %v699 = vmul.f32 %v535, %v698
    %v700 = vmul.f32 %v536, %v698
    %v701 = vadd.f32 %v696, %v699
    %v702 = vadd.f32 %v697, %v700
    %v703 = vstv %s359
    %v704 = vmul.f32 %v543, %v703
    %v705 = vmul.f32 %v544, %v703
    %v706 = vstv %s375
    %v707 = vmul.f32 %v551, %v706
    %v708 = vmul.f32 %v552, %v706
    %v709 = vadd.f32 %v704, %v707
    %v710 = vadd.f32 %v705, %v708
    %v711 = vadd.f32 %v701, %v709
    %v712 = vadd.f32 %v702, %v710
    %v713 = vadd.f32 %v693, %v711
    %v714 = vadd.f32 %v694, %v712
    %v715 = vadd.f32 %v675, %v713
    %v716 = vadd.f32 %v676, %v714
    %v717 = vstv %s391
    %v718 = vadd.f32 %v715, %v717
    %v719 = vadd.f32 %v716, %v717
    %v720 = vmax.f32 %v718, 0.0
    %v721 = vmax.f32 %v719, 0.0
    %v722 = vstv %s407
    %v723 = vmul.f32 %v720, %v722
    %v724 = vmul.f32 %v721, %v722
    %v725 = vadd.f32 %v637, %v723
    %v726 = vadd.f32 %v638, %v724
    %v727 = vstv %s136
    %v728 = vmul.f32 %v431, %v727
    %v729 = vmul.f32 %v432, %v727
    %v730 = vstv %s152
    %v731 = vmul.f32 %v439, %v730
    %v732 = vmul.f32 %v440, %v730
    %v733 = vadd.f32 %v728, %v731
    %v734 = vadd.f32 %v729, %v732
    %v735 = vstv %s168
    %v736 = vmul.f32 %v447, %v735
    %v737 = vmul.f32 %v448, %v735
    %v738 = vstv %s184
    %v739 = vmul.f32 %v455, %v738
    %v740 = vmul.f32 %v456, %v738
    %v741 = vadd.f32 %v736, %v739
    %v742 = vadd.f32 %v737, %v740
    %v743 = vadd.f32 %v733, %v741
    %v744 = vadd.f32 %v734, %v742
    %v745 = vstv %s200
    %v746 = vmul.f32 %v463, %v745
    %v747 = vmul.f32 %v464, %v745
    %v748 = vstv %s216
    %v749 = vmul.f32 %v471, %v748
    %v750 = vmul.f32 %v472, %v748
    %v751 = vadd.f32 %v746, %v749
    %v752 = vadd.f32 %v747, %v750
    %v753 = vstv %s232
    %v754 = vmul.f32 %v479, %v753
    %v755 = vmul.f32 %v480, %v753
    %v756 = vstv %s248
    %v757 = vmul.f32 %v487, %v756
    %v758 = vmul.f32 %v488, %v756
    %v759 = vadd.f32 %v754, %v757
    %v760 = vadd.f32 %v755, %v758
    %v761 = vadd.f32 %v751, %v759
    %v762 = vadd.f32 %v752, %v760
    %v763 = vadd.f32 %v743, %v761
    %v764 = vadd.f32 %v744, %v762
    %v765 = vstv %s264
    %v766 = vmul.f32 %v495, %v765
    %v767 = vmul.f32 %v496, %v765
    %v768 = vstv %s280
    %v769 = vmul.f32 %v503, %v768
    %v770 = vmul.f32 %v504, %v768
    %v771 = vadd.f32 %v766, %v769
    %v772 = vadd.f32 %v767, %v770
    %v773 = vstv %s296
    %v774 = vmul.f32 %v511, %v773
    %v775 = vmul.f32 %v512, %v773
    %v776 = vstv %s312
    %v777 = vmul.f32 %v519, %v776
    %v778 = vmul.f32 %v520, %v776
    %v779 = vadd.f32 %v774, %v777
    %v780 = vadd.f32 %v775, %v778
    %v781 = vadd.f32 %v771, %v779
    %v782 = vadd.f32 %v772, %v780
    %v783 = vstv %s328
    %v784 = vmul.f32 %v527, %v783
    %v785 = vmul.f32 %v528, %v783
    %v786 = vstv %s344
    %v787 = vmul.f32 %v535, %v786
    %v788 = vmul.f32 %v536, %v786
    %v789 = vadd.f32 %v784, %v787
    %v790 = vadd.f32 %v785, %v788
    %v791 = vstv %s360
    %v792 = vmul.f32 %v543, %v791
    %v793 = vmul.f32 %v544, %v791
    %v794 = vstv %s376
    %v795 = vmul.f32 %v551, %v794
    %v796 = vmul.f32 %v552, %v794
    %v797 = vadd.f32 %v792, %v795
    %v798 = vadd.f32 %v793, %v796
    %v799 = vadd.f32 %v789, %v797
    %v800 = vadd.f32 %v790, %v798
    %v801 = vadd.f32 %v781, %v799
    %v802 = vadd.f32 %v782, %v800
    %v803 = vadd.f32 %v763, %v801
    %v804 = vadd.f32 %v764, %v802
    %v805 = vstv %s392
    %v806 = vadd.f32 %v803, %v805
    %v807 = vadd.f32 %v804, %v805
    %v808 = vmax.f32 %v806, 0.0
    %v809 = vmax.f32 %v807, 0.0
    %v810 = vstv %s408
    %v811 = vmul.f32 %v808, %v810
    %v812 = vmul.f32 %v809, %v810
    %v813 = vadd.f32 %v725, %v811
    %v814 = vadd.f32 %v726, %v812
    %v815 = vstv %s137
    %v816 = vmul.f32 %v431, %v815
    %v817 = vmul.f32 %v432, %v815
    %v818 = vstv %s153
    %v819 = vmul.f32 %v439, %v818
    %v820 = vmul.f32 %v440, %v818
    %v821 = vadd.f32 %v816, %v819
    %v822 = vadd.f32 %v817, %v820
    %v823 = vstv %s169
    %v824 = vmul.f32 %v447, %v823
    %v825 = vmul.f32 %v448, %v823
    %v826 = vstv %s185
    %v827 = vmul.f32 %v455, %v826
    %v828 = vmul.f32 %v456, %v826
    %v829 = vadd.f32 %v824, %v827
    %v830 = vadd.f32 %v825, %v828
    %v831 = vadd.f32 %v821, %v829
    %v832 = vadd.f32 %v822, %v830
    %v833 = vstv %s201
    %v834 = vmul.f32 %v463, %v833
    %v835 = vmul.f32 %v464, %v833
    %v836 = vstv %s217
    %v837 = vmul.f32 %v471, %v836
    %v838 = vmul.f32 %v472, %v836
    %v839 = vadd.f32 %v834, %v837
    %v840 = vadd.f32 %v835, %v838
    %v841 = vstv %s233
    %v842 = vmul.f32 %v479, %v841
    %v843 = vmul.f32 %v480, %v841
    %v844 = vstv %s249
    %v845 = vmul.f32 %v487, %v844
    %v846 = vmul.f32 %v488, %v844
    %v847 = vadd.f32 %v842, %v845
    %v848 = vadd.f32 %v843, %v846
    %v849 = vadd.f32 %v839, %v847
    %v850 = vadd.f32 %v840, %v848
    %v851 = vadd.f32 %v831, %v849
    %v852 = vadd.f32 %v832, %v850
    %v853 = vstv %s265
    %v854 = vmul.f32 %v495, %v853
    %v855 = vmul.f32 %v496, %v853
    %v856 = vstv %s281
    %v857 = vmul.f32 %v503, %v856
    %v858 = vmul.f32 %v504, %v856
    %v859 = vadd.f32 %v854, %v857
    %v860 = vadd.f32 %v855, %v858
    %v861 = vstv %s297
    %v862 = vmul.f32 %v511, %v861
    %v863 = vmul.f32 %v512, %v861
    %v864 = vstv %s313
    %v865 = vmul.f32 %v519, %v864
    %v866 = vmul.f32 %v520, %v864
    %v867 = vadd.f32 %v862, %v865
    %v868 = vadd.f32 %v863, %v866
    %v869 = vadd.f32 %v859, %v867
    %v870 = vadd.f32 %v860, %v868
    %v871 = vstv %s329
    %v872 = vmul.f32 %v527, %v871
    %v873 = vmul.f32 %v528, %v871
    %v874 = vstv %s345
    %v875 = vmul.f32 %v535, %v874
    %v876 = vmul.f32 %v536, %v874
    %v877 = vadd.f32 %v872, %v875
    %v878 = vadd.f32 %v873, %v876
    %v879 = vstv %s361
    %v880 = vmul.f32 %v543, %v879
    %v881 = vmul.f32 %v544, %v879
    %v882 = vstv %s377
    %v883 = vmul.f32 %v551, %v882
    %v884 = vmul.f32 %v552, %v882
    %v885 = vadd.f32 %v880, %v883
    %v886 = vadd.f32 %v881, %v884
    %v887 = vadd.f32 %v877, %v885
    %v888 = vadd.f32 %v878, %v886
    %v889 = vadd.f32 %v869, %v887
    %v890 = vadd.f32 %v870, %v888
    %v891 = vadd.f32 %v851, %v889
    %v892 = vadd.f32 %v852, %v890
    %v893 = vstv %s393
    %v894 = vadd.f32 %v891, %v893
    %v895 = vadd.f32 %v892, %v893
    %v896 = vmax.f32 %v894, 0.0
    %v897 = vmax.f32 %v895, 0.0
    %v898 = vstv %s409
    %v899 = vmul.f32 %v896, %v898
    %v900 = vmul.f32 %v897, %v898
    %v901 = vadd.f32 %v813, %v899
    %v902 = vadd.f32 %v814, %v900
    %v903 = vstv %s138
    %v904 = vmul.f32 %v431, %v903
    %v905 = vmul.f32 %v432, %v903
    %v906 = vstv %s154
    %v907 = vmul.f32 %v439, %v906
    %v908 = vmul.f32 %v440, %v906
    %v909 = vadd.f32 %v904, %v907
    %v910 = vadd.f32 %v905, %v908
    %v911 = vstv %s170
    %v912 = vmul.f32 %v447, %v911
    %v913 = vmul.f32 %v448, %v911
    %v914 = vstv %s186
    %v915 = vmul.f32 %v455, %v914
    %v916 = vmul.f32 %v456, %v914
    %v917 = vadd.f32 %v912, %v915
    %v918 = vadd.f32 %v913, %v916
    %v919 = vadd.f32 %v909, %v917
    %v920 = vadd.f32 %v910, %v918
    %v921 = vstv %s202
    %v922 = vmul.f32 %v463, %v921
    %v923 = vmul.f32 %v464, %v921
    %v924 = vstv %s218
    %v925 = vmul.f32 %v471, %v924
    %v926 = vmul.f32 %v472, %v924
    %v927 = vadd.f32 %v922, %v925
    %v928 = vadd.f32 %v923, %v926
    %v929 = vstv %s234
    %v930 = vmul.f32 %v479, %v929
    %v931 = vmul.f32 %v480, %v929
    %v932 = vstv %s250
    %v933 = vmul.f32 %v487, %v932
    %v934 = vmul.f32 %v488, %v932
    %v935 = vadd.f32 %v930, %v933
    %v936 = vadd.f32 %v931, %v934
    %v937 = vadd.f32 %v927, %v935
    %v938 = vadd.f32 %v928, %v936
    %v939 = vadd.f32 %v919, %v937
    %v940 = vadd.f32 %v920, %v938
    %v941 = vstv %s266
    %v942 = vmul.f32 %v495, %v941
    %v943 = vmul.f32 %v496, %v941
    %v944 = vstv %s282
    %v945 = vmul.f32 %v503, %v944
    %v946 = vmul.f32 %v504, %v944
    %v947 = vadd.f32 %v942, %v945
    %v948 = vadd.f32 %v943, %v946
    %v949 = vstv %s298
    %v950 = vmul.f32 %v511, %v949
    %v951 = vmul.f32 %v512, %v949
    %v952 = vstv %s314
    %v953 = vmul.f32 %v519, %v952
    %v954 = vmul.f32 %v520, %v952
    %v955 = vadd.f32 %v950, %v953
    %v956 = vadd.f32 %v951, %v954
    %v957 = vadd.f32 %v947, %v955
    %v958 = vadd.f32 %v948, %v956
    %v959 = vstv %s330
    %v960 = vmul.f32 %v527, %v959
    %v961 = vmul.f32 %v528, %v959
    %v962 = vstv %s346
    %v963 = vmul.f32 %v535, %v962
    %v964 = vmul.f32 %v536, %v962
    %v965 = vadd.f32 %v960, %v963
    %v966 = vadd.f32 %v961, %v964
    %v967 = vstv %s362
    %v968 = vmul.f32 %v543, %v967
    %v969 = vmul.f32 %v544, %v967
    %v970 = vstv %s378
    %v971 = vmul.f32 %v551, %v970
    %v972 = vmul.f32 %v552, %v970
    %v973 = vadd.f32 %v968, %v971
    %v974 = vadd.f32 %v969, %v972
    %v975 = vadd.f32 %v965, %v973
    %v976 = vadd.f32 %v966, %v974
    %v977 = vadd.f32 %v957, %v975
    %v978 = vadd.f32 %v958, %v976
    %v979 = vadd.f32 %v939, %v977
    %v980 = vadd.f32 %v940, %v978
    %v981 = vstv %s394
    %v982 = vadd.f32 %v979, %v981
    %v983 = vadd.f32 %v980, %v981
    %v984 = vmax.f32 %v982, 0.0
    %v985 = vmax.f32 %v983, 0.0
    %v986 = vstv %s410
    %v987 = vmul.f32 %v984, %v986
    %v988 = vmul.f32 %v985, %v986
    %v989 = vadd.f32 %v901, %v987
    %v990 = vadd.f32 %v902, %v988
    %v991 = vstv %s139
    %v992 = vmul.f32 %v431, %v991
    %v993 = vmul.f32 %v432, %v991
    %v994 = vstv %s155
    %v995 = vmul.f32 %v439, %v994
    %v996 = vmul.f32 %v440, %v994
    %v997 = vadd.f32 %v992, %v995
    %v998 = vadd.f32 %v993, %v996
    %v999 = vstv %s171
    %v1000 = vmul.f32 %v447, %v999
    %v1001 = vmul.f32 %v448, %v999
    %v1002 = vstv %s187
    %v1003 = vmul.f32 %v455, %v1002
    %v1004 = vmul.f32 %v456, %v1002
    %v1005 = vadd.f32 %v1000, %v1003
    %v1006 = vadd.f32 %v1001, %v1004
    %v1007 = vadd.f32 %v997, %v1005
    %v1008 = vadd.f32 %v998, %v1006
    %v1009 = vstv %s203
    %v1010 = vmul.f32 %v463, %v1009
    %v1011 = vmul.f32 %v464, %v1009
    %v1012 = vstv %s219
    %v1013 = vmul.f32 %v471, %v1012
    %v1014 = vmul.f32 %v472, %v1012
    %v1015 = vadd.f32 %v1010, %v1013
    %v1016 = vadd.f32 %v1011, %v1014
    %v1017 = vstv %s235
    %v1018 = vmul.f32 %v479, %v1017
    %v1019 = vmul.f32 %v480, %v1017
    %v1020 = vstv %s251
    %v1021 = vmul.f32 %v487, %v1020
    %v1022 = vmul.f32 %v488, %v1020
    %v1023 = vadd.f32 %v1018, %v1021
    %v1024 = vadd.f32 %v1019, %v1022
    %v1025 = vadd.f32 %v1015, %v1023
    %v1026 = vadd.f32 %v1016, %v1024
    %v1027 = vadd.f32 %v1007, %v1025
    %v1028 = vadd.f32 %v1008, %v1026
    %v1029 = vstv %s267
    %v1030 = vmul.f32 %v495, %v1029
    %v1031 = vmul.f32 %v496, %v1029
    %v1032 = vstv %s283
    %v1033 = vmul.f32 %v503, %v1032
    %v1034 = vmul.f32 %v504, %v1032
    %v1035 = vadd.f32 %v1030, %v1033
    %v1036 = vadd.f32 %v1031, %v1034
    %v1037 = vstv %s299
    %v1038 = vmul.f32 %v511, %v1037
    %v1039 = vmul.f32 %v512, %v1037
    %v1040 = vstv %s315
    %v1041 = vmul.f32 %v519, %v1040
    %v1042 = vmul.f32 %v520, %v1040
    %v1043 = vadd.f32 %v1038, %v1041
    %v1044 = vadd.f32 %v1039, %v1042
    %v1045 = vadd.f32 %v1035, %v1043
    %v1046 = vadd.f32 %v1036, %v1044
    %v1047 = vstv %s331
    %v1048 = vmul.f32 %v527, %v1047
    %v1049 = vmul.f32 %v528, %v1047
    %v1050 = vstv %s347
    %v1051 = vmul.f32 %v535, %v1050
    %v1052 = vmul.f32 %v536, %v1050
    %v1053 = vadd.f32 %v1048, %v1051
    %v1054 = vadd.f32 %v1049, %v1052
    %v1055 = vstv %s363
    %v1056 = vmul.f32 %v543, %v1055
    %v1057 = vmul.f32 %v544, %v1055
    %v1058 = vstv %s379
    %v1059 = vmul.f32 %v551, %v1058
    %v1060 = vmul.f32 %v552, %v1058
    %v1061 = vadd.f32 %v1056, %v1059
    %v1062 = vadd.f32 %v1057, %v1060
    %v1063 = vadd.f32 %v1053, %v1061
    %v1064 = vadd.f32 %v1054, %v1062
    %v1065 = vadd.f32 %v1045, %v1063
    %v1066 = vadd.f32 %v1046, %v1064
    %v1067 = vadd.f32 %v1027, %v1065
    %v1068 = vadd.f32 %v1028, %v1066
    %v1069 = vstv %s395
    %v1070 = vadd.f32 %v1067, %v1069
    %v1071 = vadd.f32 %v1068, %v1069
    %v1072 = vmax.f32 %v1070, 0.0
    %v1073 = vmax.f32 %v1071, 0.0
    %v1074 = vstv %s411
    %v1075 = vmul.f32 %v1072, %v1074
    %v1076 = vmul.f32 %v1073, %v1074
    %v1077 = vadd.f32 %v989, %v1075
    %v1078 = vadd.f32 %v990, %v1076
    %v1079 = vstv %s140
    %v1080 = vmul.f32 %v431, %v1079
    %v1081 = vmul.f32 %v432, %v1079
    %v1082 = vstv %s156
    %v1083 = vmul.f32 %v439, %v1082
    %v1084 = vmul.f32 %v440, %v1082
    %v1085 = vadd.f32 %v1080, %v1083
    %v1086 = vadd.f32 %v1081, %v1084
    %v1087 = vstv %s172
    %v1088 = vmul.f32 %v447, %v1087
    %v1089 = vmul.f32 %v448, %v1087
    %v1090 = vstv %s188
    %v1091 = vmul.f32 %v455, %v1090
    %v1092 = vmul.f32 %v456, %v1090
    %v1093 = vadd.f32 %v1088, %v1091
    %v1094 = vadd.f32 %v1089, %v1092
    %v1095 = vadd.f32 %v1085, %v1093
    %v1096 = vadd.f32 %v1086, %v1094
    %v1097 = vstv %s204
    %v1098 = vmul.f32 %v463, %v1097
    %v1099 = vmul.f32 %v464, %v1097
    %v1100 = vstv %s220
    %v1101 = vmul.f32 %v471, %v1100
    %v1102 = vmul.f32 %v472, %v1100
    %v1103 = vadd.f32 %v1098, %v1101
    %v1104 = vadd.f32 %v1099, %v1102
    %v1105 = vstv %s236
    %v1106 = vmul.f32 %v479, %v1105
    %v1107 = vmul.f32 %v480, %v1105
    %v1108 = vstv %s252
    %v1109 = vmul.f32 %v487, %v1108
    %v1110 = vmul.f32 %v488, %v1108
    %v1111 = vadd.f32 %v1106, %v1109
    %v1112 = vadd.f32 %v1107, %v1110
    %v1113 = vadd.f32 %v1103, %v1111
    %v1114 = vadd.f32 %v1104, %v1112
    %v1115 = vadd.f32 %v1095, %v1113
    %v1116 = vadd.f32 %v1096, %v1114
    %v1117 = vstv %s268
    %v1118 = vmul.f32 %v495, %v1117
    %v1119 = vmul.f32 %v496, %v1117
    %v1120 = vstv %s284
    %v1121 = vmul.f32 %v503, %v1120
    %v1122 = vmul.f32 %v504, %v1120
    %v1123 = vadd.f32 %v1118, %v1121
    %v1124 = vadd.f32 %v1119, %v1122
    %v1125 = vstv %s300
    %v1126 = vmul.f32 %v511, %v1125
    %v1127 = vmul.f32 %v512, %v1125
    %v1128 = vstv %s316
    %v1129 = vmul.f32 %v519, %v1128
    %v1130 = vmul.f32 %v520, %v1128
    %v1131 = vadd.f32 %v1126, %v1129
    %v1132 = vadd.f32 %v1127, %v1130
    %v1133 = vadd.f32 %v1123, %v1131
    %v1134 = vadd.f32 %v1124, %v1132
    %v1135 = vstv %s332
    %v1136 = vmul.f32 %v527, %v1135
    %v1137 = vmul.f32 %v528, %v1135
    %v1138 = vstv %s348
    %v1139 = vmul.f32 %v535, %v1138
    %v1140 = vmul.f32 %v536, %v1138
    %v1141 = vadd.f32 %v1136, %v1139
    %v1142 = vadd.f32 %v1137, %v1140
    %v1143 = vstv %s364
    %v1144 = vmul.f32 %v543, %v1143
    %v1145 = vmul.f32 %v544, %v1143
    %v1146 = vstv %s380
    %v1147 = vmul.f32 %v551, %v1146
    %v1148 = vmul.f32 %v552, %v1146
    %v1149 = vadd.f32 %v1144, %v1147
    %v1150 = vadd.f32 %v1145, %v1148
    %v1151 = vadd.f32 %v1141, %v1149
    %v1152 = vadd.f32 %v1142, %v1150
    %v1153 = vadd.f32 %v1133, %v1151
    %v1154 = vadd.f32 %v1134, %v1152
    %v1155 = vadd.f32 %v1115, %v1153
    %v1156 = vadd.f32 %v1116, %v1154
    %v1157 = vstv %s396
    %v1158 = vadd.f32 %v1155, %v1157
    %v1159 = vadd.f32 %v1156, %v1157
    %v1160 = vmax.f32 %v1158, 0.0
    %v1161 = vmax.f32 %v1159, 0.0
    %v1162 = vstv %s412
    %v1163 = vmul.f32 %v1160, %v1162
    %v1164 = vmul.f32 %v1161, %v1162
    %v1165 = vadd.f32 %v1077, %v1163
    %v1166 = vadd.f32 %v1078, %v1164
    %v1167 = vstv %s141
    %v1168 = vmul.f32 %v431, %v1167
    %v1169 = vmul.f32 %v432, %v1167
    %v1170 = vstv %s157
    %v1171 = vmul.f32 %v439, %v1170
    %v1172 = vmul.f32 %v440, %v1170
    %v1173 = vadd.f32 %v1168, %v1171
    %v1174 = vadd.f32 %v1169, %v1172
    %v1175 = vstv %s173
    %v1176 = vmul.f32 %v447, %v1175
    %v1177 = vmul.f32 %v448, %v1175
    %v1178 = vstv %s189
    %v1179 = vmul.f32 %v455, %v1178
    %v1180 = vmul.f32 %v456, %v1178
    %v1181 = vadd.f32 %v1176, %v1179
    %v1182 = vadd.f32 %v1177, %v1180
    %v1183 = vadd.f32 %v1173, %v1181
    %v1184 = vadd.f32 %v1174, %v1182
    %v1185 = vstv %s205
    %v1186 = vmul.f32 %v463, %v1185
    %v1187 = vmul.f32 %v464, %v1185
    %v1188 = vstv %s221
    %v1189 = vmul.f32 %v471, %v1188
    %v1190 = vmul.f32 %v472, %v1188
    %v1191 = vadd.f32 %v1186, %v1189
    %v1192 = vadd.f32 %v1187, %v1190
    %v1193 = vstv %s237
    %v1194 = vmul.f32 %v479, %v1193
    %v1195 = vmul.f32 %v480, %v1193
    %v1196 = vstv %s253
    %v1197 = vmul.f32 %v487, %v1196
    %v1198 = vmul.f32 %v488, %v1196
    %v1199 = vadd.f32 %v1194, %v1197
    %v1200 = vadd.f32 %v1195, %v1198
    %v1201 = vadd.f32 %v1191, %v1199
    %v1202 = vadd.f32 %v1192, %v1200
    %v1203 = vadd.f32 %v1183, %v1201
    %v1204 = vadd.f32 %v1184, %v1202
    %v1205 = vstv %s269
    %v1206 = vmul.f32 %v495, %v1205
    %v1207 = vmul.f32 %v496, %v1205
    %v1208 = vstv %s285
    %v1209 = vmul.f32 %v503, %v1208
    %v1210 = vmul.f32 %v504, %v1208
    %v1211 = vadd.f32 %v1206, %v1209
    %v1212 = vadd.f32 %v1207, %v1210
    %v1213 = vstv %s301
    %v1214 = vmul.f32 %v511, %v1213
    %v1215 = vmul.f32 %v512, %v1213
    %v1216 = vstv %s317
    %v1217 = vmul.f32 %v519, %v1216
    %v1218 = vmul.f32 %v520, %v1216
    %v1219 = vadd.f32 %v1214, %v1217
    %v1220 = vadd.f32 %v1215, %v1218
    %v1221 = vadd.f32 %v1211, %v1219
    %v1222 = vadd.f32 %v1212, %v1220
    %v1223 = vstv %s333
    %v1224 = vmul.f32 %v527, %v1223
    %v1225 = vmul.f32 %v528, %v1223
    %v1226 = vstv %s349
    %v1227 = vmul.f32 %v535, %v1226
    %v1228 = vmul.f32 %v536, %v1226
    %v1229 = vadd.f32 %v1224, %v1227
    %v1230 = vadd.f32 %v1225, %v1228
    %v1231 = vstv %s365
    %v1232 = vmul.f32 %v543, %v1231
    %v1233 = vmul.f32 %v544, %v1231
    %v1234 = vstv %s381
    %v1235 = vmul.f32 %v551, %v1234
    %v1236 = vmul.f32 %v552, %v1234
    %v1237 = vadd.f32 %v1232, %v1235
    %v1238 = vadd.f32 %v1233, %v1236
    %v1239 = vadd.f32 %v1229, %v1237
    %v1240 = vadd.f32 %v1230, %v1238
    %v1241 = vadd.f32 %v1221, %v1239
    %v1242 = vadd.f32 %v1222, %v1240
    %v1243 = vadd.f32 %v1203, %v1241
    %v1244 = vadd.f32 %v1204, %v1242
    %v1245 = vstv %s397
    %v1246 = vadd.f32 %v1243, %v1245
    %v1247 = vadd.f32 %v1244, %v1245
    %v1248 = vmax.f32 %v1246, 0.0
    %v1249 = vmax.f32 %v1247, 0.0
    %v1250 = vstv %s413
    %v1251 = vmul.f32 %v1248, %v1250
    %v1252 = vmul.f32 %v1249, %v1250
    %v1253 = vadd.f32 %v1165, %v1251
    %v1254 = vadd.f32 %v1166, %v1252
    %v1255 = vstv %s142
    %v1256 = vmul.f32 %v431, %v1255
    %v1257 = vmul.f32 %v432, %v1255
    %v1258 = vstv %s158
    %v1259 = vmul.f32 %v439, %v1258
    %v1260 = vmul.f32 %v440, %v1258
    %v1261 = vadd.f32 %v1256, %v1259
    %v1262 = vadd.f32 %v1257, %v1260
    %v1263 = vstv %s174
    %v1264 = vmul.f32 %v447, %v1263
    %v1265 = vmul.f32 %v448, %v1263
    %v1266 = vstv %s190
    %v1267 = vmul.f32 %v455, %v1266
    %v1268 = vmul.f32 %v456, %v1266
    %v1269 = vadd.f32 %v1264, %v1267
    %v1270 = vadd.f32 %v1265, %v1268
    %v1271 = vadd.f32 %v1261, %v1269
    %v1272 = vadd.f32 %v1262, %v1270
    %v1273 = vstv %s206
    %v1274 = vmul.f32 %v463, %v1273
    %v1275 = vmul.f32 %v464, %v1273
    %v1276 = vstv %s222
    %v1277 = vmul.f32 %v471, %v1276
    %v1278 = vmul.f32 %v472, %v1276
    %v1279 = vadd.f32 %v1274, %v1277
    %v1280 = vadd.f32 %v1275, %v1278
    %v1281 = vstv %s238
    %v1282 = vmul.f32 %v479, %v1281
    %v1283 = vmul.f32 %v480, %v1281
    %v1284 = vstv %s254
    %v1285 = vmul.f32 %v487, %v1284
    %v1286 = vmul.f32 %v488, %v1284
    %v1287 = vadd.f32 %v1282, %v1285
    %v1288 = vadd.f32 %v1283, %v1286
    %v1289 = vadd.f32 %v1279, %v1287
    %v1290 = vadd.f32 %v1280, %v1288
    %v1291 = vadd.f32 %v1271, %v1289
    %v1292 = vadd.f32 %v1272, %v1290
    %v1293 = vstv %s270
    %v1294 = vmul.f32 %v495, %v1293
    %v1295 = vmul.f32 %v496, %v1293
    %v1296 = vstv %s286
    %v1297 = vmul.f32 %v503, %v1296
    %v1298 = vmul.f32 %v504, %v1296
    %v1299 = vadd.f32 %v1294, %v1297
    %v1300 = vadd.f32 %v1295, %v1298
    %v1301 = vstv %s302
    %v1302 = vmul.f32 %v511, %v1301
    %v1303 = vmul.f32 %v512, %v1301
    %v1304 = vstv %s318
    %v1305 = vmul.f32 %v519, %v1304
    %v1306 = vmul.f32 %v520, %v1304
    %v1307 = vadd.f32 %v1302, %v1305
    %v1308 = vadd.f32 %v1303, %v1306
    %v1309 = vadd.f32 %v1299, %v1307
    %v1310 = vadd.f32 %v1300, %v1308
    %v1311 = vstv %s334
    %v1312 = vmul.f32 %v527, %v1311
    %v1313 = vmul.f32 %v528, %v1311
    %v1314 = vstv %s350
    %v1315 = vmul.f32 %v535, %v1314
    %v1316 = vmul.f32 %v536, %v1314
    %v1317 = vadd.f32 %v1312, %v1315
    %v1318 = vadd.f32 %v1313, %v1316
    %v1319 = vstv %s366
    %v1320 = vmul.f32 %v543, %v1319
    %v1321 = vmul.f32 %v544, %v1319
    %v1322 = vstv %s382
    %v1323 = vmul.f32 %v551, %v1322
    %v1324 = vmul.f32 %v552, %v1322
    %v1325 = vadd.f32 %v1320, %v1323
    %v1326 = vadd.f32 %v1321, %v1324
    %v1327 = vadd.f32 %v1317, %v1325
    %v1328 = vadd.f32 %v1318, %v1326
    %v1329 = vadd.f32 %v1309, %v1327
    %v1330 = vadd.f32 %v1310, %v1328
    %v1331 = vadd.f32 %v1291, %v1329
    %v1332 = vadd.f32 %v1292, %v1330
    %v1333 = vstv %s398
    %v1334 = vadd.f32 %v1331, %v1333
    %v1335 = vadd.f32 %v1332, %v1333
    %v1336 = vmax.f32 %v1334, 0.0
    %v1337 = vmax.f32 %v1335, 0.0
    %v1338 = vstv %s414
    %v1339 = vmul.f32 %v1336, %v1338
    %v1340 = vmul.f32 %v1337, %v1338
    %v1341 = vadd.f32 %v1253, %v1339
    %v1342 = vadd.f32 %v1254, %v1340
    %v1343 = vstv %s143
    %v1344 = vmul.f32 %v431, %v1343
    %v1345 = vmul.f32 %v432, %v1343
    %v1346 = vstv %s159
    %v1347 = vmul.f32 %v439, %v1346
    %v1348 = vmul.f32 %v440, %v1346
    %v1349 = vadd.f32 %v1344, %v1347
    %v1350 = vadd.f32 %v1345, %v1348
    %v1351 = vstv %s175
    %v1352 = vmul.f32 %v447, %v1351
    %v1353 = vmul.f32 %v448, %v1351
    %v1354 = vstv %s191
    %v1355 = vmul.f32 %v455, %v1354
    %v1356 = vmul.f32 %v456, %v1354
    %v1357 = vadd.f32 %v1352, %v1355
    %v1358 = vadd.f32 %v1353, %v1356
    %v1359 = vadd.f32 %v1349, %v1357
    %v1360 = vadd.f32 %v1350, %v1358
    %v1361 = vstv %s207
    %v1362 = vmul.f32 %v463, %v1361
    %v1363 = vmul.f32 %v464, %v1361
    %v1364 = vstv %s223
    %v1365 = vmul.f32 %v471, %v1364
    %v1366 = vmul.f32 %v472, %v1364
    %v1367 = vadd.f32 %v1362, %v1365
    %v1368 = vadd.f32 %v1363, %v1366
    %v1369 = vstv %s239
    %v1370 = vmul.f32 %v479, %v1369
    %v1371 = vmul.f32 %v480, %v1369
    %v1372 = vstv %s255
    %v1373 = vmul.f32 %v487, %v1372
    %v1374 = vmul.f32 %v488, %v1372
    %v1375 = vadd.f32 %v1370, %v1373
    %v1376 = vadd.f32 %v1371, %v1374
    %v1377 = vadd.f32 %v1367, %v1375
    %v1378 = vadd.f32 %v1368, %v1376
    %v1379 = vadd.f32 %v1359, %v1377
    %v1380 = vadd.f32 %v1360, %v1378
    %v1381 = vstv %s271
    %v1382 = vmul.f32 %v495, %v1381
    %v1383 = vmul.f32 %v496, %v1381
    %v1384 = vstv %s287
    %v1385 = vmul.f32 %v503, %v1384
    %v1386 = vmul.f32 %v504, %v1384
    %v1387 = vadd.f32 %v1382, %v1385
    %v1388 = vadd.f32 %v1383, %v1386
    %v1389 = vstv %s303
    %v1390 = vmul.f32 %v511, %v1389
    %v1391 = vmul.f32 %v512, %v1389
    %v1392 = vstv %s319
    %v1393 = vmul.f32 %v519, %v1392
    %v1394 = vmul.f32 %v520, %v1392
    %v1395 = vadd.f32 %v1390, %v1393
    %v1396 = vadd.f32 %v1391, %v1394
    %v1397 = vadd.f32 %v1387, %v1395
    %v1398 = vadd.f32 %v1388, %v1396
    %v1399 = vstv %s335
    %v1400 = vmul.f32 %v527, %v1399
    %v1401 = vmul.f32 %v528, %v1399
    %v1402 = vstv %s351
    %v1403 = vmul.f32 %v535, %v1402
    %v1404 = vmul.f32 %v536, %v1402
    %v1405 = vadd.f32 %v1400, %v1403
    %v1406 = vadd.f32 %v1401, %v1404
    %v1407 = vstv %s367
    %v1408 = vmul.f32 %v543, %v1407
    %v1409 = vmul.f32 %v544, %v1407
    %v1410 = vstv %s383
    %v1411 = vmul.f32 %v551, %v1410
    %v1412 = vmul.f32 %v552, %v1410
    %v1413 = vadd.f32 %v1408, %v1411
    %v1414 = vadd.f32 %v1409, %v1412
    %v1415 = vadd.f32 %v1405, %v1413
    %v1416 = vadd.f32 %v1406, %v1414
    %v1417 = vadd.f32 %v1397, %v1415
    %v1418 = vadd.f32 %v1398, %v1416
    %v1419 = vadd.f32 %v1379, %v1417
    %v1420 = vadd.f32 %v1380, %v1418
    %v1421 = vstv %s399
    %v1422 = vadd.f32 %v1419, %v1421
    %v1423 = vadd.f32 %v1420, %v1421
    %v1424 = vmax.f32 %v1422, 0.0
    %v1425 = vmax.f32 %v1423, 0.0
    %v1426 = vstv %s415
    %v1427 = vmul.f32 %v1424, %v1426
    %v1428 = vmul.f32 %v1425, %v1426
    %v1429 = vadd.f32 %v1341, %v1427
    %v1430 = vadd.f32 %v1342, %v1428
    %v1431 = vstv %s144
    %v1432 = vmul.f32 %v431, %v1431
    %v1433 = vmul.f32 %v432, %v1431
    %v1434 = vstv %s160
    %v1435 = vmul.f32 %v439, %v1434
    %v1436 = vmul.f32 %v440, %v1434
    %v1437 = vadd.f32 %v1432, %v1435
    %v1438 = vadd.f32 %v1433, %v1436
    %v1439 = vstv %s176
    %v1440 = vmul.f32 %v447, %v1439
    %v1441 = vmul.f32 %v448, %v1439
    %v1442 = vstv %s192
    %v1443 = vmul.f32 %v455, %v1442
    %v1444 = vmul.f32 %v456, %v1442
    %v1445 = vadd.f32 %v1440, %v1443
    %v1446 = vadd.f32 %v1441, %v1444
    %v1447 = vadd.f32 %v1437, %v1445
    %v1448 = vadd.f32 %v1438, %v1446
    %v1449 = vstv %s208
    %v1450 = vmul.f32 %v463, %v1449
    %v1451 = vmul.f32 %v464, %v1449
    %v1452 = vstv %s224
    %v1453 = vmul.f32 %v471, %v1452
    %v1454 = vmul.f32 %v472, %v1452
    %v1455 = vadd.f32 %v1450, %v1453
    %v1456 = vadd.f32 %v1451, %v1454
    %v1457 = vstv %s240
    %v1458 = vmul.f32 %v479, %v1457
    %v1459 = vmul.f32 %v480, %v1457
    %v1460 = vstv %s256
    %v1461 = vmul.f32 %v487, %v1460
    %v1462 = vmul.f32 %v488, %v1460
    %v1463 = vadd.f32 %v1458, %v1461
    %v1464 = vadd.f32 %v1459, %v1462
    %v1465 = vadd.f32 %v1455, %v1463
    %v1466 = vadd.f32 %v1456, %v1464
    %v1467 = vadd.f32 %v1447, %v1465
    %v1468 = vadd.f32 %v1448, %v1466
    %v1469 = vstv %s272
    %v1470 = vmul.f32 %v495, %v1469
    %v1471 = vmul.f32 %v496, %v1469
    %v1472 = vstv %s288
    %v1473 = vmul.f32 %v503, %v1472
    %v1474 = vmul.f32 %v504, %v1472
    %v1475 = vadd.f32 %v1470, %v1473
    %v1476 = vadd.f32 %v1471, %v1474
    %v1477 = vstv %s304
    %v1478 = vmul.f32 %v511, %v1477
    %v1479 = vmul.f32 %v512, %v1477
    %v1480 = vstv %s320
    %v1481 = vmul.f32 %v519, %v1480
    %v1482 = vmul.f32 %v520, %v1480
    %v1483 = vadd.f32 %v1478, %v1481
    %v1484 = vadd.f32 %v1479, %v1482
    %v1485 = vadd.f32 %v1475, %v1483
    %v1486 = vadd.f32 %v1476, %v1484
    %v1487 = vstv %s336
    %v1488 = vmul.f32 %v527, %v1487
    %v1489 = vmul.f32 %v528, %v1487
    %v1490 = vstv %s352
    %v1491 = vmul.f32 %v535, %v1490
    %v1492 = vmul.f32 %v536, %v1490
    %v1493 = vadd.f32 %v1488, %v1491
    %v1494 = vadd.f32 %v1489, %v1492
    %v1495 = vstv %s368
    %v1496 = vmul.f32 %v543, %v1495
    %v1497 = vmul.f32 %v544, %v1495
    %v1498 = vstv %s384
    %v1499 = vmul.f32 %v551, %v1498
    %v1500 = vmul.f32 %v552, %v1498
    %v1501 = vadd.f32 %v1496, %v1499
    %v1502 = vadd.f32 %v1497, %v1500
    %v1503 = vadd.f32 %v1493, %v1501
    %v1504 = vadd.f32 %v1494, %v1502
    %v1505 = vadd.f32 %v1485, %v1503
    %v1506 = vadd.f32 %v1486, %v1504
    %v1507 = vadd.f32 %v1467, %v1505
    %v1508 = vadd.f32 %v1468, %v1506
    %v1509 = vstv %s400
    %v1510 = vadd.f32 %v1507, %v1509
    %v1511 = vadd.f32 %v1508, %v1509
    %v1512 = vmax.f32 %v1510, 0.0
    %v1513 = vmax.f32 %v1511, 0.0
    %v1514 = vstv %s416
    %v1515 = vmul.f32 %v1512, %v1514
    %v1516 = vmul.f32 %v1513, %v1514
    %v1517 = vadd.f32 %v1429, %v1515
    %v1518 = vadd.f32 %v1430, %v1516
    %v1519 = vstv %s145
    %v1520 = vmul.f32 %v431, %v1519
    %v1521 = vmul.f32 %v432, %v1519
    %v1522 = vstv %s161
    %v1523 = vmul.f32 %v439, %v1522
    %v1524 = vmul.f32 %v440, %v1522
    %v1525 = vadd.f32 %v1520, %v1523
    %v1526 = vadd.f32 %v1521, %v1524
    %v1527 = vstv %s177
    %v1528 = vmul.f32 %v447, %v1527
    %v1529 = vmul.f32 %v448, %v1527
    %v1530 = vstv %s193
    %v1531 = vmul.f32 %v455, %v1530
    %v1532 = vmul.f32 %v456, %v1530
    %v1533 = vadd.f32 %v1528, %v1531
    %v1534 = vadd.f32 %v1529, %v1532
    %v1535 = vadd.f32 %v1525, %v1533
    %v1536 = vadd.f32 %v1526, %v1534
    %v1537 = vstv %s209
    %v1538 = vmul.f32 %v463, %v1537
    %v1539 = vmul.f32 %v464, %v1537
    %v1540 = vstv %s225
    %v1541 = vmul.f32 %v471, %v1540
    %v1542 = vmul.f32 %v472, %v1540
    %v1543 = vadd.f32 %v1538, %v1541
    %v1544 = vadd.f32 %v1539, %v1542
    %v1545 = vstv %s241
    %v1546 = vmul.f32 %v479, %v1545
    %v1547 = vmul.f32 %v480, %v1545
    %v1548 = vstv %s257
    %v1549 = vmul.f32 %v487, %v1548
    %v1550 = vmul.f32 %v488, %v1548
    %v1551 = vadd.f32 %v1546, %v1549
    %v1552 = vadd.f32 %v1547, %v1550
    %v1553 = vadd.f32 %v1543, %v1551
    %v1554 = vadd.f32 %v1544, %v1552
    %v1555 = vadd.f32 %v1535, %v1553
    %v1556 = vadd.f32 %v1536, %v1554
    %v1557 = vstv %s273
    %v1558 = vmul.f32 %v495, %v1557
    %v1559 = vmul.f32 %v496, %v1557
    %v1560 = vstv %s289
    %v1561 = vmul.f32 %v503, %v1560
    %v1562 = vmul.f32 %v504, %v1560
    %v1563 = vadd.f32 %v1558, %v1561
    %v1564 = vadd.f32 %v1559, %v1562
    %v1565 = vstv %s305
    %v1566 = vmul.f32 %v511, %v1565
    %v1567 = vmul.f32 %v512, %v1565
    %v1568 = vstv %s321
    %v1569 = vmul.f32 %v519, %v1568
    %v1570 = vmul.f32 %v520, %v1568
    %v1571 = vadd.f32 %v1566, %v1569
    %v1572 = vadd.f32 %v1567, %v1570
    %v1573 = vadd.f32 %v1563, %v1571
    %v1574 = vadd.f32 %v1564, %v1572
    %v1575 = vstv %s337
    %v1576 = vmul.f32 %v527, %v1575
    %v1577 = vmul.f32 %v528, %v1575
    %v1578 = vstv %s353
    %v1579 = vmul.f32 %v535, %v1578
    %v1580 = vmul.f32 %v536, %v1578
    %v1581 = vadd.f32 %v1576, %v1579
    %v1582 = vadd.f32 %v1577, %v1580
    %v1583 = vstv %s369
    %v1584 = vmul.f32 %v543, %v1583
    %v1585 = vmul.f32 %v544, %v1583
    %v1586 = vstv %s385
    %v1587 = vmul.f32 %v551, %v1586
    %v1588 = vmul.f32 %v552, %v1586
    %v1589 = vadd.f32 %v1584, %v1587
    %v1590 = vadd.f32 %v1585, %v1588
    %v1591 = vadd.f32 %v1581, %v1589
    %v1592 = vadd.f32 %v1582, %v1590
    %v1593 = vadd.f32 %v1573, %v1591
    %v1594 = vadd.f32 %v1574, %v1592
    %v1595 = vadd.f32 %v1555, %v1593
    %v1596 = vadd.f32 %v1556, %v1594
    %v1597 = vstv %s401
    %v1598 = vadd.f32 %v1595, %v1597
    %v1599 = vadd.f32 %v1596, %v1597
    %v1600 = vmax.f32 %v1598, 0.0
    %v1601 = vmax.f32 %v1599, 0.0
    %v1602 = vstv %s417
    %v1603 = vmul.f32 %v1600, %v1602
    %v1604 = vmul.f32 %v1601, %v1602
    %v1605 = vadd.f32 %v1517, %v1603
    %v1606 = vadd.f32 %v1518, %v1604
    %v1607 = vstv %s146
    %v1608 = vmul.f32 %v431, %v1607
    %v1609 = vmul.f32 %v432, %v1607
    %v1610 = vstv %s162
    %v1611 = vmul.f32 %v439, %v1610
    %v1612 = vmul.f32 %v440, %v1610
    %v1613 = vadd.f32 %v1608, %v1611
    %v1614 = vadd.f32 %v1609, %v1612
    %v1615 = vstv %s178
    %v1616 = vmul.f32 %v447, %v1615
    %v1617 = vmul.f32 %v448, %v1615
    %v1618 = vstv %s194
    %v1619 = vmul.f32 %v455, %v1618
    %v1620 = vmul.f32 %v456, %v1618
    %v1621 = vadd.f32 %v1616, %v1619
    %v1622 = vadd.f32 %v1617, %v1620
    %v1623 = vadd.f32 %v1613, %v1621
    %v1624 = vadd.f32 %v1614, %v1622
    %v1625 = vstv %s210
    %v1626 = vmul.f32 %v463, %v1625
    %v1627 = vmul.f32 %v464, %v1625
    %v1628 = vstv %s226
    %v1629 = vmul.f32 %v471, %v1628
    %v1630 = vmul.f32 %v472, %v1628
    %v1631 = vadd.f32 %v1626, %v1629
    %v1632 = vadd.f32 %v1627, %v1630
    %v1633 = vstv %s242
    %v1634 = vmul.f32 %v479, %v1633
    %v1635 = vmul.f32 %v480, %v1633
    %v1636 = vstv %s258
    %v1637 = vmul.f32 %v487, %v1636
    %v1638 = vmul.f32 %v488, %v1636
    %v1639 = vadd.f32 %v1634, %v1637
    %v1640 = vadd.f32 %v1635, %v1638
    %v1641 = vadd.f32 %v1631, %v1639
    %v1642 = vadd.f32 %v1632, %v1640
    %v1643 = vadd.f32 %v1623, %v1641
    %v1644 = vadd.f32 %v1624, %v1642
    %v1645 = vstv %s274
    %v1646 = vmul.f32 %v495, %v1645
    %v1647 = vmul.f32 %v496, %v1645
    %v1648 = vstv %s290
    %v1649 = vmul.f32 %v503, %v1648
    %v1650 = vmul.f32 %v504, %v1648
    %v1651 = vadd.f32 %v1646, %v1649
    %v1652 = vadd.f32 %v1647, %v1650
    %v1653 = vstv %s306
    %v1654 = vmul.f32 %v511, %v1653
    %v1655 = vmul.f32 %v512, %v1653
    %v1656 = vstv %s322
    %v1657 = vmul.f32 %v519, %v1656
    %v1658 = vmul.f32 %v520, %v1656
    %v1659 = vadd.f32 %v1654, %v1657
    %v1660 = vadd.f32 %v1655, %v1658
    %v1661 = vadd.f32 %v1651, %v1659
    %v1662 = vadd.f32 %v1652, %v1660
    %v1663 = vstv %s338
    %v1664 = vmul.f32 %v527, %v1663
    %v1665 = vmul.f32 %v528, %v1663
    %v1666 = vstv %s354
    %v1667 = vmul.f32 %v535, %v1666
    %v1668 = vmul.f32 %v536, %v1666
    %v1669 = vadd.f32 %v1664, %v1667
    %v1670 = vadd.f32 %v1665, %v1668
    %v1671 = vstv %s370
    %v1672 = vmul.f32 %v543, %v1671
    %v1673 = vmul.f32 %v544, %v1671
    %v1674 = vstv %s386
    %v1675 = vmul.f32 %v551, %v1674
    %v1676 = vmul.f32 %v552, %v1674
    %v1677 = vadd.f32 %v1672, %v1675
    %v1678 = vadd.f32 %v1673, %v1676
    %v1679 = vadd.f32 %v1669, %v1677
    %v1680 = vadd.f32 %v1670, %v1678
    %v1681 = vadd.f32 %v1661, %v1679
    %v1682 = vadd.f32 %v1662, %v1680
    %v1683 = vadd.f32 %v1643, %v1681
    %v1684 = vadd.f32 %v1644, %v1682
    %v1685 = vstv %s402
    %v1686 = vadd.f32 %v1683, %v1685
    %v1687 = vadd.f32 %v1684, %v1685
    %v1688 = vmax.f32 %v1686, 0.0
    %v1689 = vmax.f32 %v1687, 0.0
    %v1690 = vstv %s418
    %v1691 = vmul.f32 %v1688, %v1690
    %v1692 = vmul.f32 %v1689, %v1690
    %v1693 = vadd.f32 %v1605, %v1691
    %v1694 = vadd.f32 %v1606, %v1692
    %v1695 = vstv %s147
    %v1696 = vmul.f32 %v431, %v1695
    %v1697 = vmul.f32 %v432, %v1695
    %v1698 = vstv %s163
    %v1699 = vmul.f32 %v439, %v1698
    %v1700 = vmul.f32 %v440, %v1698
    %v1701 = vadd.f32 %v1696, %v1699
    %v1702 = vadd.f32 %v1697, %v1700
    %v1703 = vstv %s179
    %v1704 = vmul.f32 %v447, %v1703
    %v1705 = vmul.f32 %v448, %v1703
    %v1706 = vstv %s195
    %v1707 = vmul.f32 %v455, %v1706
    %v1708 = vmul.f32 %v456, %v1706
    %v1709 = vadd.f32 %v1704, %v1707
    %v1710 = vadd.f32 %v1705, %v1708
    %v1711 = vadd.f32 %v1701, %v1709
    %v1712 = vadd.f32 %v1702, %v1710
    %v1713 = vstv %s211
    %v1714 = vmul.f32 %v463, %v1713
    %v1715 = vmul.f32 %v464, %v1713
    %v1716 = vstv %s227
    %v1717 = vmul.f32 %v471, %v1716
    %v1718 = vmul.f32 %v472, %v1716
    %v1719 = vadd.f32 %v1714, %v1717
    %v1720 = vadd.f32 %v1715, %v1718
    %v1721 = vstv %s243
    %v1722 = vmul.f32 %v479, %v1721
    %v1723 = vmul.f32 %v480, %v1721
    %v1724 = vstv %s259
    %v1725 = vmul.f32 %v487, %v1724
    %v1726 = vmul.f32 %v488, %v1724
    %v1727 = vadd.f32 %v1722, %v1725
    %v1728 = vadd.f32 %v1723, %v1726
    %v1729 = vadd.f32 %v1719, %v1727
    %v1730 = vadd.f32 %v1720, %v1728
    %v1731 = vadd.f32 %v1711, %v1729
    %v1732 = vadd.f32 %v1712, %v1730
    %v1733 = vstv %s275
    %v1734 = vmul.f32 %v495, %v1733
    %v1735 = vmul.f32 %v496, %v1733
    %v1736 = vstv %s291
    %v1737 = vmul.f32 %v503, %v1736
    %v1738 = vmul.f32 %v504, %v1736
    %v1739 = vadd.f32 %v1734, %v1737
    %v1740 = vadd.f32 %v1735, %v1738
    %v1741 = vstv %s307
    %v1742 = vmul.f32 %v511, %v1741
    %v1743 = vmul.f32 %v512, %v1741
    %v1744 = vstv %s323
    %v1745 = vmul.f32 %v519, %v1744
    %v1746 = vmul.f32 %v520, %v1744
    %v1747 = vadd.f32 %v1742, %v1745
    %v1748 = vadd.f32 %v1743, %v1746
    %v1749 = vadd.f32 %v1739, %v1747
    %v1750 = vadd.f32 %v1740, %v1748
    %v1751 = vstv %s339
    %v1752 = vmul.f32 %v527, %v1751
    %v1753 = vmul.f32 %v528, %v1751
    %v1754 = vstv %s355
    %v1755 = vmul.f32 %v535, %v1754
    %v1756 = vmul.f32 %v536, %v1754
    %v1757 = vadd.f32 %v1752, %v1755
    %v1758 = vadd.f32 %v1753, %v1756
    %v1759 = vstv %s371
    %v1760 = vmul.f32 %v543, %v1759
    %v1761 = vmul.f32 %v544, %v1759
    %v1762 = vstv %s387
    %v1763 = vmul.f32 %v551, %v1762
    %v1764 = vmul.f32 %v552, %v1762
    %v1765 = vadd.f32 %v1760, %v1763
    %v1766 = vadd.f32 %v1761, %v1764
    %v1767 = vadd.f32 %v1757, %v1765
    %v1768 = vadd.f32 %v1758, %v1766
    %v1769 = vadd.f32 %v1749, %v1767
    %v1770 = vadd.f32 %v1750, %v1768
    %v1771 = vadd.f32 %v1731, %v1769
    %v1772 = vadd.f32 %v1732, %v1770
    %v1773 = vstv %s403
    %v1774 = vadd.f32 %v1771, %v1773
    %v1775 = vadd.f32 %v1772, %v1773
    %v1776 = vmax.f32 %v1774, 0.0
    %v1777 = vmax.f32 %v1775, 0.0
    %v1778 = vstv %s419
    %v1779 = vmul.f32 %v1776, %v1778
    %v1780 = vmul.f32 %v1777, %v1778
    %v1781 = vadd.f32 %v1693, %v1779
    %v1782 = vadd.f32 %v1694, %v1780
    %v1783 = vstv %s148
    %v1784 = vmul.f32 %v431, %v1783
    %v1785 = vmul.f32 %v432, %v1783
    %v1786 = vstv %s164
    %v1787 = vmul.f32 %v439, %v1786
    %v1788 = vmul.f32 %v440, %v1786
    %v1789 = vadd.f32 %v1784, %v1787
    %v1790 = vadd.f32 %v1785, %v1788
    %v1791 = vstv %s180
    %v1792 = vmul.f32 %v447, %v1791
    %v1793 = vmul.f32 %v448, %v1791
    %v1794 = vstv %s196
    %v1795 = vmul.f32 %v455, %v1794
    %v1796 = vmul.f32 %v456, %v1794
    %v1797 = vadd.f32 %v1792, %v1795
    %v1798 = vadd.f32 %v1793, %v1796
    %v1799 = vadd.f32 %v1789, %v1797
    %v1800 = vadd.f32 %v1790, %v1798
    %v1801 = vstv %s212
    %v1802 = vmul.f32 %v463, %v1801
    %v1803 = vmul.f32 %v464, %v1801
    %v1804 = vstv %s228
    %v1805 = vmul.f32 %v471, %v1804
    %v1806 = vmul.f32 %v472, %v1804
    %v1807 = vadd.f32 %v1802, %v1805
    %v1808 = vadd.f32 %v1803, %v1806
    %v1809 = vstv %s244
    %v1810 = vmul.f32 %v479, %v1809
    %v1811 = vmul.f32 %v480, %v1809
    %v1812 = vstv %s260
    %v1813 = vmul.f32 %v487, %v1812
    %v1814 = vmul.f32 %v488, %v1812
    %v1815 = vadd.f32 %v1810, %v1813
    %v1816 = vadd.f32 %v1811, %v1814
    %v1817 = vadd.f32 %v1807, %v1815
    %v1818 = vadd.f32 %v1808, %v1816
    %v1819 = vadd.f32 %v1799, %v1817
    %v1820 = vadd.f32 %v1800, %v1818
    %v1821 = vstv %s276
    %v1822 = vmul.f32 %v495, %v1821
    %v1823 = vmul.f32 %v496, %v1821
    %v1824 = vstv %s292
    %v1825 = vmul.f32 %v503, %v1824
    %v1826 = vmul.f32 %v504, %v1824
    %v1827 = vadd.f32 %v1822, %v1825
    %v1828 = vadd.f32 %v1823, %v1826
    %v1829 = vstv %s308
    %v1830 = vmul.f32 %v511, %v1829
    %v1831 = vmul.f32 %v512, %v1829
    %v1832 = vstv %s324
    %v1833 = vmul.f32 %v519, %v1832
    %v1834 = vmul.f32 %v520, %v1832
    %v1835 = vadd.f32 %v1830, %v1833
    %v1836 = vadd.f32 %v1831, %v1834
    %v1837 = vadd.f32 %v1827, %v1835
    %v1838 = vadd.f32 %v1828, %v1836
    %v1839 = vstv %s340
    %v1840 = vmul.f32 %v527, %v1839
    %v1841 = vmul.f32 %v528, %v1839
    %v1842 = vstv %s356
    %v1843 = vmul.f32 %v535, %v1842
    %v1844 = vmul.f32 %v536, %v1842
    %v1845 = vadd.f32 %v1840, %v1843
    %v1846 = vadd.f32 %v1841, %v1844
    %v1847 = vstv %s372
    %v1848 = vmul.f32 %v543, %v1847
    %v1849 = vmul.f32 %v544, %v1847
    %v1850 = vstv %s388
    %v1851 = vmul.f32 %v551, %v1850
    %v1852 = vmul.f32 %v552, %v1850
    %v1853 = vadd.f32 %v1848, %v1851
    %v1854 = vadd.f32 %v1849, %v1852
    %v1855 = vadd.f32 %v1845, %v1853
    %v1856 = vadd.f32 %v1846, %v1854
    %v1857 = vadd.f32 %v1837, %v1855
    %v1858 = vadd.f32 %v1838, %v1856
    %v1859 = vadd.f32 %v1819, %v1857
    %v1860 = vadd.f32 %v1820, %v1858
    %v1861 = vstv %s404
    %v1862 = vadd.f32 %v1859, %v1861
    %v1863 = vadd.f32 %v1860, %v1861
    %v1864 = vmax.f32 %v1862, 0.0
    %v1865 = vmax.f32 %v1863, 0.0
    %v1866 = vstv %s420
    %v1867 = vmul.f32 %v1864, %v1866
    %v1868 = vmul.f32 %v1865, %v1866
    %v1869 = vadd.f32 %v1781, %v1867
    %v1870 = vadd.f32 %v1782, %v1868
    %v1871 = vstv %s149
    %v1872 = vmul.f32 %v431, %v1871
    %v1873 = vmul.f32 %v432, %v1871
    %v1874 = vstv %s165
    %v1875 = vmul.f32 %v439, %v1874
    %v1876 = vmul.f32 %v440, %v1874
    %v1877 = vadd.f32 %v1872, %v1875
    %v1878 = vadd.f32 %v1873, %v1876
    %v1879 = vstv %s181
    %v1880 = vmul.f32 %v447, %v1879
    %v1881 = vmul.f32 %v448, %v1879
    %v1882 = vstv %s197
    %v1883 = vmul.f32 %v455, %v1882
    %v1884 = vmul.f32 %v456, %v1882
    %v1885 = vadd.f32 %v1880, %v1883
    %v1886 = vadd.f32 %v1881, %v1884
    %v1887 = vadd.f32 %v1877, %v1885
    %v1888 = vadd.f32 %v1878, %v1886
    %v1889 = vstv %s213
    %v1890 = vmul.f32 %v463, %v1889
    %v1891 = vmul.f32 %v464, %v1889
    %v1892 = vstv %s229
    %v1893 = vmul.f32 %v471, %v1892
    %v1894 = vmul.f32 %v472, %v1892
    %v1895 = vadd.f32 %v1890, %v1893
    %v1896 = vadd.f32 %v1891, %v1894
    %v1897 = vstv %s245
    %v1898 = vmul.f32 %v479, %v1897
    %v1899 = vmul.f32 %v480, %v1897
    %v1900 = vstv %s261
    %v1901 = vmul.f32 %v487, %v1900
    %v1902 = vmul.f32 %v488, %v1900
    %v1903 = vadd.f32 %v1898, %v1901
    %v1904 = vadd.f32 %v1899, %v1902
    %v1905 = vadd.f32 %v1895, %v1903
    %v1906 = vadd.f32 %v1896, %v1904
    %v1907 = vadd.f32 %v1887, %v1905
    %v1908 = vadd.f32 %v1888, %v1906
    %v1909 = vstv %s277
    %v1910 = vmul.f32 %v495, %v1909
    %v1911 = vmul.f32 %v496, %v1909
    %v1912 = vstv %s293
    %v1913 = vmul.f32 %v503, %v1912
    %v1914 = vmul.f32 %v504, %v1912
    %v1915 = vadd.f32 %v1910, %v1913
    %v1916 = vadd.f32 %v1911, %v1914
    %v1917 = vstv %s309
    %v1918 = vmul.f32 %v511, %v1917
    %v1919 = vmul.f32 %v512, %v1917
    %v1920 = vstv %s325
    %v1921 = vmul.f32 %v519, %v1920
    %v1922 = vmul.f32 %v520, %v1920
    %v1923 = vadd.f32 %v1918, %v1921
    %v1924 = vadd.f32 %v1919, %v1922
    %v1925 = vadd.f32 %v1915, %v1923
    %v1926 = vadd.f32 %v1916, %v1924
    %v1927 = vstv %s341
    %v1928 = vmul.f32 %v527, %v1927
    %v1929 = vmul.f32 %v528, %v1927
    %v1930 = vstv %s357
    %v1931 = vmul.f32 %v535, %v1930
    %v1932 = vmul.f32 %v536, %v1930
    %v1933 = vadd.f32 %v1928, %v1931
    %v1934 = vadd.f32 %v1929, %v1932
    %v1935 = vstv %s373
    %v1936 = vmul.f32 %v543, %v1935
    %v1937 = vmul.f32 %v544, %v1935
    %v1938 = vstv %s389
    %v1939 = vmul.f32 %v551, %v1938
    %v1940 = vmul.f32 %v552, %v1938
    %v1941 = vadd.f32 %v1936, %v1939
    %v1942 = vadd.f32 %v1937, %v1940
    %v1943 = vadd.f32 %v1933, %v1941
    %v1944 = vadd.f32 %v1934, %v1942
    %v1945 = vadd.f32 %v1925, %v1943
    %v1946 = vadd.f32 %v1926, %v1944
    %v1947 = vadd.f32 %v1907, %v1945
    %v1948 = vadd.f32 %v1908, %v1946
    %v1949 = vstv %s405
    %v1950 = vadd.f32 %v1947, %v1949
    %v1951 = vadd.f32 %v1948, %v1949
    %v1952 = vmax.f32 %v1950, 0.0
    %v1953 = vmax.f32 %v1951, 0.0
    %v1954 = vstv %s421
    %v1955 = vmul.f32 %v1952, %v1954
    %v1956 = vmul.f32 %v1953, %v1954
    %v1957 = vadd.f32 %v1869, %v1955
    %v1958 = vadd.f32 %v1870, %v1956
    %v1959 = vstv %s422
    %v1960 = vadd.f32 %v1957, %v1959
    %v1961 = vadd.f32 %v1958, %v1959
    %1962 = vst [vmem:[#allocation15] sm:$0xff] %v1960
    %1963 = vst [vmem:[#allocation15 + $0x8] sm:$0xff] %v1961
    // Predicated region
    $region54: #{tpu_custom_call.1} parent=1 // pred_check
      _
    $region55: #{tpu_custom_call.1} parent=1 // pred_check_branch
      %1965 = sbr.rel (0) target = $region57
    $region56: #{tpu_custom_call.1} parent=1 // pred_region
      %s1967 = ssub.s32 256, 256
      %1968 = vsyncadd [#allocation5], %s1967
      %s1969 = sshll.u32 [#allocation15], 4
      %s1970 = int_to_ptr.vmem [resolvable:$true] %s1969
      %1975 = dma.vmem_to_hbm [thread:$0]  %s1970, 256, %s7, [#allocation5], 128, 128, 8
    $region57: #{tpu_custom_call.1} parent=1 // pred_fallthru
      _
    // Predicated region
    $region58: #{tpu_custom_call.1} parent=1 // pred_check
      _
    $region59: #{tpu_custom_call.1} parent=1 // pred_check_branch
      %1977 = sbr.rel (0) target = $region61
    $region60: #{tpu_custom_call.1} parent=1 // pred_region
      %1978 = dma.done [#allocation5], 256
    $region61: #{tpu_custom_call.1} parent=1 // pred_fallthru
      _
    %1979 = vsyncpa [#allocation4], 1
    %1980 = vsyncpa [#allocation5], 1
    %1981 = vsyncpa [#allocation6], 1
    %1982 = vsyncpa [#allocation7], 1
    %1983 = vsyncpa [#allocation10], 1
    %1984 = vsyncpa [#allocation14], 1

</llo_original>
